<compile_context>
chip_gen: v7x
topology: tpu7x:2x2x1
jax: 0.10.0
libtpu: 0.0.40
codegen_flags: <defaults>
</compile_context>

<pallas_src>
import numpy as np
import jax
import jax.numpy as jnp
from jax import lax
from jax.experimental import pallas as pl
from jax.experimental.pallas import tpu as pltpu

B = 2                       # demo batch (wrapper supports any batch size)
L = 300                     # conv1(k=62) -> 239, maxpool(2) -> 119, conv2(k=62) -> 58
LPAD = 384                  # x lane-padded to 3 lane tiles (roll stays tile aligned)
K1, C1 = 62, 5
T1 = L - K1 + 1             # 239
P1 = (T1 - 2) // 2 + 1      # 119 pooled positions
K2, C2 = 62, 5
T2 = P1 - K2 + 1            # 58
FLAT = C2 * T2              # 290  (torch view(-1, 58*5), channel-major)
H1, H2, NCLS = 128, 64, 6

POOL_COLS = C1 * P1         # 595 valid pooled columns, index = c*119 + p
POOL_PAD = 640              # padded to 5 lane tiles
OUT_PAD = 128               # logits padded to one lane tile (unmasked store)
BT = 128                    # batch tile (rows per grid step / matmul M dim)


# ---- single fused kernel: conv1 + pool + relu -> conv2 + relu -> 3-layer MLP ----
def fused_kernel(x_ref, w1_ref, b1_ref, w2_ref, b2_ref,
                 l1w_ref, l1b_ref, l2w_ref, l2b_ref, l3w_ref, l3b_ref, o_ref):
    xf = x_ref[...]                                     # (BT, 384) f32
    xb = xf.astype(jnp.bfloat16)
    w1 = w1_ref[...]                                    # (384, 640) bf16, even-parity band

    # conv1 as two lane-dense matmuls sharing ONE band:
    #   even parity  t = 2p   :  x        @ band
    #   odd parity   t = 2p+1 :  roll(x,-1) @ band   (shift = LPAD-1 ≡ -1 mod LPAD;
    #   the wrapped lane 383 only hits the all-zero band row 383.)
    y_even = jnp.dot(xb, w1, preferred_element_type=jnp.float32)
    x_odd = pltpu.roll(xf, shift=LPAD - 1, axis=1).astype(jnp.bfloat16)
    y_odd = jnp.dot(x_odd, w1, preferred_element_type=jnp.float32)

    # maxpool(2) is a plain max of the two parities; relu(max(.,.) + b) ==
    # maxpool(relu(. + b)) since the bias is per-channel and relu/max commute.
    pooled = jnp.maximum(jnp.maximum(y_even, y_odd) + b1_ref[...], 0.0)   # (BT, 640) f32

    # conv2 as a banded matmul; output columns are already channel-major
    # (c*58 + t), i.e. exactly torch's x.view(-1, 58*5) flattening.
    y2 = jnp.dot(pooled.astype(jnp.bfloat16), w2_ref[...],
                 preferred_element_type=jnp.float32) + b2_ref[...]
    h = jnp.maximum(y2, 0.0)                            # (BT, 290)

    h = jnp.maximum(jnp.dot(h.astype(jnp.bfloat16), l1w_ref[...],
                            preferred_element_type=jnp.float32) + l1b_ref[...], 0.0)
    h = jnp.maximum(jnp.dot(h.astype(jnp.bfloat16), l2w_ref[...],
                            preferred_element_type=jnp.float32) + l2b_ref[...], 0.0)
    # final 64 -> 6 layer, zero-padded to 128 lanes for an unmasked lane-dense store
    o_ref[...] = jnp.dot(h.astype(jnp.bfloat16), l3w_ref[...],
                         preferred_element_type=jnp.float32) + l3b_ref[...]   # (BT, 128)


def prepare_params(params):
    """One-time (outside jit) repack of the PyTorch-layout parameters.

    Builds banded (Toeplitz) matrices so both Conv1d layers become plain dense
    matmuls inside the kernel, pre-transposes / pads the Linear weights, and
    casts the matmul operands to bfloat16 (biases stay f32)."""
    (w1, b1, w2, b2, lw1, lb1, lw2, lb2, lw3, lb3) = [np.asarray(p) for p in params]

    # conv1 even-parity band: (384, 640); col = c*119 + p (cols >= 595 zero);
    # rows [2p, 2p+62) hold w1[c, 0, :].  Rows 298..383 are all zero, so the
    # odd-parity pass (roll of x by one lane) never sees padding / wrapped data.
    w1band = np.zeros((LPAD, POOL_PAD), np.float32)
    for c in range(C1):
        for p in range(P1):
            w1band[2 * p: 2 * p + K1, c * P1 + p] = w1[c, 0, :]
    b1pad = np.zeros((1, POOL_PAD), np.float32)
    b1pad[0, :POOL_COLS] = np.repeat(b1, P1)

    # conv2 band: (640, 290); row = c_in*119 + q (rows >= 595 stay zero),
    # col = c_out*58 + t, value w2[c_out, c_in, q - t] inside the band.
    w2band = np.zeros((POOL_PAD, FLAT), np.float32)
    for co in range(C2):
        for t in range(T2):
            for ci in range(C1):
                w2band[ci * P1 + t: ci * P1 + t + K2, co * T2 + t] = w2[co, ci, :]
    b2flat = np.repeat(b2, T2).reshape(1, FLAT).astype(np.float32)

    # final layer padded to 128 output lanes (unmasked store); wrapper slices [:, :6]
    l3w_pad = np.zeros((H2, OUT_PAD), np.float32)
    l3w_pad[:, :NCLS] = lw3.T
    l3b_pad = np.zeros((1, OUT_PAD), np.float32)
    l3b_pad[0, :NCLS] = lb3

    bf = jnp.bfloat16
    return (
        jnp.asarray(w1band, dtype=bf), jnp.asarray(b1pad, dtype=jnp.float32),
        jnp.asarray(w2band, dtype=bf), jnp.asarray(b2flat, dtype=jnp.float32),
        jnp.asarray(lw1.T, dtype=bf), jnp.asarray(lb1.reshape(1, H1), dtype=jnp.float32),
        jnp.asarray(lw2.T, dtype=bf), jnp.asarray(lb2.reshape(1, H2), dtype=jnp.float32),
        jnp.asarray(l3w_pad, dtype=bf), jnp.asarray(l3b_pad, dtype=jnp.float32),
    )


def cnn_net_forward(x, prepared):
    """x: (B, 1, 300) f32 -> logits (B, 6) f32."""
    bn = x.shape[0]
    x2d = x[:, 0, :]                                    # (B, 300)
    bpad = pl.cdiv(bn, BT) * BT
    x2d = jnp.pad(x2d, ((0, bpad - bn), (0, LPAD - L)))  # rows -> Btile multiple, lanes -> 384

    const2 = lambda i: (0, 0)                            # weights: same block every step
    out = pl.pallas_call(
        fused_kernel,
        out_shape=jax.ShapeDtypeStruct((bpad, OUT_PAD), jnp.float32),
        grid=(bpad // BT,),
        in_specs=[
            pl.BlockSpec((BT, LPAD), lambda i: (i, 0)),          # x: pipelined per step
            pl.BlockSpec((LPAD, POOL_PAD), const2),              # conv1 band   (resident)
            pl.BlockSpec((1, POOL_PAD), const2),                 # conv1 bias
            pl.BlockSpec((POOL_PAD, FLAT), const2),              # conv2 band
            pl.BlockSpec((1, FLAT), const2),                     # conv2 bias
            pl.BlockSpec((FLAT, H1), const2),                    # liner1 W^T
            pl.BlockSpec((1, H1), const2),                       # liner1 b
            pl.BlockSpec((H1, H2), const2),                      # liner2 W^T
            pl.BlockSpec((1, H2), const2),                       # liner2 b
            pl.BlockSpec((H2, OUT_PAD), const2),                 # liner3 W^T (padded)
            pl.BlockSpec((1, OUT_PAD), const2),                  # liner3 b   (padded)
        ],
        out_specs=pl.BlockSpec((BT, OUT_PAD), lambda i: (i, 0)),
        compiler_params=pltpu.CompilerParams(
            dimension_semantics=("parallel",)),                  # v7x: 2 TCs split batch tiles
    )(x2d, *prepared)
    return out[:bn, :NCLS]


def torch_like_reference(x, params):
    (w1, b1, w2, b2, lw1, lb1, lw2, lb2, lw3, lb3) = params
    dn = ('NCH', 'OIH', 'NCH')
    y = lax.conv_general_dilated(x, w1, (1,), 'VALID', dimension_numbers=dn,
                                 precision=lax.Precision.HIGHEST)
    y = jax.nn.relu(y + b1[None, :, None])
    y = lax.reduce_window(y, -jnp.inf, lax.max, (1, 1, 2), (1, 1, 2), 'VALID')
    y = lax.conv_general_dilated(y, w2, (1,), 'VALID', dimension_numbers=dn,
                                 precision=lax.Precision.HIGHEST)
    y = jax.nn.relu(y + b2[None, :, None])
    y = y.reshape(-1, FLAT)
    y = jax.nn.relu(y @ lw1.T + lb1)
    y = jax.nn.relu(y @ lw2.T + lb2)
    return y @ lw3.T + lb3


if __name__ == "__main__":
    key = jax.random.PRNGKey(0)
    ks = jax.random.split(key, 11)
    f32 = jnp.float32
    params = (
        jax.random.normal(ks[0], (C1, 1, K1), f32) * 0.10,    # conv1.weight (5,1,62)
        jax.random.normal(ks[1], (C1,), f32) * 0.10,          # conv1.bias
        jax.random.normal(ks[2], (C2, C1, K2), f32) * 0.05,   # conv2.weight (5,5,62)
        jax.random.normal(ks[3], (C2,), f32) * 0.10,          # conv2.bias
        jax.random.normal(ks[4], (H1, FLAT), f32) * 0.05,     # liner1.weight (128,290)
        jax.random.normal(ks[5], (H1,), f32) * 0.10,          # liner1.bias
        jax.random.normal(ks[6], (H2, H1), f32) * 0.05,       # liner2.weight (64,128)
        jax.random.normal(ks[7], (H2,), f32) * 0.10,          # liner2.bias
        jax.random.normal(ks[8], (NCLS, H2), f32) * 0.05,     # liner3.weight (6,64)
        jax.random.normal(ks[9], (NCLS,), f32) * 0.10,        # liner3.bias
    )
    x = jax.random.normal(ks[10], (B, 1, L), f32)

    prepared = prepare_params(params)      # one-time weight repack, outside jit
    fwd = jax.jit(cnn_net_forward)

    # small-batch check (module's typical shape): 1 grid step, padded rows sliced away
    out = fwd(x, prepared)
    jax.block_until_ready(out)
    assert out.shape == (B, NCLS)
    ref = torch_like_reference(x, params)
    np.testing.assert_allclose(np.asarray(out), np.asarray(ref), rtol=2e-2, atol=2e-2)

    # multi-grid-step check: 300 samples -> 3 batch tiles with resident weights +
    # row-padding remainder, exercising the pipelined x/out path.
    x_big = jax.random.normal(jax.random.PRNGKey(1), (300, 1, L), f32)
    out_big = fwd(x_big, prepared)
    jax.block_until_ready(out_big)
    ref_big = torch_like_reference(x_big, params)
    np.testing.assert_allclose(np.asarray(out_big), np.asarray(ref_big), rtol=2e-2, atol=2e-2)

    print("KERNEL_OK")
</pallas_src>

<mosaic_0001>
module attributes {stable_mosaic.version = 11 : i64} {
  func.func @fused_kernel(%arg0: i32, %arg1: memref<128x384xf32, #tpu.memory_space<vmem>>, %arg2: memref<384x640xbf16, #tpu.memory_space<vmem>>, %arg3: memref<1x640xf32, #tpu.memory_space<vmem>>, %arg4: memref<640x290xbf16, #tpu.memory_space<vmem>>, %arg5: memref<1x290xf32, #tpu.memory_space<vmem>>, %arg6: memref<290x128xbf16, #tpu.memory_space<vmem>>, %arg7: memref<1x128xf32, #tpu.memory_space<vmem>>, %arg8: memref<128x64xbf16, #tpu.memory_space<vmem>>, %arg9: memref<1x64xf32, #tpu.memory_space<vmem>>, %arg10: memref<64x128xbf16, #tpu.memory_space<vmem>>, %arg11: memref<1x128xf32, #tpu.memory_space<vmem>>, %arg12: memref<128x128xf32, #tpu.memory_space<vmem>>) attributes {dimension_semantics = [#tpu.dimension_semantics<parallel>], iteration_bounds = array<i64: 1>, scalar_prefetch = 0 : i64, scratch_operands = 0 : i64, tpu.core_type = #tpu.core_type<tc>, window_params = [{transform_indices = @transform_0, window_bounds = array<i64: 128, 384>}, {pipeline_mode = #tpu.pipeline_mode<synchronous>, transform_indices = @transform_1, window_bounds = array<i64: 384, 640>}, {pipeline_mode = #tpu.pipeline_mode<synchronous>, transform_indices = @transform_2, window_bounds = array<i64: 1, 640>}, {pipeline_mode = #tpu.pipeline_mode<synchronous>, transform_indices = @transform_3, window_bounds = array<i64: 640, 290>}, {pipeline_mode = #tpu.pipeline_mode<synchronous>, transform_indices = @transform_4, window_bounds = array<i64: 1, 290>}, {pipeline_mode = #tpu.pipeline_mode<synchronous>, transform_indices = @transform_5, window_bounds = array<i64: 290, 128>}, {pipeline_mode = #tpu.pipeline_mode<synchronous>, transform_indices = @transform_6, window_bounds = array<i64: 1, 128>}, {pipeline_mode = #tpu.pipeline_mode<synchronous>, transform_indices = @transform_7, window_bounds = array<i64: 128, 64>}, {pipeline_mode = #tpu.pipeline_mode<synchronous>, transform_indices = @transform_8, window_bounds = array<i64: 1, 64>}, {pipeline_mode = #tpu.pipeline_mode<synchronous>, transform_indices = @transform_9, window_bounds = array<i64: 64, 128>}, {pipeline_mode = #tpu.pipeline_mode<synchronous>, transform_indices = @transform_10, window_bounds = array<i64: 1, 128>}, {transform_indices = @transform_11, window_bounds = array<i64: 128, 128>}]} {
    %c0 = arith.constant 0 : index
    %c0_0 = arith.constant 0 : index
    %0 = vector.load %arg1[%c0, %c0_0] : memref<128x384xf32, #tpu.memory_space<vmem>>, vector<128x384xf32>
    %1 = arith.truncf %0 : vector<128x384xf32> to vector<128x384xbf16>
    %c0_1 = arith.constant 0 : index
    %c0_2 = arith.constant 0 : index
    %2 = vector.load %arg2[%c0_1, %c0_2] : memref<384x640xbf16, #tpu.memory_space<vmem>>, vector<384x640xbf16>
    %cst = arith.constant dense<0.000000e+00> : vector<128x640xf32>
    %3 = tpu.matmul %1, %2, %cst {dimension_numbers = #tpu.dot_dimension_numbers<[1], [0], [0], [1], [0, 0, 1, 1], [], []>} : vector<128x384xbf16>, vector<384x640xbf16>, vector<128x640xf32> -> vector<128x640xf32>
    %c383_i32 = arith.constant 383 : i32
    %4 = tpu.dynamic_rotate %0 by %c383_i32 dim 1 : vector<128x384xf32>, i32 -> vector<128x384xf32>
    %5 = arith.truncf %4 : vector<128x384xf32> to vector<128x384xbf16>
    %cst_3 = arith.constant dense<0.000000e+00> : vector<128x640xf32>
    %6 = tpu.matmul %5, %2, %cst_3 {dimension_numbers = #tpu.dot_dimension_numbers<[1], [0], [0], [1], [0, 0, 1, 1], [], []>} : vector<128x384xbf16>, vector<384x640xbf16>, vector<128x640xf32> -> vector<128x640xf32>
    %7 = arith.maximumf %3, %6 : vector<128x640xf32>
    %c0_4 = arith.constant 0 : index
    %c0_5 = arith.constant 0 : index
    %8 = vector.load %arg3[%c0_4, %c0_5] : memref<1x640xf32, #tpu.memory_space<vmem>>, vector<1x640xf32>
    %9 = vector.broadcast %8 : vector<1x640xf32> to vector<128x640xf32>
    %10 = arith.addf %7, %9 : vector<128x640xf32>
    %cst_6 = arith.constant 0.000000e+00 : f32
    %11 = vector.broadcast %cst_6 : f32 to vector<128x640xf32>
    %12 = arith.maximumf %10, %11 : vector<128x640xf32>
    %13 = arith.truncf %12 : vector<128x640xf32> to vector<128x640xbf16>
    %c0_7 = arith.constant 0 : index
    %c0_8 = arith.constant 0 : index
    %14 = vector.load %arg4[%c0_7, %c0_8] : memref<640x290xbf16, #tpu.memory_space<vmem>>, vector<640x290xbf16>
    %cst_9 = arith.constant dense<0.000000e+00> : vector<128x290xf32>
    %15 = tpu.matmul %13, %14, %cst_9 {dimension_numbers = #tpu.dot_dimension_numbers<[1], [0], [0], [1], [0, 0, 1, 1], [], []>} : vector<128x640xbf16>, vector<640x290xbf16>, vector<128x290xf32> -> vector<128x290xf32>
    %c0_10 = arith.constant 0 : index
    %c0_11 = arith.constant 0 : index
    %16 = vector.load %arg5[%c0_10, %c0_11] : memref<1x290xf32, #tpu.memory_space<vmem>>, vector<1x290xf32>
    %17 = vector.broadcast %16 : vector<1x290xf32> to vector<128x290xf32>
    %18 = arith.addf %15, %17 : vector<128x290xf32>
    %cst_12 = arith.constant 0.000000e+00 : f32
    %19 = vector.broadcast %cst_12 : f32 to vector<128x290xf32>
    %20 = arith.maximumf %18, %19 : vector<128x290xf32>
    %21 = arith.truncf %20 : vector<128x290xf32> to vector<128x290xbf16>
    %c0_13 = arith.constant 0 : index
    %c0_14 = arith.constant 0 : index
    %22 = vector.load %arg6[%c0_13, %c0_14] : memref<290x128xbf16, #tpu.memory_space<vmem>>, vector<290x128xbf16>
    %cst_15 = arith.constant dense<0.000000e+00> : vector<128x128xf32>
    %23 = tpu.matmul %21, %22, %cst_15 {dimension_numbers = #tpu.dot_dimension_numbers<[1], [0], [0], [1], [0, 0, 1, 1], [], []>} : vector<128x290xbf16>, vector<290x128xbf16>, vector<128x128xf32> -> vector<128x128xf32>
    %c0_16 = arith.constant 0 : index
    %c0_17 = arith.constant 0 : index
    %24 = vector.load %arg7[%c0_16, %c0_17] : memref<1x128xf32, #tpu.memory_space<vmem>>, vector<1x128xf32>
    %25 = vector.broadcast %24 : vector<1x128xf32> to vector<128x128xf32>
    %26 = arith.addf %23, %25 : vector<128x128xf32>
    %cst_18 = arith.constant 0.000000e+00 : f32
    %27 = vector.broadcast %cst_18 : f32 to vector<128x128xf32>
    %28 = arith.maximumf %26, %27 : vector<128x128xf32>
    %29 = arith.truncf %28 : vector<128x128xf32> to vector<128x128xbf16>
    %c0_19 = arith.constant 0 : index
    %c0_20 = arith.constant 0 : index
    %30 = vector.load %arg8[%c0_19, %c0_20] : memref<128x64xbf16, #tpu.memory_space<vmem>>, vector<128x64xbf16>
    %cst_21 = arith.constant dense<0.000000e+00> : vector<128x64xf32>
    %31 = tpu.matmul %29, %30, %cst_21 {dimension_numbers = #tpu.dot_dimension_numbers<[1], [0], [0], [1], [0, 0, 1, 1], [], []>} : vector<128x128xbf16>, vector<128x64xbf16>, vector<128x64xf32> -> vector<128x64xf32>
    %c0_22 = arith.constant 0 : index
    %c0_23 = arith.constant 0 : index
    %32 = vector.load %arg9[%c0_22, %c0_23] : memref<1x64xf32, #tpu.memory_space<vmem>>, vector<1x64xf32>
    %33 = vector.broadcast %32 : vector<1x64xf32> to vector<128x64xf32>
    %34 = arith.addf %31, %33 : vector<128x64xf32>
    %cst_24 = arith.constant 0.000000e+00 : f32
    %35 = vector.broadcast %cst_24 : f32 to vector<128x64xf32>
    %36 = arith.maximumf %34, %35 : vector<128x64xf32>
    %37 = arith.truncf %36 : vector<128x64xf32> to vector<128x64xbf16>
    %c0_25 = arith.constant 0 : index
    %c0_26 = arith.constant 0 : index
    %38 = vector.load %arg10[%c0_25, %c0_26] : memref<64x128xbf16, #tpu.memory_space<vmem>>, vector<64x128xbf16>
    %cst_27 = arith.constant dense<0.000000e+00> : vector<128x128xf32>
    %39 = tpu.matmul %37, %38, %cst_27 {dimension_numbers = #tpu.dot_dimension_numbers<[1], [0], [0], [1], [0, 0, 1, 1], [], []>} : vector<128x64xbf16>, vector<64x128xbf16>, vector<128x128xf32> -> vector<128x128xf32>
    %c0_28 = arith.constant 0 : index
    %c0_29 = arith.constant 0 : index
    %40 = vector.load %arg11[%c0_28, %c0_29] : memref<1x128xf32, #tpu.memory_space<vmem>>, vector<1x128xf32>
    %41 = vector.broadcast %40 : vector<1x128xf32> to vector<128x128xf32>
    %42 = arith.addf %39, %41 : vector<128x128xf32>
    %c0_30 = arith.constant 0 : index
    %c0_31 = arith.constant 0 : index
    %43 = vector.load %arg12[%c0_30, %c0_31] : memref<128x128xf32, #tpu.memory_space<vmem>>, vector<128x128xf32>
    tpu.vector_store %arg12[%c0_30, %c0_31], %42 {strides = array<i32>} : memref<128x128xf32, #tpu.memory_space<vmem>>, vector<128x128xf32>,
    return
  }
  func.func @transform_0(%arg0: i32) -> (i32, i32) {
    %c0_i32 = arith.constant 0 : i32
    %c0_i32_0 = arith.constant 0 : i32
    return %arg0, %c0_i32 : i32, i32
  }
  func.func @transform_1(%arg0: i32) -> (i32, i32) {
    %c0_i32 = arith.constant 0 : i32
    %c0_i32_0 = arith.constant 0 : i32
    %c0_i32_1 = arith.constant 0 : i32
    return %c0_i32, %c0_i32_0 : i32, i32
  }
  func.func @transform_2(%arg0: i32) -> (i32, i32) {
    %c0_i32 = arith.constant 0 : i32
    %c0_i32_0 = arith.constant 0 : i32
    %c0_i32_1 = arith.constant 0 : i32
    return %c0_i32, %c0_i32_0 : i32, i32
  }
  func.func @transform_3(%arg0: i32) -> (i32, i32) {
    %c0_i32 = arith.constant 0 : i32
    %c0_i32_0 = arith.constant 0 : i32
    %c0_i32_1 = arith.constant 0 : i32
    return %c0_i32, %c0_i32_0 : i32, i32
  }
  func.func @transform_4(%arg0: i32) -> (i32, i32) {
    %c0_i32 = arith.constant 0 : i32
    %c0_i32_0 = arith.constant 0 : i32
    %c0_i32_1 = arith.constant 0 : i32
    return %c0_i32, %c0_i32_0 : i32, i32
  }
  func.func @transform_5(%arg0: i32) -> (i32, i32) {
    %c0_i32 = arith.constant 0 : i32
    %c0_i32_0 = arith.constant 0 : i32
    %c0_i32_1 = arith.constant 0 : i32
    return %c0_i32, %c0_i32_0 : i32, i32
  }
  func.func @transform_6(%arg0: i32) -> (i32, i32) {
    %c0_i32 = arith.constant 0 : i32
    %c0_i32_0 = arith.constant 0 : i32
    %c0_i32_1 = arith.constant 0 : i32
    return %c0_i32, %c0_i32_0 : i32, i32
  }
  func.func @transform_7(%arg0: i32) -> (i32, i32) {
    %c0_i32 = arith.constant 0 : i32
    %c0_i32_0 = arith.constant 0 : i32
    %c0_i32_1 = arith.constant 0 : i32
    return %c0_i32, %c0_i32_0 : i32, i32
  }
  func.func @transform_8(%arg0: i32) -> (i32, i32) {
    %c0_i32 = arith.constant 0 : i32
    %c0_i32_0 = arith.constant 0 : i32
    %c0_i32_1 = arith.constant 0 : i32
    return %c0_i32, %c0_i32_0 : i32, i32
  }
  func.func @transform_9(%arg0: i32) -> (i32, i32) {
    %c0_i32 = arith.constant 0 : i32
    %c0_i32_0 = arith.constant 0 : i32
    %c0_i32_1 = arith.constant 0 : i32
    return %c0_i32, %c0_i32_0 : i32, i32
  }
  func.func @transform_10(%arg0: i32) -> (i32, i32) {
    %c0_i32 = arith.constant 0 : i32
    %c0_i32_0 = arith.constant 0 : i32
    %c0_i32_1 = arith.constant 0 : i32
    return %c0_i32, %c0_i32_0 : i32, i32
  }
  func.func @transform_11(%arg0: i32) -> (i32, i32) {
    %c0_i32 = arith.constant 0 : i32
    %c0_i32_0 = arith.constant 0 : i32
    return %arg0, %c0_i32 : i32, i32
  }
}

</mosaic_0001>

<llo_original>
// kernel: cnn_net_forward.1
$region0: #{cnn_net_forward.1}
  #allocation0 [shape = 'u32[]', space=smem, size = 0x4, offset = 0x4, fixed_abs, tag = 'smem constant byte address 0x4 - core index']
  #allocation1 [shape = 'u32[144,128]{1,0:T(1,128)}', space=vmem, size = 0x12000, scoped, tag = 'internal scratch']
  %s0 = inlined_call_operand.vmem [shape: f32[128,384], index: 0, kind: input, shape index: {}]
  %s1 = inlined_call_operand.vmem [shape: bf16[384,640], index: 1, kind: input, shape index: {}]
  %s2 = inlined_call_operand.vmem [shape: f32[1,640], index: 2, kind: input, shape index: {}]
  %s3 = inlined_call_operand.vmem [shape: bf16[640,290], index: 3, kind: input, shape index: {}]
  %s4 = inlined_call_operand.vmem [shape: f32[1,290], index: 4, kind: input, shape index: {}]
  %s5 = inlined_call_operand.vmem [shape: bf16[290,128], index: 5, kind: input, shape index: {}]
  %s6 = inlined_call_operand.vmem [shape: f32[1,128], index: 6, kind: input, shape index: {}]
  %s7 = inlined_call_operand.vmem [shape: bf16[128,64], index: 7, kind: input, shape index: {}]
  %s8 = inlined_call_operand.vmem [shape: f32[1,64], index: 8, kind: input, shape index: {}]
  %s9 = inlined_call_operand.vmem [shape: bf16[64,128], index: 9, kind: input, shape index: {}]
  %s10 = inlined_call_operand.vmem [shape: f32[1,128], index: 10, kind: input, shape index: {}]
  %s11 = inlined_call_operand.vmem [shape: f32[128,128], index: 11, kind: output, shape index: {}]
  %s12 = sld [smem:[#allocation0]]
  $region54: #{cnn_net_forward.1} parent=0
    _
  %s14 = ssub.s32 1, %s12
  %s15 = scalar_select 0, %s14, %s12
  // Predicated region
  $region2: #{cnn_net_forward.1} parent=0 // pred_check
    _
  $region3: #{cnn_net_forward.1} parent=0 // pred_check_branch
    %17 = sbr.rel (0) target = $region5
  $region4: #{cnn_net_forward.1} parent=0 // pred_region
    _
  $region5: #{cnn_net_forward.1} parent=0 // pred_fallthru
    _
  // Predicated region
  $region6: #{cnn_net_forward.1} parent=0 // pred_check
    _
  $region7: #{cnn_net_forward.1} parent=0 // pred_check_branch
    %19 = sbr.rel (0) target = $region9
  $region8: #{cnn_net_forward.1} parent=0 // pred_region
    _
  $region9: #{cnn_net_forward.1} parent=0 // pred_fallthru
    _
  // Predicated region
  $region10: #{cnn_net_forward.1} parent=0 // pred_check
    _
  $region11: #{cnn_net_forward.1} parent=0 // pred_check_branch
    %21 = sbr.rel (0) target = $region13
  $region12: #{cnn_net_forward.1} parent=0 // pred_region
    _
  $region13: #{cnn_net_forward.1} parent=0 // pred_fallthru
    _
  // Predicated region
  $region14: #{cnn_net_forward.1} parent=0 // pred_check
    _
  $region15: #{cnn_net_forward.1} parent=0 // pred_check_branch
    %23 = sbr.rel (0) target = $region17
  $region16: #{cnn_net_forward.1} parent=0 // pred_region
    _
  $region17: #{cnn_net_forward.1} parent=0 // pred_fallthru
    _
  // Predicated region
  $region18: #{cnn_net_forward.1} parent=0 // pred_check
    _
  $region19: #{cnn_net_forward.1} parent=0 // pred_check_branch
    %25 = sbr.rel (0) target = $region21
  $region20: #{cnn_net_forward.1} parent=0 // pred_region
    _
  $region21: #{cnn_net_forward.1} parent=0 // pred_fallthru
    _
  // Predicated region
  $region22: #{cnn_net_forward.1} parent=0 // pred_check
    _
  $region23: #{cnn_net_forward.1} parent=0 // pred_check_branch
    %27 = sbr.rel (0) target = $region25
  $region24: #{cnn_net_forward.1} parent=0 // pred_region
    _
  $region25: #{cnn_net_forward.1} parent=0 // pred_fallthru
    _
  // Predicated region
  $region26: #{cnn_net_forward.1} parent=0 // pred_check
    _
  $region27: #{cnn_net_forward.1} parent=0 // pred_check_branch
    %29 = sbr.rel (0) target = $region29
  $region28: #{cnn_net_forward.1} parent=0 // pred_region
    _
  $region29: #{cnn_net_forward.1} parent=0 // pred_fallthru
    _
  // Predicated region
  $region30: #{cnn_net_forward.1} parent=0 // pred_check
    _
  $region31: #{cnn_net_forward.1} parent=0 // pred_check_branch
    %31 = sbr.rel (0) target = $region33
  $region32: #{cnn_net_forward.1} parent=0 // pred_region
    _
  $region33: #{cnn_net_forward.1} parent=0 // pred_fallthru
    _
  // Predicated region
  $region34: #{cnn_net_forward.1} parent=0 // pred_check
    _
  $region35: #{cnn_net_forward.1} parent=0 // pred_check_branch
    %33 = sbr.rel (0) target = $region37
  $region36: #{cnn_net_forward.1} parent=0 // pred_region
    _
  $region37: #{cnn_net_forward.1} parent=0 // pred_fallthru
    _
  // Predicated region
  $region38: #{cnn_net_forward.1} parent=0 // pred_check
    _
  $region39: #{cnn_net_forward.1} parent=0 // pred_check_branch
    %35 = sbr.rel (0) target = $region41
  $region40: #{cnn_net_forward.1} parent=0 // pred_region
    _
  $region41: #{cnn_net_forward.1} parent=0 // pred_fallthru
    _
  // Predicated region
  $region42: #{cnn_net_forward.1} parent=0 // pred_check
    _
  $region43: #{cnn_net_forward.1} parent=0 // pred_check_branch
    %37 = sbr.rel (0) target = $region45
  $region44: #{cnn_net_forward.1} parent=0 // pred_region
    _
  $region45: #{cnn_net_forward.1} parent=0 // pred_fallthru
    _
  %v39 = vld [vmem:[%s0] sm:$0xff]
  %v40 = vld [vmem:[%s0 + $0x8] sm:$0xff]
  %v41 = vld [vmem:[%s0 + $0x10] sm:$0xff]
  %v42 = vld [vmem:[%s0 + $0x18] sm:$0xff]
  %v43 = vld [vmem:[%s0 + $0x20] sm:$0xff]
  %v44 = vld [vmem:[%s0 + $0x28] sm:$0xff]
  %v45 = vld [vmem:[%s0 + $0x30] sm:$0xff]
  %v46 = vld [vmem:[%s0 + $0x38] sm:$0xff]
  %v47 = vld [vmem:[%s0 + $0x40] sm:$0xff]
  %v48 = vld [vmem:[%s0 + $0x48] sm:$0xff]
  %v49 = vld [vmem:[%s0 + $0x50] sm:$0xff]
  %v50 = vld [vmem:[%s0 + $0x58] sm:$0xff]
  %v51 = vld [vmem:[%s0 + $0x60] sm:$0xff]
  %v52 = vld [vmem:[%s0 + $0x68] sm:$0xff]
  %v53 = vld [vmem:[%s0 + $0x70] sm:$0xff]
  %v54 = vld [vmem:[%s0 + $0x78] sm:$0xff]
  %v55 = vld [vmem:[%s0 + $0x80] sm:$0xff]
  %v56 = vld [vmem:[%s0 + $0x88] sm:$0xff]
  %v57 = vld [vmem:[%s0 + $0x90] sm:$0xff]
  %v58 = vld [vmem:[%s0 + $0x98] sm:$0xff]
  %v59 = vld [vmem:[%s0 + $0xa0] sm:$0xff]
  %v60 = vld [vmem:[%s0 + $0xa8] sm:$0xff]
  %v61 = vld [vmem:[%s0 + $0xb0] sm:$0xff]
  %v62 = vld [vmem:[%s0 + $0xb8] sm:$0xff]
  %v63 = vld [vmem:[%s0 + $0xc0] sm:$0xff]
  %v64 = vld [vmem:[%s0 + $0xc8] sm:$0xff]
  %v65 = vld [vmem:[%s0 + $0xd0] sm:$0xff]
  %v66 = vld [vmem:[%s0 + $0xd8] sm:$0xff]
  %v67 = vld [vmem:[%s0 + $0xe0] sm:$0xff]
  %v68 = vld [vmem:[%s0 + $0xe8] sm:$0xff]
  %v69 = vld [vmem:[%s0 + $0xf0] sm:$0xff]
  %v70 = vld [vmem:[%s0 + $0xf8] sm:$0xff]
  %v71 = vld [vmem:[%s0 + $0x100] sm:$0xff]
  %v72 = vld [vmem:[%s0 + $0x108] sm:$0xff]
  %v73 = vld [vmem:[%s0 + $0x110] sm:$0xff]
  %v74 = vld [vmem:[%s0 + $0x118] sm:$0xff]
  %v75 = vld [vmem:[%s0 + $0x120] sm:$0xff]
  %v76 = vld [vmem:[%s0 + $0x128] sm:$0xff]
  %v77 = vld [vmem:[%s0 + $0x130] sm:$0xff]
  %v78 = vld [vmem:[%s0 + $0x138] sm:$0xff]
  %v79 = vld [vmem:[%s0 + $0x140] sm:$0xff]
  %v80 = vld [vmem:[%s0 + $0x148] sm:$0xff]
  %v81 = vld [vmem:[%s0 + $0x150] sm:$0xff]
  %v82 = vld [vmem:[%s0 + $0x158] sm:$0xff]
  %v83 = vld [vmem:[%s0 + $0x160] sm:$0xff]
  %v84 = vld [vmem:[%s0 + $0x168] sm:$0xff]
  %v85 = vld [vmem:[%s0 + $0x170] sm:$0xff]
  %v86 = vld [vmem:[%s0 + $0x178] sm:$0xff]
  %v87 = vpack.c.bf16 %v42, %v39
  %v88 = vpack.c.bf16 %v43, %v40
  %v89 = vpack.c.bf16 %v44, %v41
  %v90 = vpack.c.bf16 %v48, %v45
  %v91 = vpack.c.bf16 %v49, %v46
  %v92 = vpack.c.bf16 %v50, %v47
  %v93 = vpack.c.bf16 %v54, %v51
  %v94 = vpack.c.bf16 %v55, %v52
  %v95 = vpack.c.bf16 %v56, %v53
  %v96 = vpack.c.bf16 %v60, %v57
  %v97 = vpack.c.bf16 %v61, %v58
  %v98 = vpack.c.bf16 %v62, %v59
  %v99 = vpack.c.bf16 %v66, %v63
  %v100 = vpack.c.bf16 %v67, %v64
  %v101 = vpack.c.bf16 %v68, %v65
  %v102 = vpack.c.bf16 %v72, %v69
  %v103 = vpack.c.bf16 %v73, %v70
  %v104 = vpack.c.bf16 %v74, %v71
  %v105 = vpack.c.bf16 %v78, %v75
  %v106 = vpack.c.bf16 %v79, %v76
  %v107 = vpack.c.bf16 %v80, %v77
  %v108 = vpack.c.bf16 %v84, %v81
  %v109 = vpack.c.bf16 %v85, %v82
  %v110 = vpack.c.bf16 %v86, %v83
  %v111 = vld [vmem:[%s1] sm:$0xff]
  %v112 = vld [vmem:[%s1 + $0x8] sm:$0xff]
  %v113 = vld [vmem:[%s1 + $0x10] sm:$0xf]
  %v114 = vld [vmem:[%s1 + $0x14] sm:$0xff]
  %v115 = vld [vmem:[%s1 + $0x1c] sm:$0xff]
  %v116 = vld [vmem:[%s1 + $0x24] sm:$0xf]
  %v117 = vld [vmem:[%s1 + $0x28] sm:$0xff]
  %v118 = vld [vmem:[%s1 + $0x30] sm:$0xff]
  %v119 = vld [vmem:[%s1 + $0x38] sm:$0xf]
  %v120 = vld [vmem:[%s1 + $0x3c] sm:$0xff]
  %v121 = vld [vmem:[%s1 + $0x44] sm:$0xff]
  %v122 = vld [vmem:[%s1 + $0x4c] sm:$0xf]
  %v123 = vld [vmem:[%s1 + $0x50] sm:$0xff]
  %v124 = vld [vmem:[%s1 + $0x58] sm:$0xff]
  %v125 = vld [vmem:[%s1 + $0x60] sm:$0xf]
  %v126 = vld [vmem:[%s1 + $0x64] sm:$0xff]
  %v127 = vld [vmem:[%s1 + $0x6c] sm:$0xff]
  %v128 = vld [vmem:[%s1 + $0x74] sm:$0xf]
  %v129 = vld [vmem:[%s1 + $0x78] sm:$0xff]
  %v130 = vld [vmem:[%s1 + $0x80] sm:$0xff]
  %v131 = vld [vmem:[%s1 + $0x88] sm:$0xf]
  %v132 = vld [vmem:[%s1 + $0x8c] sm:$0xff]
  %v133 = vld [vmem:[%s1 + $0x94] sm:$0xff]
  %v134 = vld [vmem:[%s1 + $0x9c] sm:$0xf]
  %v135 = vld [vmem:[%s1 + $0xa0] sm:$0xff]
  %v136 = vld [vmem:[%s1 + $0xa8] sm:$0xff]
  %v137 = vld [vmem:[%s1 + $0xb0] sm:$0xf]
  %v138 = vld [vmem:[%s1 + $0xb4] sm:$0xff]
  %v139 = vld [vmem:[%s1 + $0xbc] sm:$0xff]
  %v140 = vld [vmem:[%s1 + $0xc4] sm:$0xf]
  %v141 = vld [vmem:[%s1 + $0xc8] sm:$0xff]
  %v142 = vld [vmem:[%s1 + $0xd0] sm:$0xff]
  %v143 = vld [vmem:[%s1 + $0xd8] sm:$0xf]
  %v144 = vld [vmem:[%s1 + $0xdc] sm:$0xff]
  %v145 = vld [vmem:[%s1 + $0xe4] sm:$0xff]
  %v146 = vld [vmem:[%s1 + $0xec] sm:$0xf]
  %v147 = vld [vmem:[%s1 + $0xf0] sm:$0xff]
  %v148 = vld [vmem:[%s1 + $0xf8] sm:$0xff]
  %v149 = vld [vmem:[%s1 + $0x100] sm:$0xf]
  %v150 = vld [vmem:[%s1 + $0x104] sm:$0xff]
  %v151 = vld [vmem:[%s1 + $0x10c] sm:$0xff]
  %v152 = vld [vmem:[%s1 + $0x114] sm:$0xf]
  %v153 = vld [vmem:[%s1 + $0x118] sm:$0xff]
  %v154 = vld [vmem:[%s1 + $0x120] sm:$0xff]
  %v155 = vld [vmem:[%s1 + $0x128] sm:$0xf]
  %v156 = vld [vmem:[%s1 + $0x12c] sm:$0xff]
  %v157 = vld [vmem:[%s1 + $0x134] sm:$0xff]
  %v158 = vld [vmem:[%s1 + $0x13c] sm:$0xf]
  %v159 = vld [vmem:[%s1 + $0x140] sm:$0xff]
  %v160 = vld [vmem:[%s1 + $0x148] sm:$0xff]
  %v161 = vld [vmem:[%s1 + $0x150] sm:$0xf]
  %v162 = vld [vmem:[%s1 + $0x154] sm:$0xff]
  %v163 = vld [vmem:[%s1 + $0x15c] sm:$0xff]
  %v164 = vld [vmem:[%s1 + $0x164] sm:$0xf]
  %v165 = vld [vmem:[%s1 + $0x168] sm:$0xff]
  %v166 = vld [vmem:[%s1 + $0x170] sm:$0xff]
  %v167 = vld [vmem:[%s1 + $0x178] sm:$0xf]
  %v168 = vld [vmem:[%s1 + $0x17c] sm:$0xff]
  %v169 = vld [vmem:[%s1 + $0x184] sm:$0xff]
  %v170 = vld [vmem:[%s1 + $0x18c] sm:$0xf]
  %v171 = vld [vmem:[%s1 + $0x190] sm:$0xff]
  %v172 = vld [vmem:[%s1 + $0x198] sm:$0xff]
  %v173 = vld [vmem:[%s1 + $0x1a0] sm:$0xf]
  %v174 = vld [vmem:[%s1 + $0x1a4] sm:$0xff]
  %v175 = vld [vmem:[%s1 + $0x1ac] sm:$0xff]
  %v176 = vld [vmem:[%s1 + $0x1b4] sm:$0xf]
  %v177 = vld [vmem:[%s1 + $0x1b8] sm:$0xff]
  %v178 = vld [vmem:[%s1 + $0x1c0] sm:$0xff]
  %v179 = vld [vmem:[%s1 + $0x1c8] sm:$0xf]
  %v180 = vld [vmem:[%s1 + $0x1cc] sm:$0xff]
  %v181 = vld [vmem:[%s1 + $0x1d4] sm:$0xff]
  %v182 = vld [vmem:[%s1 + $0x1dc] sm:$0xf]
  %v183 = vld [vmem:[%s1 + $0x1e0] sm:$0xff]
  %v184 = vld [vmem:[%s1 + $0x1e8] sm:$0xff]
  %v185 = vld [vmem:[%s1 + $0x1f0] sm:$0xf]
  %v186 = vld [vmem:[%s1 + $0x1f4] sm:$0xff]
  %v187 = vld [vmem:[%s1 + $0x1fc] sm:$0xff]
  %v188 = vld [vmem:[%s1 + $0x204] sm:$0xf]
  %v189 = vld [vmem:[%s1 + $0x208] sm:$0xff]
  %v190 = vld [vmem:[%s1 + $0x210] sm:$0xff]
  %v191 = vld [vmem:[%s1 + $0x218] sm:$0xf]
  %v192 = vld [vmem:[%s1 + $0x21c] sm:$0xff]
  %v193 = vld [vmem:[%s1 + $0x224] sm:$0xff]
  %v194 = vld [vmem:[%s1 + $0x22c] sm:$0xf]
  %v195 = vld [vmem:[%s1 + $0x230] sm:$0xff]
  %v196 = vld [vmem:[%s1 + $0x238] sm:$0xff]
  %v197 = vld [vmem:[%s1 + $0x240] sm:$0xf]
  %v198 = vld [vmem:[%s1 + $0x244] sm:$0xff]
  %v199 = vld [vmem:[%s1 + $0x24c] sm:$0xff]
  %v200 = vld [vmem:[%s1 + $0x254] sm:$0xf]
  %v201 = vld [vmem:[%s1 + $0x258] sm:$0xff]
  %v202 = vld [vmem:[%s1 + $0x260] sm:$0xff]
  %v203 = vld [vmem:[%s1 + $0x268] sm:$0xf]
  %v204 = vld [vmem:[%s1 + $0x26c] sm:$0xff]
  %v205 = vld [vmem:[%s1 + $0x274] sm:$0xff]
  %v206 = vld [vmem:[%s1 + $0x27c] sm:$0xf]
  %v207 = vld [vmem:[%s1 + $0x280] sm:$0xff]
  %v208 = vld [vmem:[%s1 + $0x288] sm:$0xff]
  %v209 = vld [vmem:[%s1 + $0x290] sm:$0xf]
  %v210 = vld [vmem:[%s1 + $0x294] sm:$0xff]
  %v211 = vld [vmem:[%s1 + $0x29c] sm:$0xff]
  %v212 = vld [vmem:[%s1 + $0x2a4] sm:$0xf]
  %v213 = vld [vmem:[%s1 + $0x2a8] sm:$0xff]
  %v214 = vld [vmem:[%s1 + $0x2b0] sm:$0xff]
  %v215 = vld [vmem:[%s1 + $0x2b8] sm:$0xf]
  %v216 = vld [vmem:[%s1 + $0x2bc] sm:$0xff]
  %v217 = vld [vmem:[%s1 + $0x2c4] sm:$0xff]
  %v218 = vld [vmem:[%s1 + $0x2cc] sm:$0xf]
  %v219 = vld [vmem:[%s1 + $0x2d0] sm:$0xff]
  %v220 = vld [vmem:[%s1 + $0x2d8] sm:$0xff]
  %v221 = vld [vmem:[%s1 + $0x2e0] sm:$0xf]
  %v222 = vld [vmem:[%s1 + $0x2e4] sm:$0xff]
  %v223 = vld [vmem:[%s1 + $0x2ec] sm:$0xff]
  %v224 = vld [vmem:[%s1 + $0x2f4] sm:$0xf]
  %v225 = vld [vmem:[%s1 + $0x2f8] sm:$0xff]
  %v226 = vld [vmem:[%s1 + $0x300] sm:$0xff]
  %v227 = vld [vmem:[%s1 + $0x308] sm:$0xf]
  %v228 = vld [vmem:[%s1 + $0x30c] sm:$0xff]
  %v229 = vld [vmem:[%s1 + $0x314] sm:$0xff]
  %v230 = vld [vmem:[%s1 + $0x31c] sm:$0xf]
  %v231 = vld [vmem:[%s1 + $0x320] sm:$0xff]
  %v232 = vld [vmem:[%s1 + $0x328] sm:$0xff]
  %v233 = vld [vmem:[%s1 + $0x330] sm:$0xf]
  %v234 = vld [vmem:[%s1 + $0x334] sm:$0xff]
  %v235 = vld [vmem:[%s1 + $0x33c] sm:$0xff]
  %v236 = vld [vmem:[%s1 + $0x344] sm:$0xf]
  %v237 = vld [vmem:[%s1 + $0x348] sm:$0xff]
  %v238 = vld [vmem:[%s1 + $0x350] sm:$0xff]
  %v239 = vld [vmem:[%s1 + $0x358] sm:$0xf]
  %v240 = vld [vmem:[%s1 + $0x35c] sm:$0xff]
  %v241 = vld [vmem:[%s1 + $0x364] sm:$0xff]
  %v242 = vld [vmem:[%s1 + $0x36c] sm:$0xf]
  %v243 = vld [vmem:[%s1 + $0x370] sm:$0xff]
  %v244 = vld [vmem:[%s1 + $0x378] sm:$0xff]
  %v245 = vld [vmem:[%s1 + $0x380] sm:$0xf]
  %v246 = vld [vmem:[%s1 + $0x384] sm:$0xff]
  %v247 = vld [vmem:[%s1 + $0x38c] sm:$0xff]
  %v248 = vld [vmem:[%s1 + $0x394] sm:$0xf]
  %v249 = vld [vmem:[%s1 + $0x398] sm:$0xff]
  %v250 = vld [vmem:[%s1 + $0x3a0] sm:$0xff]
  %v251 = vld [vmem:[%s1 + $0x3a8] sm:$0xf]
  %v252 = vld [vmem:[%s1 + $0x3ac] sm:$0xff]
  %v253 = vld [vmem:[%s1 + $0x3b4] sm:$0xff]
  %v254 = vld [vmem:[%s1 + $0x3bc] sm:$0xf]
  %v399 = vunpack.c.l.b16 %v111
  %v400 = vunpack.c.h.b16 %v111
  %v401 = vunpack.c.l.b16 %v112
  %v402 = vunpack.c.h.b16 %v112
  %v403 = vunpack.c.l.b16 %v113
  %v404 = vunpack.c.l.b16 %v114
  %v405 = vunpack.c.h.b16 %v114
  %v406 = vunpack.c.l.b16 %v115
  %v407 = vunpack.c.h.b16 %v115
  %v408 = vunpack.c.l.b16 %v116
  %v409 = vunpack.c.l.b16 %v117
  %v410 = vunpack.c.h.b16 %v117
  %v411 = vunpack.c.l.b16 %v118
  %v412 = vunpack.c.h.b16 %v118
  %v413 = vunpack.c.l.b16 %v119
  %v414 = vunpack.c.l.b16 %v120
  %v415 = vunpack.c.h.b16 %v120
  %v416 = vunpack.c.l.b16 %v121
  %v417 = vunpack.c.h.b16 %v121
  %v418 = vunpack.c.l.b16 %v122
  %v419 = vunpack.c.l.b16 %v123
  %v420 = vunpack.c.h.b16 %v123
  %v421 = vunpack.c.l.b16 %v124
  %v422 = vunpack.c.h.b16 %v124
  %v423 = vunpack.c.l.b16 %v125
  %v424 = vunpack.c.l.b16 %v126
  %v425 = vunpack.c.h.b16 %v126
  %v426 = vunpack.c.l.b16 %v127
  %v427 = vunpack.c.h.b16 %v127
  %v428 = vunpack.c.l.b16 %v128
  %v429 = vunpack.c.l.b16 %v129
  %v430 = vunpack.c.h.b16 %v129
  %v431 = vunpack.c.l.b16 %v130
  %v432 = vunpack.c.h.b16 %v130
  %v433 = vunpack.c.l.b16 %v131
  %v434 = vunpack.c.l.b16 %v132
  %v435 = vunpack.c.h.b16 %v132
  %v436 = vunpack.c.l.b16 %v133
  %v437 = vunpack.c.h.b16 %v133
  %v438 = vunpack.c.l.b16 %v134
  %v439 = vunpack.c.l.b16 %v135
  %v440 = vunpack.c.h.b16 %v135
  %v441 = vunpack.c.l.b16 %v136
  %v442 = vunpack.c.h.b16 %v136
  %v443 = vunpack.c.l.b16 %v137
  %v444 = vunpack.c.l.b16 %v138
  %v445 = vunpack.c.h.b16 %v138
  %v446 = vunpack.c.l.b16 %v139
  %v447 = vunpack.c.h.b16 %v139
  %v448 = vunpack.c.l.b16 %v140
  %v449 = vunpack.c.l.b16 %v141
  %v450 = vunpack.c.h.b16 %v141
  %v451 = vunpack.c.l.b16 %v142
  %v452 = vunpack.c.h.b16 %v142
  %v453 = vunpack.c.l.b16 %v143
  %v454 = vunpack.c.l.b16 %v144
  %v455 = vunpack.c.h.b16 %v144
  %v456 = vunpack.c.l.b16 %v145
  %v457 = vunpack.c.h.b16 %v145
  %v458 = vunpack.c.l.b16 %v146
  %v459 = vunpack.c.l.b16 %v147
  %v460 = vunpack.c.h.b16 %v147
  %v461 = vunpack.c.l.b16 %v148
  %v462 = vunpack.c.h.b16 %v148
  %v463 = vunpack.c.l.b16 %v149
  %v464 = vunpack.c.l.b16 %v150
  %v465 = vunpack.c.h.b16 %v150
  %v466 = vunpack.c.l.b16 %v151
  %v467 = vunpack.c.h.b16 %v151
  %v468 = vunpack.c.l.b16 %v152
  %v469 = vunpack.c.l.b16 %v153
  %v470 = vunpack.c.h.b16 %v153
  %v471 = vunpack.c.l.b16 %v154
  %v472 = vunpack.c.h.b16 %v154
  %v473 = vunpack.c.l.b16 %v155
  %v474 = vunpack.c.l.b16 %v156
  %v475 = vunpack.c.h.b16 %v156
  %v476 = vunpack.c.l.b16 %v157
  %v477 = vunpack.c.h.b16 %v157
  %v478 = vunpack.c.l.b16 %v158
  %v479 = vunpack.c.l.b16 %v159
  %v480 = vunpack.c.h.b16 %v159
  %v481 = vunpack.c.l.b16 %v160
  %v482 = vunpack.c.h.b16 %v160
  %v483 = vunpack.c.l.b16 %v161
  %v484 = vunpack.c.l.b16 %v162
  %v485 = vunpack.c.h.b16 %v162
  %v486 = vunpack.c.l.b16 %v163
  %v487 = vunpack.c.h.b16 %v163
  %v488 = vunpack.c.l.b16 %v164
  %v489 = vunpack.c.l.b16 %v165
  %v490 = vunpack.c.h.b16 %v165
  %v491 = vunpack.c.l.b16 %v166
  %v492 = vunpack.c.h.b16 %v166
  %v493 = vunpack.c.l.b16 %v167
  %v494 = vunpack.c.l.b16 %v168
  %v495 = vunpack.c.h.b16 %v168
  %v496 = vunpack.c.l.b16 %v169
  %v497 = vunpack.c.h.b16 %v169
  %v498 = vunpack.c.l.b16 %v170
  %v499 = vunpack.c.l.b16 %v171
  %v500 = vunpack.c.h.b16 %v171
  %v501 = vunpack.c.l.b16 %v172
  %v502 = vunpack.c.h.b16 %v172
  %v503 = vunpack.c.l.b16 %v173
  %v504 = vunpack.c.l.b16 %v174
  %v505 = vunpack.c.h.b16 %v174
  %v506 = vunpack.c.l.b16 %v175
  %v507 = vunpack.c.h.b16 %v175
  %v508 = vunpack.c.l.b16 %v176
  %v509 = vunpack.c.l.b16 %v177
  %v510 = vunpack.c.h.b16 %v177
  %v511 = vunpack.c.l.b16 %v178
  %v512 = vunpack.c.h.b16 %v178
  %v513 = vunpack.c.l.b16 %v179
  %v514 = vunpack.c.l.b16 %v180
  %v515 = vunpack.c.h.b16 %v180
  %v516 = vunpack.c.l.b16 %v181
  %v517 = vunpack.c.h.b16 %v181
  %v518 = vunpack.c.l.b16 %v182
  %v519 = vunpack.c.l.b16 %v183
  %v520 = vunpack.c.h.b16 %v183
  %v521 = vunpack.c.l.b16 %v184
  %v522 = vunpack.c.h.b16 %v184
  %v523 = vunpack.c.l.b16 %v185
  %v524 = vunpack.c.l.b16 %v186
  %v525 = vunpack.c.h.b16 %v186
  %v526 = vunpack.c.l.b16 %v187
  %v527 = vunpack.c.h.b16 %v187
  %v528 = vunpack.c.l.b16 %v188
  %v529 = vunpack.c.l.b16 %v189
  %v530 = vunpack.c.h.b16 %v189
  %v531 = vunpack.c.l.b16 %v190
  %v532 = vunpack.c.h.b16 %v190
  %v533 = vunpack.c.l.b16 %v191
  %v534 = vunpack.c.l.b16 %v192
  %v535 = vunpack.c.h.b16 %v192
  %v536 = vunpack.c.l.b16 %v193
  %v537 = vunpack.c.h.b16 %v193
  %v538 = vunpack.c.l.b16 %v194
  %v539 = vunpack.c.l.b16 %v195
  %v540 = vunpack.c.h.b16 %v195
  %v541 = vunpack.c.l.b16 %v196
  %v542 = vunpack.c.h.b16 %v196
  %v543 = vunpack.c.l.b16 %v197
  %v544 = vunpack.c.l.b16 %v198
  %v545 = vunpack.c.h.b16 %v198
  %v546 = vunpack.c.l.b16 %v199
  %v547 = vunpack.c.h.b16 %v199
  %v548 = vunpack.c.l.b16 %v200
  %v549 = vunpack.c.l.b16 %v201
  %v550 = vunpack.c.h.b16 %v201
  %v551 = vunpack.c.l.b16 %v202
  %v552 = vunpack.c.h.b16 %v202
  %v553 = vunpack.c.l.b16 %v203
  %v554 = vunpack.c.l.b16 %v204
  %v555 = vunpack.c.h.b16 %v204
  %v556 = vunpack.c.l.b16 %v205
  %v557 = vunpack.c.h.b16 %v205
  %v558 = vunpack.c.l.b16 %v206
  %v559 = vunpack.c.l.b16 %v207
  %v560 = vunpack.c.h.b16 %v207
  %v561 = vunpack.c.l.b16 %v208
  %v562 = vunpack.c.h.b16 %v208
  %v563 = vunpack.c.l.b16 %v209
  %v564 = vunpack.c.l.b16 %v210
  %v565 = vunpack.c.h.b16 %v210
  %v566 = vunpack.c.l.b16 %v211
  %v567 = vunpack.c.h.b16 %v211
  %v568 = vunpack.c.l.b16 %v212
  %v569 = vunpack.c.l.b16 %v213
  %v570 = vunpack.c.h.b16 %v213
  %v571 = vunpack.c.l.b16 %v214
  %v572 = vunpack.c.h.b16 %v214
  %v573 = vunpack.c.l.b16 %v215
  %v574 = vunpack.c.l.b16 %v216
  %v575 = vunpack.c.h.b16 %v216
  %v576 = vunpack.c.l.b16 %v217
  %v577 = vunpack.c.h.b16 %v217
  %v578 = vunpack.c.l.b16 %v218
  %v579 = vunpack.c.l.b16 %v219
  %v580 = vunpack.c.h.b16 %v219
  %v581 = vunpack.c.l.b16 %v220
  %v582 = vunpack.c.h.b16 %v220
  %v583 = vunpack.c.l.b16 %v221
  %v584 = vunpack.c.l.b16 %v222
  %v585 = vunpack.c.h.b16 %v222
  %v586 = vunpack.c.l.b16 %v223
  %v587 = vunpack.c.h.b16 %v223
  %v588 = vunpack.c.l.b16 %v224
  %v589 = vunpack.c.l.b16 %v225
  %v590 = vunpack.c.h.b16 %v225
  %v591 = vunpack.c.l.b16 %v226
  %v592 = vunpack.c.h.b16 %v226
  %v593 = vunpack.c.l.b16 %v227
  %v594 = vunpack.c.l.b16 %v228
  %v595 = vunpack.c.h.b16 %v228
  %v596 = vunpack.c.l.b16 %v229
  %v597 = vunpack.c.h.b16 %v229
  %v598 = vunpack.c.l.b16 %v230
  %v599 = vunpack.c.l.b16 %v231
  %v600 = vunpack.c.h.b16 %v231
  %v601 = vunpack.c.l.b16 %v232
  %v602 = vunpack.c.h.b16 %v232
  %v603 = vunpack.c.l.b16 %v233
  %v604 = vunpack.c.l.b16 %v234
  %v605 = vunpack.c.h.b16 %v234
  %v606 = vunpack.c.l.b16 %v235
  %v607 = vunpack.c.h.b16 %v235
  %v608 = vunpack.c.l.b16 %v236
  %v609 = vunpack.c.l.b16 %v237
  %v610 = vunpack.c.h.b16 %v237
  %v611 = vunpack.c.l.b16 %v238
  %v612 = vunpack.c.h.b16 %v238
  %v613 = vunpack.c.l.b16 %v239
  %v614 = vunpack.c.l.b16 %v240
  %v615 = vunpack.c.h.b16 %v240
  %v616 = vunpack.c.l.b16 %v241
  %v617 = vunpack.c.h.b16 %v241
  %v618 = vunpack.c.l.b16 %v242
  %v619 = vunpack.c.l.b16 %v243
  %v620 = vunpack.c.h.b16 %v243
  %v621 = vunpack.c.l.b16 %v244
  %v622 = vunpack.c.h.b16 %v244
  %v623 = vunpack.c.l.b16 %v245
  %v624 = vunpack.c.l.b16 %v246
  %v625 = vunpack.c.h.b16 %v246
  %v626 = vunpack.c.l.b16 %v247
  %v627 = vunpack.c.h.b16 %v247
  %v628 = vunpack.c.l.b16 %v248
  %v629 = vunpack.c.l.b16 %v249
  %v630 = vunpack.c.h.b16 %v249
  %v631 = vunpack.c.l.b16 %v250
  %v632 = vunpack.c.h.b16 %v250
  %v633 = vunpack.c.l.b16 %v251
  %v634 = vunpack.c.l.b16 %v252
  %v635 = vunpack.c.h.b16 %v252
  %v636 = vunpack.c.l.b16 %v253
  %v637 = vunpack.c.h.b16 %v253
  %v638 = vunpack.c.l.b16 %v254
  %v639 = vpack.c.b16 %v404, %v399
  %v640 = vpack.c.b16 %v405, %v400
  %v641 = vpack.c.b16 %v406, %v401
  %v642 = vpack.c.b16 %v407, %v402
  %v643 = vpack.c.b16 %v408, %v403
  %v644 = vpack.c.b16 %v414, %v409
  %v645 = vpack.c.b16 %v415, %v410
  %v646 = vpack.c.b16 %v416, %v411
  %v647 = vpack.c.b16 %v417, %v412
  %v648 = vpack.c.b16 %v418, %v413
  %v649 = vpack.c.b16 %v424, %v419
  %v650 = vpack.c.b16 %v425, %v420
  %v651 = vpack.c.b16 %v426, %v421
  %v652 = vpack.c.b16 %v427, %v422
  %v653 = vpack.c.b16 %v428, %v423
  %v654 = vpack.c.b16 %v434, %v429
  %v655 = vpack.c.b16 %v435, %v430
  %v656 = vpack.c.b16 %v436, %v431
  %v657 = vpack.c.b16 %v437, %v432
  %v658 = vpack.c.b16 %v438, %v433
  %v659 = vpack.c.b16 %v444, %v439
  %v660 = vpack.c.b16 %v445, %v440
  %v661 = vpack.c.b16 %v446, %v441
  %v662 = vpack.c.b16 %v447, %v442
  %v663 = vpack.c.b16 %v448, %v443
  %v664 = vpack.c.b16 %v454, %v449
  %v665 = vpack.c.b16 %v455, %v450
  %v666 = vpack.c.b16 %v456, %v451
  %v667 = vpack.c.b16 %v457, %v452
  %v668 = vpack.c.b16 %v458, %v453
  %v669 = vpack.c.b16 %v464, %v459
  %v670 = vpack.c.b16 %v465, %v460
  %v671 = vpack.c.b16 %v466, %v461
  %v672 = vpack.c.b16 %v467, %v462
  %v673 = vpack.c.b16 %v468, %v463
  %v674 = vpack.c.b16 %v474, %v469
  %v675 = vpack.c.b16 %v475, %v470
  %v676 = vpack.c.b16 %v476, %v471
  %v677 = vpack.c.b16 %v477, %v472
  %v678 = vpack.c.b16 %v478, %v473
  %v679 = vpack.c.b16 %v484, %v479
  %v680 = vpack.c.b16 %v485, %v480
  %v681 = vpack.c.b16 %v486, %v481
  %v682 = vpack.c.b16 %v487, %v482
  %v683 = vpack.c.b16 %v488, %v483
  %v684 = vpack.c.b16 %v494, %v489
  %v685 = vpack.c.b16 %v495, %v490
  %v686 = vpack.c.b16 %v496, %v491
  %v687 = vpack.c.b16 %v497, %v492
  %v688 = vpack.c.b16 %v498, %v493
  %v689 = vpack.c.b16 %v504, %v499
  %v690 = vpack.c.b16 %v505, %v500
  %v691 = vpack.c.b16 %v506, %v501
  %v692 = vpack.c.b16 %v507, %v502
  %v693 = vpack.c.b16 %v508, %v503
  %v694 = vpack.c.b16 %v514, %v509
  %v695 = vpack.c.b16 %v515, %v510
  %v696 = vpack.c.b16 %v516, %v511
  %v697 = vpack.c.b16 %v517, %v512
  %v698 = vpack.c.b16 %v518, %v513
  %v699 = vpack.c.b16 %v524, %v519
  %v700 = vpack.c.b16 %v525, %v520
  %v701 = vpack.c.b16 %v526, %v521
  %v702 = vpack.c.b16 %v527, %v522
  %v703 = vpack.c.b16 %v528, %v523
  %v704 = vpack.c.b16 %v534, %v529
  %v705 = vpack.c.b16 %v535, %v530
  %v706 = vpack.c.b16 %v536, %v531
  %v707 = vpack.c.b16 %v537, %v532
  %v708 = vpack.c.b16 %v538, %v533
  %v709 = vpack.c.b16 %v544, %v539
  %v710 = vpack.c.b16 %v545, %v540
  %v711 = vpack.c.b16 %v546, %v541
  %v712 = vpack.c.b16 %v547, %v542
  %v713 = vpack.c.b16 %v548, %v543
  %v714 = vpack.c.b16 %v554, %v549
  %v715 = vpack.c.b16 %v555, %v550
  %v716 = vpack.c.b16 %v556, %v551
  %v717 = vpack.c.b16 %v557, %v552
  %v718 = vpack.c.b16 %v558, %v553
  %v719 = vpack.c.b16 %v564, %v559
  %v720 = vpack.c.b16 %v565, %v560
  %v721 = vpack.c.b16 %v566, %v561
  %v722 = vpack.c.b16 %v567, %v562
  %v723 = vpack.c.b16 %v568, %v563
  %v724 = vpack.c.b16 %v574, %v569
  %v725 = vpack.c.b16 %v575, %v570
  %v726 = vpack.c.b16 %v576, %v571
  %v727 = vpack.c.b16 %v577, %v572
  %v728 = vpack.c.b16 %v578, %v573
  %v729 = vpack.c.b16 %v584, %v579
  %v730 = vpack.c.b16 %v585, %v580
  %v731 = vpack.c.b16 %v586, %v581
  %v732 = vpack.c.b16 %v587, %v582
  %v733 = vpack.c.b16 %v588, %v583
  %v734 = vpack.c.b16 %v594, %v589
  %v735 = vpack.c.b16 %v595, %v590
  %v736 = vpack.c.b16 %v596, %v591
  %v737 = vpack.c.b16 %v597, %v592
  %v738 = vpack.c.b16 %v598, %v593
  %v739 = vpack.c.b16 %v604, %v599
  %v740 = vpack.c.b16 %v605, %v600
  %v741 = vpack.c.b16 %v606, %v601
  %v742 = vpack.c.b16 %v607, %v602
  %v743 = vpack.c.b16 %v608, %v603
  %v744 = vpack.c.b16 %v614, %v609
  %v745 = vpack.c.b16 %v615, %v610
  %v746 = vpack.c.b16 %v616, %v611
  %v747 = vpack.c.b16 %v617, %v612
  %v748 = vpack.c.b16 %v618, %v613
  %v749 = vpack.c.b16 %v624, %v619
  %v750 = vpack.c.b16 %v625, %v620
  %v751 = vpack.c.b16 %v626, %v621
  %v752 = vpack.c.b16 %v627, %v622
  %v753 = vpack.c.b16 %v628, %v623
  %v754 = vpack.c.b16 %v634, %v629
  %v755 = vpack.c.b16 %v635, %v630
  %v756 = vpack.c.b16 %v636, %v631
  %v757 = vpack.c.b16 %v637, %v632
  %v758 = vpack.c.b16 %v638, %v633
  %879 = vmatprep.subr.bf16.mxu0 %v640
  %880 = vmatpush1.bf16.msra.mxu0 %v639
  %881 = vmatprep.subr.bf16.mxu0 %v645
  %882 = vmatpush1.bf16.msra.mxu0 %v644
  %883 = vmatprep.subr.bf16.mxu0 %v650
  %884 = vmatpush1.bf16.msra.mxu0 %v649
  %885 = vmatprep.subr.bf16.mxu0 %v655
  %886 = vmatpush1.bf16.msra.mxu0 %v654
  %887 = vmatprep.subr.bf16.mxu0 %v660
  %888 = vmatpush1.bf16.msra.mxu0 %v659
  %889 = vmatprep.subr.bf16.mxu0 %v665
  %890 = vmatpush1.bf16.msra.mxu0 %v664
  %891 = vmatprep.subr.bf16.mxu0 %v670
  %892 = vmatpush1.bf16.msra.mxu0 %v669
  %893 = vmatprep.subr.bf16.mxu0 %v675
  %894 = vmatpush1.bf16.msra.mxu0 %v674
  %895 = vmatprep.subr.bf16.mxu0 %v680
  %896 = vmatpush1.bf16.msra.mxu0 %v679
  %897 = vmatprep.subr.bf16.mxu0 %v685
  %898 = vmatpush1.bf16.msra.mxu0 %v684
  %899 = vmatprep.subr.bf16.mxu0 %v690
  %900 = vmatpush1.bf16.msra.mxu0 %v689
  %901 = vmatprep.subr.bf16.mxu0 %v695
  %902 = vmatpush1.bf16.msra.mxu0 %v694
  %903 = vmatprep.subr.bf16.mxu0 %v700
  %904 = vmatpush1.bf16.msra.mxu0 %v699
  %905 = vmatprep.subr.bf16.mxu0 %v705
  %906 = vmatpush1.bf16.msra.mxu0 %v704
  %907 = vmatprep.subr.bf16.mxu0 %v710
  %908 = vmatpush1.bf16.msra.mxu0 %v709
  %909 = vmatprep.subr.bf16.mxu0 %v715
  %910 = vmatpush1.bf16.msra.mxu0 %v714
  %911 = vmatprep.mubr.bf16.mxu0 %v88
  %912 = vmatmul.mubr.bf16.gmra.mrb[0].mxu0 %v87
  %v913 = vpop.f32.mrb[0].mxu0
  %v914 = vadd.f32 0.0, %v913
  %v915 = vpop.f32.mrb[0].mxu0
  %v916 = vadd.f32 0.0, %v915
  %v917 = vpop.f32.mrb[0].mxu0
  %v918 = vadd.f32 0.0, %v917
  %v919 = vpop.f32.mrb[0].mxu0
  %v920 = vadd.f32 0.0, %v919
  %921 = vmatprep.mubr.bf16.mxu0 %v91
  %922 = vmatmul.mubr.bf16.gmra.mrb[0].mxu0 %v90
  %v923 = vpop.f32.mrb[0].mxu0
  %v924 = vadd.f32 0.0, %v923
  %v925 = vpop.f32.mrb[0].mxu0
  %v926 = vadd.f32 0.0, %v925
  %v927 = vpop.f32.mrb[0].mxu0
  %v928 = vadd.f32 0.0, %v927
  %v929 = vpop.f32.mrb[0].mxu0
  %v930 = vadd.f32 0.0, %v929
  %931 = vmatprep.mubr.bf16.mxu0 %v94
  %932 = vmatmul.mubr.bf16.gmra.mrb[0].mxu0 %v93
  %v933 = vpop.f32.mrb[0].mxu0
  %v934 = vadd.f32 0.0, %v933
  %v935 = vpop.f32.mrb[0].mxu0
  %v936 = vadd.f32 0.0, %v935
  %v937 = vpop.f32.mrb[0].mxu0
  %v938 = vadd.f32 0.0, %v937
  %v939 = vpop.f32.mrb[0].mxu0
  %v940 = vadd.f32 0.0, %v939
  %941 = vmatprep.mubr.bf16.mxu0 %v97
  %942 = vmatmul.mubr.bf16.gmra.mrb[0].mxu0 %v96
  %v943 = vpop.f32.mrb[0].mxu0
  %v944 = vadd.f32 0.0, %v943
  %v945 = vpop.f32.mrb[0].mxu0
  %v946 = vadd.f32 0.0, %v945
  %v947 = vpop.f32.mrb[0].mxu0
  %v948 = vadd.f32 0.0, %v947
  %v949 = vpop.f32.mrb[0].mxu0
  %v950 = vadd.f32 0.0, %v949
  %951 = vmatprep.mubr.bf16.mxu0 %v100
  %952 = vmatmul.mubr.bf16.gmra.mrb[0].mxu0 %v99
  %v953 = vpop.f32.mrb[0].mxu0
  %v954 = vadd.f32 0.0, %v953
  %v955 = vpop.f32.mrb[0].mxu0
  %v956 = vadd.f32 0.0, %v955
  %v957 = vpop.f32.mrb[0].mxu0
  %v958 = vadd.f32 0.0, %v957
  %v959 = vpop.f32.mrb[0].mxu0
  %v960 = vadd.f32 0.0, %v959
  %961 = vmatprep.mubr.bf16.mxu0 %v103
  %962 = vmatmul.mubr.bf16.gmra.mrb[0].mxu0 %v102
  %v963 = vpop.f32.mrb[0].mxu0
  %v964 = vadd.f32 0.0, %v963
  %v965 = vpop.f32.mrb[0].mxu0
  %v966 = vadd.f32 0.0, %v965
  %v967 = vpop.f32.mrb[0].mxu0
  %v968 = vadd.f32 0.0, %v967
  %v969 = vpop.f32.mrb[0].mxu0
  %v970 = vadd.f32 0.0, %v969
  %971 = vmatprep.mubr.bf16.mxu0 %v106
  %972 = vmatmul.mubr.bf16.gmra.mrb[0].mxu0 %v105
  %v973 = vpop.f32.mrb[0].mxu0
  %v974 = vadd.f32 0.0, %v973
  %v975 = vpop.f32.mrb[0].mxu0
  %v976 = vadd.f32 0.0, %v975
  %v977 = vpop.f32.mrb[0].mxu0
  %v978 = vadd.f32 0.0, %v977
  %v979 = vpop.f32.mrb[0].mxu0
  %v980 = vadd.f32 0.0, %v979
  %981 = vmatprep.mubr.bf16.mxu0 %v109
  %982 = vmatmul.mubr.bf16.gmra.mrb[0].mxu0 %v108
  %v983 = vpop.f32.mrb[0].mxu0
  %v984 = vadd.f32 0.0, %v983
  %v985 = vpop.f32.mrb[0].mxu0
  %v986 = vadd.f32 0.0, %v985
  %v987 = vpop.f32.mrb[0].mxu0
  %v988 = vadd.f32 0.0, %v987
  %v989 = vpop.f32.mrb[0].mxu0
  %v990 = vadd.f32 0.0, %v989
  %991 = vdwg.mxu0
  %992 = vmatprep.subr.bf16.mxu0 %v720
  %993 = vmatpush1.bf16.msra.mxu0 %v719
  %994 = vmatprep.subr.bf16.mxu0 %v725
  %995 = vmatpush1.bf16.msra.mxu0 %v724
  %996 = vmatprep.subr.bf16.mxu0 %v730
  %997 = vmatpush1.bf16.msra.mxu0 %v729
  %998 = vmatprep.subr.bf16.mxu0 %v735
  %999 = vmatpush1.bf16.msra.mxu0 %v734
  %1000 = vmatprep.subr.bf16.mxu0 %v740
  %1001 = vmatpush1.bf16.msra.mxu0 %v739
  %1002 = vmatprep.subr.bf16.mxu0 %v745
  %1003 = vmatpush1.bf16.msra.mxu0 %v744
  %1004 = vmatprep.subr.bf16.mxu0 %v750
  %1005 = vmatpush1.bf16.msra.mxu0 %v749
  %1006 = vmatprep.subr.bf16.mxu0 %v755
  %1007 = vmatpush1.bf16.msra.mxu0 %v754
  %1008 = vmatprep.subr.bf16.mxu0 0
  %1009 = vmatpush1.bf16.msra.mxu0 0
  %1010 = vmatprep.subr.bf16.mxu0 0
  %1011 = vmatpush1.bf16.msra.mxu0 0
  %1012 = vmatprep.subr.bf16.mxu0 0
  %1013 = vmatpush1.bf16.msra.mxu0 0
  %1014 = vmatprep.subr.bf16.mxu0 0
  %1015 = vmatpush1.bf16.msra.mxu0 0
  %1016 = vmatprep.subr.bf16.mxu0 0
  %1017 = vmatpush1.bf16.msra.mxu0 0
  %1018 = vmatprep.subr.bf16.mxu0 0
  %1019 = vmatpush1.bf16.msra.mxu0 0
  %1020 = vmatprep.subr.bf16.mxu0 0
  %1021 = vmatpush1.bf16.msra.mxu0 0
  %1022 = vmatprep.subr.bf16.mxu0 0
  %1023 = vmatpush1.bf16.msra.mxu0 0
  %1024 = vmatprep.mubr.bf16.mxu0 0
  %1025 = vmatmul.mubr.bf16.gmra.mrb[0].mxu0 %v89
  %v1026 = vpop.f32.mrb[0].mxu0
  %v1027 = vadd.f32 %v914, %v1026
  %v1028 = vpop.f32.mrb[0].mxu0
  %v1029 = vadd.f32 %v916, %v1028
  %v1030 = vpop.f32.mrb[0].mxu0
  %v1031 = vadd.f32 %v918, %v1030
  %v1032 = vpop.f32.mrb[0].mxu0
  %v1033 = vadd.f32 %v920, %v1032
  %1034 = vmatprep.mubr.bf16.mxu0 0
  %1035 = vmatmul.mubr.bf16.gmra.mrb[0].mxu0 %v92
  %v1036 = vpop.f32.mrb[0].mxu0
  %v1037 = vadd.f32 %v924, %v1036
  %v1038 = vpop.f32.mrb[0].mxu0
  %v1039 = vadd.f32 %v926, %v1038
  %v1040 = vpop.f32.mrb[0].mxu0
  %v1041 = vadd.f32 %v928, %v1040
  %v1042 = vpop.f32.mrb[0].mxu0
  %v1043 = vadd.f32 %v930, %v1042
  %1044 = vmatprep.mubr.bf16.mxu0 0
  %1045 = vmatmul.mubr.bf16.gmra.mrb[0].mxu0 %v95
  %v1046 = vpop.f32.mrb[0].mxu0
  %v1047 = vadd.f32 %v934, %v1046
  %v1048 = vpop.f32.mrb[0].mxu0
  %v1049 = vadd.f32 %v936, %v1048
  %v1050 = vpop.f32.mrb[0].mxu0
  %v1051 = vadd.f32 %v938, %v1050
  %v1052 = vpop.f32.mrb[0].mxu0
  %v1053 = vadd.f32 %v940, %v1052
  %1054 = vmatprep.mubr.bf16.mxu0 0
  %1055 = vmatmul.mubr.bf16.gmra.mrb[0].mxu0 %v98
  %v1056 = vpop.f32.mrb[0].mxu0
  %v1057 = vadd.f32 %v944, %v1056
  %v1058 = vpop.f32.mrb[0].mxu0
  %v1059 = vadd.f32 %v946, %v1058
  %v1060 = vpop.f32.mrb[0].mxu0
  %v1061 = vadd.f32 %v948, %v1060
  %v1062 = vpop.f32.mrb[0].mxu0
  %v1063 = vadd.f32 %v950, %v1062
  %1064 = vmatprep.mubr.bf16.mxu0 0
  %1065 = vmatmul.mubr.bf16.gmra.mrb[0].mxu0 %v101
  %v1066 = vpop.f32.mrb[0].mxu0
  %v1067 = vadd.f32 %v954, %v1066
  %v1068 = vpop.f32.mrb[0].mxu0
  %v1069 = vadd.f32 %v956, %v1068
  %v1070 = vpop.f32.mrb[0].mxu0
  %v1071 = vadd.f32 %v958, %v1070
  %v1072 = vpop.f32.mrb[0].mxu0
  %v1073 = vadd.f32 %v960, %v1072
  %1074 = vmatprep.mubr.bf16.mxu0 0
  %1075 = vmatmul.mubr.bf16.gmra.mrb[0].mxu0 %v104
  %v1076 = vpop.f32.mrb[0].mxu0
  %v1077 = vadd.f32 %v964, %v1076
  %v1078 = vpop.f32.mrb[0].mxu0
  %v1079 = vadd.f32 %v966, %v1078
  %v1080 = vpop.f32.mrb[0].mxu0
  %v1081 = vadd.f32 %v968, %v1080
  %v1082 = vpop.f32.mrb[0].mxu0
  %v1083 = vadd.f32 %v970, %v1082
  %1084 = vmatprep.mubr.bf16.mxu0 0
  %1085 = vmatmul.mubr.bf16.gmra.mrb[0].mxu0 %v107
  %v1086 = vpop.f32.mrb[0].mxu0
  %v1087 = vadd.f32 %v974, %v1086
  %v1088 = vpop.f32.mrb[0].mxu0
  %v1089 = vadd.f32 %v976, %v1088
  %v1090 = vpop.f32.mrb[0].mxu0
  %v1091 = vadd.f32 %v978, %v1090
  %v1092 = vpop.f32.mrb[0].mxu0
  %v1093 = vadd.f32 %v980, %v1092
  %1094 = vmatprep.mubr.bf16.mxu0 0
  %1095 = vmatmul.mubr.bf16.gmra.mrb[0].mxu0 %v110
  %v1096 = vpop.f32.mrb[0].mxu0
  %v1097 = vadd.f32 %v984, %v1096
  %v1098 = vpop.f32.mrb[0].mxu0
  %v1099 = vadd.f32 %v986, %v1098
  %v1100 = vpop.f32.mrb[0].mxu0
  %v1101 = vadd.f32 %v988, %v1100
  %v1102 = vpop.f32.mrb[0].mxu0
  %v1103 = vadd.f32 %v990, %v1102
  %1104 = vdwg.mxu0
  %1105 = vmatprep.subr.bf16.mxu0 %v642
  %1106 = vmatpush1.bf16.msra.mxu0 %v641
  %1107 = vmatprep.subr.bf16.mxu0 %v647
  %1108 = vmatpush1.bf16.msra.mxu0 %v646
  %1109 = vmatprep.subr.bf16.mxu0 %v652
  %1110 = vmatpush1.bf16.msra.mxu0 %v651
  %1111 = vmatprep.subr.bf16.mxu0 %v657
  %1112 = vmatpush1.bf16.msra.mxu0 %v656
  %1113 = vmatprep.subr.bf16.mxu0 %v662
  %1114 = vmatpush1.bf16.msra.mxu0 %v661
  %1115 = vmatprep.subr.bf16.mxu0 %v667
  %1116 = vmatpush1.bf16.msra.mxu0 %v666
  %1117 = vmatprep.subr.bf16.mxu0 %v672
  %1118 = vmatpush1.bf16.msra.mxu0 %v671
  %1119 = vmatprep.subr.bf16.mxu0 %v677
  %1120 = vmatpush1.bf16.msra.mxu0 %v676
  %1121 = vmatprep.subr.bf16.mxu0 %v682
  %1122 = vmatpush1.bf16.msra.mxu0 %v681
  %1123 = vmatprep.subr.bf16.mxu0 %v687
  %1124 = vmatpush1.bf16.msra.mxu0 %v686
  %1125 = vmatprep.subr.bf16.mxu0 %v692
  %1126 = vmatpush1.bf16.msra.mxu0 %v691
  %1127 = vmatprep.subr.bf16.mxu0 %v697
  %1128 = vmatpush1.bf16.msra.mxu0 %v696
  %1129 = vmatprep.subr.bf16.mxu0 %v702
  %1130 = vmatpush1.bf16.msra.mxu0 %v701
  %1131 = vmatprep.subr.bf16.mxu0 %v707
  %1132 = vmatpush1.bf16.msra.mxu0 %v706
  %1133 = vmatprep.subr.bf16.mxu0 %v712
  %1134 = vmatpush1.bf16.msra.mxu0 %v711
  %1135 = vmatprep.subr.bf16.mxu0 %v717
  %1136 = vmatpush1.bf16.msra.mxu0 %v716
  %1137 = vmatprep.mubr.bf16.mxu0 %v88
  %1138 = vmatmul.mubr.bf16.gmra.mrb[0].mxu0 %v87
  %v1139 = vpop.f32.mrb[0].mxu0
  %v1140 = vadd.f32 0.0, %v1139
  %v1141 = vpop.f32.mrb[0].mxu0
  %v1142 = vadd.f32 0.0, %v1141
  %v1143 = vpop.f32.mrb[0].mxu0
  %v1144 = vadd.f32 0.0, %v1143
  %v1145 = vpop.f32.mrb[0].mxu0
  %v1146 = vadd.f32 0.0, %v1145
  %1147 = vmatprep.mubr.bf16.mxu0 %v91
  %1148 = vmatmul.mubr.bf16.gmra.mrb[0].mxu0 %v90
  %v1149 = vpop.f32.mrb[0].mxu0
  %v1150 = vadd.f32 0.0, %v1149
  %v1151 = vpop.f32.mrb[0].mxu0
  %v1152 = vadd.f32 0.0, %v1151
  %v1153 = vpop.f32.mrb[0].mxu0
  %v1154 = vadd.f32 0.0, %v1153
  %v1155 = vpop.f32.mrb[0].mxu0
  %v1156 = vadd.f32 0.0, %v1155
  %1157 = vmatprep.mubr.bf16.mxu0 %v94
  %1158 = vmatmul.mubr.bf16.gmra.mrb[0].mxu0 %v93
  %v1159 = vpop.f32.mrb[0].mxu0
  %v1160 = vadd.f32 0.0, %v1159
  %v1161 = vpop.f32.mrb[0].mxu0
  %v1162 = vadd.f32 0.0, %v1161
  %v1163 = vpop.f32.mrb[0].mxu0
  %v1164 = vadd.f32 0.0, %v1163
  %v1165 = vpop.f32.mrb[0].mxu0
  %v1166 = vadd.f32 0.0, %v1165
  %1167 = vmatprep.mubr.bf16.mxu0 %v97
  %1168 = vmatmul.mubr.bf16.gmra.mrb[0].mxu0 %v96
  %v1169 = vpop.f32.mrb[0].mxu0
  %v1170 = vadd.f32 0.0, %v1169
  %v1171 = vpop.f32.mrb[0].mxu0
  %v1172 = vadd.f32 0.0, %v1171
  %v1173 = vpop.f32.mrb[0].mxu0
  %v1174 = vadd.f32 0.0, %v1173
  %v1175 = vpop.f32.mrb[0].mxu0
  %v1176 = vadd.f32 0.0, %v1175
  %1177 = vmatprep.mubr.bf16.mxu0 %v100
  %1178 = vmatmul.mubr.bf16.gmra.mrb[0].mxu0 %v99
  %v1179 = vpop.f32.mrb[0].mxu0
  %v1180 = vadd.f32 0.0, %v1179
  %v1181 = vpop.f32.mrb[0].mxu0
  %v1182 = vadd.f32 0.0, %v1181
  %v1183 = vpop.f32.mrb[0].mxu0
  %v1184 = vadd.f32 0.0, %v1183
  %v1185 = vpop.f32.mrb[0].mxu0
  %v1186 = vadd.f32 0.0, %v1185
  %1187 = vmatprep.mubr.bf16.mxu0 %v103
  %1188 = vmatmul.mubr.bf16.gmra.mrb[0].mxu0 %v102
  %v1189 = vpop.f32.mrb[0].mxu0
  %v1190 = vadd.f32 0.0, %v1189
  %v1191 = vpop.f32.mrb[0].mxu0
  %v1192 = vadd.f32 0.0, %v1191
  %v1193 = vpop.f32.mrb[0].mxu0
  %v1194 = vadd.f32 0.0, %v1193
  %v1195 = vpop.f32.mrb[0].mxu0
  %v1196 = vadd.f32 0.0, %v1195
  %1197 = vmatprep.mubr.bf16.mxu0 %v106
  %1198 = vmatmul.mubr.bf16.gmra.mrb[0].mxu0 %v105
  %v1199 = vpop.f32.mrb[0].mxu0
  %v1200 = vadd.f32 0.0, %v1199
  %v1201 = vpop.f32.mrb[0].mxu0
  %v1202 = vadd.f32 0.0, %v1201
  %v1203 = vpop.f32.mrb[0].mxu0
  %v1204 = vadd.f32 0.0, %v1203
  %v1205 = vpop.f32.mrb[0].mxu0
  %v1206 = vadd.f32 0.0, %v1205
  %1207 = vmatprep.mubr.bf16.mxu0 %v109
  %1208 = vmatmul.mubr.bf16.gmra.mrb[0].mxu0 %v108
  %v1209 = vpop.f32.mrb[0].mxu0
  %v1210 = vadd.f32 0.0, %v1209
  %v1211 = vpop.f32.mrb[0].mxu0
  %v1212 = vadd.f32 0.0, %v1211
  %v1213 = vpop.f32.mrb[0].mxu0
  %v1214 = vadd.f32 0.0, %v1213
  %v1215 = vpop.f32.mrb[0].mxu0
  %v1216 = vadd.f32 0.0, %v1215
  %1217 = vdwg.mxu0
  %1218 = vmatprep.subr.bf16.mxu0 %v722
  %1219 = vmatpush1.bf16.msra.mxu0 %v721
  %1220 = vmatprep.subr.bf16.mxu0 %v727
  %1221 = vmatpush1.bf16.msra.mxu0 %v726
  %1222 = vmatprep.subr.bf16.mxu0 %v732
  %1223 = vmatpush1.bf16.msra.mxu0 %v731
  %1224 = vmatprep.subr.bf16.mxu0 %v737
  %1225 = vmatpush1.bf16.msra.mxu0 %v736
  %1226 = vmatprep.subr.bf16.mxu0 %v742
  %1227 = vmatpush1.bf16.msra.mxu0 %v741
  %1228 = vmatprep.subr.bf16.mxu0 %v747
  %1229 = vmatpush1.bf16.msra.mxu0 %v746
  %1230 = vmatprep.subr.bf16.mxu0 %v752
  %1231 = vmatpush1.bf16.msra.mxu0 %v751
  %1232 = vmatprep.subr.bf16.mxu0 %v757
  %1233 = vmatpush1.bf16.msra.mxu0 %v756
  %1234 = vmatprep.subr.bf16.mxu0 0
  %1235 = vmatpush1.bf16.msra.mxu0 0
  %1236 = vmatprep.subr.bf16.mxu0 0
  %1237 = vmatpush1.bf16.msra.mxu0 0
  %1238 = vmatprep.subr.bf16.mxu0 0
  %1239 = vmatpush1.bf16.msra.mxu0 0
  %1240 = vmatprep.subr.bf16.mxu0 0
  %1241 = vmatpush1.bf16.msra.mxu0 0
  %1242 = vmatprep.subr.bf16.mxu0 0
  %1243 = vmatpush1.bf16.msra.mxu0 0
  %1244 = vmatprep.subr.bf16.mxu0 0
  %1245 = vmatpush1.bf16.msra.mxu0 0
  %1246 = vmatprep.subr.bf16.mxu0 0
  %1247 = vmatpush1.bf16.msra.mxu0 0
  %1248 = vmatprep.subr.bf16.mxu0 0
  %1249 = vmatpush1.bf16.msra.mxu0 0
  %1250 = vmatprep.mubr.bf16.mxu0 0
  %1251 = vmatmul.mubr.bf16.gmra.mrb[0].mxu0 %v89
  %v1252 = vpop.f32.mrb[0].mxu0
  %v1253 = vadd.f32 %v1140, %v1252
  %v1254 = vpop.f32.mrb[0].mxu0
  %v1255 = vadd.f32 %v1142, %v1254
  %v1256 = vpop.f32.mrb[0].mxu0
  %v1257 = vadd.f32 %v1144, %v1256
  %v1258 = vpop.f32.mrb[0].mxu0
  %v1259 = vadd.f32 %v1146, %v1258
  %1260 = vmatprep.mubr.bf16.mxu0 0
  %1261 = vmatmul.mubr.bf16.gmra.mrb[0].mxu0 %v92
  %v1262 = vpop.f32.mrb[0].mxu0
  %v1263 = vadd.f32 %v1150, %v1262
  %v1264 = vpop.f32.mrb[0].mxu0
  %v1265 = vadd.f32 %v1152, %v1264
  %v1266 = vpop.f32.mrb[0].mxu0
  %v1267 = vadd.f32 %v1154, %v1266
  %v1268 = vpop.f32.mrb[0].mxu0
  %v1269 = vadd.f32 %v1156, %v1268
  %1270 = vmatprep.mubr.bf16.mxu0 0
  %1271 = vmatmul.mubr.bf16.gmra.mrb[0].mxu0 %v95
  %v1272 = vpop.f32.mrb[0].mxu0
  %v1273 = vadd.f32 %v1160, %v1272
  %v1274 = vpop.f32.mrb[0].mxu0
  %v1275 = vadd.f32 %v1162, %v1274
  %v1276 = vpop.f32.mrb[0].mxu0
  %v1277 = vadd.f32 %v1164, %v1276
  %v1278 = vpop.f32.mrb[0].mxu0
  %v1279 = vadd.f32 %v1166, %v1278
  %1280 = vmatprep.mubr.bf16.mxu0 0
  %1281 = vmatmul.mubr.bf16.gmra.mrb[0].mxu0 %v98
  %v1282 = vpop.f32.mrb[0].mxu0
  %v1283 = vadd.f32 %v1170, %v1282
  %v1284 = vpop.f32.mrb[0].mxu0
  %v1285 = vadd.f32 %v1172, %v1284
  %v1286 = vpop.f32.mrb[0].mxu0
  %v1287 = vadd.f32 %v1174, %v1286
  %v1288 = vpop.f32.mrb[0].mxu0
  %v1289 = vadd.f32 %v1176, %v1288
  %1290 = vmatprep.mubr.bf16.mxu0 0
  %1291 = vmatmul.mubr.bf16.gmra.mrb[0].mxu0 %v101
  %v1292 = vpop.f32.mrb[0].mxu0
  %v1293 = vadd.f32 %v1180, %v1292
  %v1294 = vpop.f32.mrb[0].mxu0
  %v1295 = vadd.f32 %v1182, %v1294
  %v1296 = vpop.f32.mrb[0].mxu0
  %v1297 = vadd.f32 %v1184, %v1296
  %v1298 = vpop.f32.mrb[0].mxu0
  %v1299 = vadd.f32 %v1186, %v1298
  %1300 = vmatprep.mubr.bf16.mxu0 0
  %1301 = vmatmul.mubr.bf16.gmra.mrb[0].mxu0 %v104
  %v1302 = vpop.f32.mrb[0].mxu0
  %v1303 = vadd.f32 %v1190, %v1302
  %v1304 = vpop.f32.mrb[0].mxu0
  %v1305 = vadd.f32 %v1192, %v1304
  %v1306 = vpop.f32.mrb[0].mxu0
  %v1307 = vadd.f32 %v1194, %v1306
  %v1308 = vpop.f32.mrb[0].mxu0
  %v1309 = vadd.f32 %v1196, %v1308
  %1310 = vmatprep.mubr.bf16.mxu0 0
  %1311 = vmatmul.mubr.bf16.gmra.mrb[0].mxu0 %v107
  %v1312 = vpop.f32.mrb[0].mxu0
  %v1313 = vadd.f32 %v1200, %v1312
  %v1314 = vpop.f32.mrb[0].mxu0
  %v1315 = vadd.f32 %v1202, %v1314
  %v1316 = vpop.f32.mrb[0].mxu0
  %v1317 = vadd.f32 %v1204, %v1316
  %v1318 = vpop.f32.mrb[0].mxu0
  %v1319 = vadd.f32 %v1206, %v1318
  %1320 = vmatprep.mubr.bf16.mxu0 0
  %1321 = vmatmul.mubr.bf16.gmra.mrb[0].mxu0 %v110
  %v1322 = vpop.f32.mrb[0].mxu0
  %v1323 = vadd.f32 %v1210, %v1322
  %v1324 = vpop.f32.mrb[0].mxu0
  %v1325 = vadd.f32 %v1212, %v1324
  %v1326 = vpop.f32.mrb[0].mxu0
  %v1327 = vadd.f32 %v1214, %v1326
  %v1328 = vpop.f32.mrb[0].mxu0
  %v1329 = vadd.f32 %v1216, %v1328
  %1330 = vdwg.mxu0
  %1331 = vmatprep.subr.bf16.mxu0 0
  %1332 = vmatpush1.bf16.msra.mxu0 %v643
  %1333 = vmatprep.subr.bf16.mxu0 0
  %1334 = vmatpush1.bf16.msra.mxu0 %v648
  %1335 = vmatprep.subr.bf16.mxu0 0
  %1336 = vmatpush1.bf16.msra.mxu0 %v653
  %1337 = vmatprep.subr.bf16.mxu0 0
  %1338 = vmatpush1.bf16.msra.mxu0 %v658
  %1339 = vmatprep.subr.bf16.mxu0 0
  %1340 = vmatpush1.bf16.msra.mxu0 %v663
  %1341 = vmatprep.subr.bf16.mxu0 0
  %1342 = vmatpush1.bf16.msra.mxu0 %v668
  %1343 = vmatprep.subr.bf16.mxu0 0
  %1344 = vmatpush1.bf16.msra.mxu0 %v673
  %1345 = vmatprep.subr.bf16.mxu0 0
  %1346 = vmatpush1.bf16.msra.mxu0 %v678
  %1347 = vmatprep.subr.bf16.mxu0 0
  %1348 = vmatpush1.bf16.msra.mxu0 %v683
  %1349 = vmatprep.subr.bf16.mxu0 0
  %1350 = vmatpush1.bf16.msra.mxu0 %v688
  %1351 = vmatprep.subr.bf16.mxu0 0
  %1352 = vmatpush1.bf16.msra.mxu0 %v693
  %1353 = vmatprep.subr.bf16.mxu0 0
  %1354 = vmatpush1.bf16.msra.mxu0 %v698
  %1355 = vmatprep.subr.bf16.mxu0 0
  %1356 = vmatpush1.bf16.msra.mxu0 %v703
  %1357 = vmatprep.subr.bf16.mxu0 0
  %1358 = vmatpush1.bf16.msra.mxu0 %v708
  %1359 = vmatprep.subr.bf16.mxu0 0
  %1360 = vmatpush1.bf16.msra.mxu0 %v713
  %1361 = vmatprep.subr.bf16.mxu0 0
  %1362 = vmatpush1.bf16.msra.mxu0 %v718
  %1363 = vmatprep.mubr.bf16.mxu0 %v88
  %1364 = vmatmul.mubr.bf16.gmra.mrb[0].mxu0 %v87
  %v1365 = vpop.f32.mrb[0].mxu0
  %v1366 = vadd.f32 0.0, %v1365
  %v1367 = vpop.f32.mrb[0].mxu0
  %v1368 = vpop.f32.mrb[0].mxu0
  %v1369 = vadd.f32 0.0, %v1368
  %v1370 = vpop.f32.mrb[0].mxu0
  %1371 = vmatprep.mubr.bf16.mxu0 %v91
  %1372 = vmatmul.mubr.bf16.gmra.mrb[0].mxu0 %v90
  %v1373 = vpop.f32.mrb[0].mxu0
  %v1374 = vadd.f32 0.0, %v1373
  %v1375 = vpop.f32.mrb[0].mxu0
  %v1376 = vpop.f32.mrb[0].mxu0
  %v1377 = vadd.f32 0.0, %v1376
  %v1378 = vpop.f32.mrb[0].mxu0
  %1379 = vmatprep.mubr.bf16.mxu0 %v94
  %1380 = vmatmul.mubr.bf16.gmra.mrb[0].mxu0 %v93
  %v1381 = vpop.f32.mrb[0].mxu0
  %v1382 = vadd.f32 0.0, %v1381
  %v1383 = vpop.f32.mrb[0].mxu0
  %v1384 = vpop.f32.mrb[0].mxu0
  %v1385 = vadd.f32 0.0, %v1384
  %v1386 = vpop.f32.mrb[0].mxu0
  %1387 = vmatprep.mubr.bf16.mxu0 %v97
  %1388 = vmatmul.mubr.bf16.gmra.mrb[0].mxu0 %v96
  %v1389 = vpop.f32.mrb[0].mxu0
  %v1390 = vadd.f32 0.0, %v1389
  %v1391 = vpop.f32.mrb[0].mxu0
  %v1392 = vpop.f32.mrb[0].mxu0
  %v1393 = vadd.f32 0.0, %v1392
  %v1394 = vpop.f32.mrb[0].mxu0
  %1395 = vmatprep.mubr.bf16.mxu0 %v100
  %1396 = vmatmul.mubr.bf16.gmra.mrb[0].mxu0 %v99
  %v1397 = vpop.f32.mrb[0].mxu0
  %v1398 = vadd.f32 0.0, %v1397
  %v1399 = vpop.f32.mrb[0].mxu0
  %v1400 = vpop.f32.mrb[0].mxu0
  %v1401 = vadd.f32 0.0, %v1400
  %v1402 = vpop.f32.mrb[0].mxu0
  %1403 = vmatprep.mubr.bf16.mxu0 %v103
  %1404 = vmatmul.mubr.bf16.gmra.mrb[0].mxu0 %v102
  %v1405 = vpop.f32.mrb[0].mxu0
  %v1406 = vadd.f32 0.0, %v1405
  %v1407 = vpop.f32.mrb[0].mxu0
  %v1408 = vpop.f32.mrb[0].mxu0
  %v1409 = vadd.f32 0.0, %v1408
  %v1410 = vpop.f32.mrb[0].mxu0
  %1411 = vmatprep.mubr.bf16.mxu0 %v106
  %1412 = vmatmul.mubr.bf16.gmra.mrb[0].mxu0 %v105
  %v1413 = vpop.f32.mrb[0].mxu0
  %v1414 = vadd.f32 0.0, %v1413
  %v1415 = vpop.f32.mrb[0].mxu0
  %v1416 = vpop.f32.mrb[0].mxu0
  %v1417 = vadd.f32 0.0, %v1416
  %v1418 = vpop.f32.mrb[0].mxu0
  %1419 = vmatprep.mubr.bf16.mxu0 %v109
  %1420 = vmatmul.mubr.bf16.gmra.mrb[0].mxu0 %v108
  %v1421 = vpop.f32.mrb[0].mxu0
  %v1422 = vadd.f32 0.0, %v1421
  %v1423 = vpop.f32.mrb[0].mxu0
  %v1424 = vpop.f32.mrb[0].mxu0
  %v1425 = vadd.f32 0.0, %v1424
  %v1426 = vpop.f32.mrb[0].mxu0
  %1427 = vdwg.mxu0
  %1428 = vmatprep.subr.bf16.mxu0 0
  %1429 = vmatpush1.bf16.msra.mxu0 %v723
  %1430 = vmatprep.subr.bf16.mxu0 0
  %1431 = vmatpush1.bf16.msra.mxu0 %v728
  %1432 = vmatprep.subr.bf16.mxu0 0
  %1433 = vmatpush1.bf16.msra.mxu0 %v733
  %1434 = vmatprep.subr.bf16.mxu0 0
  %1435 = vmatpush1.bf16.msra.mxu0 %v738
  %1436 = vmatprep.subr.bf16.mxu0 0
  %1437 = vmatpush1.bf16.msra.mxu0 %v743
  %1438 = vmatprep.subr.bf16.mxu0 0
  %1439 = vmatpush1.bf16.msra.mxu0 %v748
  %1440 = vmatprep.subr.bf16.mxu0 0
  %1441 = vmatpush1.bf16.msra.mxu0 %v753
  %1442 = vmatprep.subr.bf16.mxu0 0
  %1443 = vmatpush1.bf16.msra.mxu0 %v758
  %1444 = vmatprep.subr.bf16.mxu0 0
  %1445 = vmatpush1.bf16.msra.mxu0 0
  %1446 = vmatprep.subr.bf16.mxu0 0
  %1447 = vmatpush1.bf16.msra.mxu0 0
  %1448 = vmatprep.subr.bf16.mxu0 0
  %1449 = vmatpush1.bf16.msra.mxu0 0
  %1450 = vmatprep.subr.bf16.mxu0 0
  %1451 = vmatpush1.bf16.msra.mxu0 0
  %1452 = vmatprep.subr.bf16.mxu0 0
  %1453 = vmatpush1.bf16.msra.mxu0 0
  %1454 = vmatprep.subr.bf16.mxu0 0
  %1455 = vmatpush1.bf16.msra.mxu0 0
  %1456 = vmatprep.subr.bf16.mxu0 0
  %1457 = vmatpush1.bf16.msra.mxu0 0
  %1458 = vmatprep.subr.bf16.mxu0 0
  %1459 = vmatpush1.bf16.msra.mxu0 0
  %1460 = vmatprep.mubr.bf16.mxu0 0
  %1461 = vmatmul.mubr.bf16.gmra.mrb[0].mxu0 %v89
  %v1462 = vpop.f32.mrb[0].mxu0
  %v1463 = vadd.f32 %v1366, %v1462
  %v1464 = vpop.f32.mrb[0].mxu0
  %v1465 = vpop.f32.mrb[0].mxu0
  %v1466 = vadd.f32 %v1369, %v1465
  %v1467 = vpop.f32.mrb[0].mxu0
  %1468 = vmatprep.mubr.bf16.mxu0 0
  %1469 = vmatmul.mubr.bf16.gmra.mrb[0].mxu0 %v92
  %v1470 = vpop.f32.mrb[0].mxu0
  %v1471 = vadd.f32 %v1374, %v1470
  %v1472 = vpop.f32.mrb[0].mxu0
  %v1473 = vpop.f32.mrb[0].mxu0
  %v1474 = vadd.f32 %v1377, %v1473
  %v1475 = vpop.f32.mrb[0].mxu0
  %1476 = vmatprep.mubr.bf16.mxu0 0
  %1477 = vmatmul.mubr.bf16.gmra.mrb[0].mxu0 %v95
  %v1478 = vpop.f32.mrb[0].mxu0
  %v1479 = vadd.f32 %v1382, %v1478
  %v1480 = vpop.f32.mrb[0].mxu0
  %v1481 = vpop.f32.mrb[0].mxu0
  %v1482 = vadd.f32 %v1385, %v1481
  %v1483 = vpop.f32.mrb[0].mxu0
  %1484 = vmatprep.mubr.bf16.mxu0 0
  %1485 = vmatmul.mubr.bf16.gmra.mrb[0].mxu0 %v98
  %v1486 = vpop.f32.mrb[0].mxu0
  %v1487 = vadd.f32 %v1390, %v1486
  %v1488 = vpop.f32.mrb[0].mxu0
  %v1489 = vpop.f32.mrb[0].mxu0
  %v1490 = vadd.f32 %v1393, %v1489
  %v1491 = vpop.f32.mrb[0].mxu0
  %1492 = vmatprep.mubr.bf16.mxu0 0
  %1493 = vmatmul.mubr.bf16.gmra.mrb[0].mxu0 %v101
  %v1494 = vpop.f32.mrb[0].mxu0
  %v1495 = vadd.f32 %v1398, %v1494
  %v1496 = vpop.f32.mrb[0].mxu0
  %v1497 = vpop.f32.mrb[0].mxu0
  %v1498 = vadd.f32 %v1401, %v1497
  %v1499 = vpop.f32.mrb[0].mxu0
  %1500 = vmatprep.mubr.bf16.mxu0 0
  %1501 = vmatmul.mubr.bf16.gmra.mrb[0].mxu0 %v104
  %v1502 = vpop.f32.mrb[0].mxu0
  %v1503 = vadd.f32 %v1406, %v1502
  %v1504 = vpop.f32.mrb[0].mxu0
  %v1505 = vpop.f32.mrb[0].mxu0
  %v1506 = vadd.f32 %v1409, %v1505
  %v1507 = vpop.f32.mrb[0].mxu0
  %1508 = vmatprep.mubr.bf16.mxu0 0
  %1509 = vmatmul.mubr.bf16.gmra.mrb[0].mxu0 %v107
  %v1510 = vpop.f32.mrb[0].mxu0
  %v1511 = vadd.f32 %v1414, %v1510
  %v1512 = vpop.f32.mrb[0].mxu0
  %v1513 = vpop.f32.mrb[0].mxu0
  %v1514 = vadd.f32 %v1417, %v1513
  %v1515 = vpop.f32.mrb[0].mxu0
  %1516 = vmatprep.mubr.bf16.mxu0 0
  %1517 = vmatmul.mubr.bf16.gmra.mrb[0].mxu0 %v110
  %v1518 = vpop.f32.mrb[0].mxu0
  %v1519 = vadd.f32 %v1422, %v1518
  %v1520 = vpop.f32.mrb[0].mxu0
  %v1521 = vpop.f32.mrb[0].mxu0
  %v1522 = vadd.f32 %v1425, %v1521
  %v1523 = vpop.f32.mrb[0].mxu0
  %1524 = vdwg.mxu0
  %1525 = vrot.lane.b32.xlu0 %v39, 127
  %v1526 = vpop.permute.xlu0 %1525
  %1527 = vrot.lane.b32.xlu0 %v42, 127
  %v1528 = vpop.permute.xlu0 %1527
  %1529 = vrot.lane.b32.xlu0 %v45, 127
  %v1530 = vpop.permute.xlu0 %1529
  %1531 = vrot.lane.b32.xlu0 %v48, 127
  %v1532 = vpop.permute.xlu0 %1531
  %1533 = vrot.lane.b32.xlu0 %v51, 127
  %v1534 = vpop.permute.xlu0 %1533
  %1535 = vrot.lane.b32.xlu0 %v54, 127
  %v1536 = vpop.permute.xlu0 %1535
  %1537 = vrot.lane.b32.xlu0 %v57, 127
  %v1538 = vpop.permute.xlu0 %1537
  %1539 = vrot.lane.b32.xlu0 %v60, 127
  %v1540 = vpop.permute.xlu0 %1539
  %1541 = vrot.lane.b32.xlu0 %v63, 127
  %v1542 = vpop.permute.xlu0 %1541
  %1543 = vrot.lane.b32.xlu0 %v66, 127
  %v1544 = vpop.permute.xlu0 %1543
  %1545 = vrot.lane.b32.xlu0 %v69, 127
  %v1546 = vpop.permute.xlu0 %1545
  %1547 = vrot.lane.b32.xlu0 %v72, 127
  %v1548 = vpop.permute.xlu0 %1547
  %1549 = vrot.lane.b32.xlu0 %v75, 127
  %v1550 = vpop.permute.xlu0 %1549
  %1551 = vrot.lane.b32.xlu0 %v78, 127
  %v1552 = vpop.permute.xlu0 %1551
  %1553 = vrot.lane.b32.xlu0 %v81, 127
  %v1554 = vpop.permute.xlu0 %1553
  %1555 = vrot.lane.b32.xlu0 %v84, 127
  %v1556 = vpop.permute.xlu0 %1555
  %1557 = vrot.lane.b32.xlu0 %v40, 127
  %v1558 = vpop.permute.xlu0 %1557
  %1559 = vrot.lane.b32.xlu0 %v43, 127
  %v1560 = vpop.permute.xlu0 %1559
  %1561 = vrot.lane.b32.xlu0 %v46, 127
  %v1562 = vpop.permute.xlu0 %1561
  %1563 = vrot.lane.b32.xlu0 %v49, 127
  %v1564 = vpop.permute.xlu0 %1563
  %1565 = vrot.lane.b32.xlu0 %v52, 127
  %v1566 = vpop.permute.xlu0 %1565
  %1567 = vrot.lane.b32.xlu0 %v55, 127
  %v1568 = vpop.permute.xlu0 %1567
  %1569 = vrot.lane.b32.xlu0 %v58, 127
  %v1570 = vpop.permute.xlu0 %1569
  %1571 = vrot.lane.b32.xlu0 %v61, 127
  %v1572 = vpop.permute.xlu0 %1571
  %1573 = vrot.lane.b32.xlu0 %v64, 127
  %v1574 = vpop.permute.xlu0 %1573
  %1575 = vrot.lane.b32.xlu0 %v67, 127
  %v1576 = vpop.permute.xlu0 %1575
  %1577 = vrot.lane.b32.xlu0 %v70, 127
  %v1578 = vpop.permute.xlu0 %1577
  %1579 = vrot.lane.b32.xlu0 %v73, 127
  %v1580 = vpop.permute.xlu0 %1579
  %1581 = vrot.lane.b32.xlu0 %v76, 127
  %v1582 = vpop.permute.xlu0 %1581
  %1583 = vrot.lane.b32.xlu0 %v79, 127
  %v1584 = vpop.permute.xlu0 %1583
  %1585 = vrot.lane.b32.xlu0 %v82, 127
  %v1586 = vpop.permute.xlu0 %1585
  %1587 = vrot.lane.b32.xlu0 %v85, 127
  %v1588 = vpop.permute.xlu0 %1587
  %1589 = vrot.lane.b32.xlu0 %v41, 127
  %v1590 = vpop.permute.xlu0 %1589
  %1591 = vrot.lane.b32.xlu0 %v44, 127
  %v1592 = vpop.permute.xlu0 %1591
  %1593 = vrot.lane.b32.xlu0 %v47, 127
  %v1594 = vpop.permute.xlu0 %1593
  %1595 = vrot.lane.b32.xlu0 %v50, 127
  %v1596 = vpop.permute.xlu0 %1595
  %1597 = vrot.lane.b32.xlu0 %v53, 127
  %v1598 = vpop.permute.xlu0 %1597
  %1599 = vrot.lane.b32.xlu0 %v56, 127
  %v1600 = vpop.permute.xlu0 %1599
  %1601 = vrot.lane.b32.xlu0 %v59, 127
  %v1602 = vpop.permute.xlu0 %1601
  %1603 = vrot.lane.b32.xlu0 %v62, 127
  %v1604 = vpop.permute.xlu0 %1603
  %1605 = vrot.lane.b32.xlu0 %v65, 127
  %v1606 = vpop.permute.xlu0 %1605
  %1607 = vrot.lane.b32.xlu0 %v68, 127
  %v1608 = vpop.permute.xlu0 %1607
  %1609 = vrot.lane.b32.xlu0 %v71, 127
  %v1610 = vpop.permute.xlu0 %1609
  %1611 = vrot.lane.b32.xlu0 %v74, 127
  %v1612 = vpop.permute.xlu0 %1611
  %1613 = vrot.lane.b32.xlu0 %v77, 127
  %v1614 = vpop.permute.xlu0 %1613
  %1615 = vrot.lane.b32.xlu0 %v80, 127
  %v1616 = vpop.permute.xlu0 %1615
  %1617 = vrot.lane.b32.xlu0 %v83, 127
  %v1618 = vpop.permute.xlu0 %1617
  %1619 = vrot.lane.b32.xlu0 %v86, 127
  %v1620 = vpop.permute.xlu0 %1619
  %v1621 = vlaneseq
  %v1622 = vand.u32 %v1621, 127
  %vm1623 = vcmp.lt.s32.totalorder %v1622, 127
  %v1624 = vsel %vm1623, %v1558, %v1590
  %v1625 = vsel %vm1623, %v1560, %v1592
  %v1626 = vsel %vm1623, %v1562, %v1594
  %v1627 = vsel %vm1623, %v1564, %v1596
  %v1628 = vsel %vm1623, %v1566, %v1598
  %v1629 = vsel %vm1623, %v1568, %v1600
  %v1630 = vsel %vm1623, %v1570, %v1602
  %v1631 = vsel %vm1623, %v1572, %v1604
  %v1632 = vsel %vm1623, %v1574, %v1606
  %v1633 = vsel %vm1623, %v1576, %v1608
  %v1634 = vsel %vm1623, %v1578, %v1610
  %v1635 = vsel %vm1623, %v1580, %v1612
  %v1636 = vsel %vm1623, %v1582, %v1614
  %v1637 = vsel %vm1623, %v1584, %v1616
  %v1638 = vsel %vm1623, %v1586, %v1618
  %v1639 = vsel %vm1623, %v1588, %v1620
  %v1640 = vsel %vm1623, %v1526, %v1558
  %v1641 = vsel %vm1623, %v1528, %v1560
  %v1642 = vsel %vm1623, %v1530, %v1562
  %v1643 = vsel %vm1623, %v1532, %v1564
  %v1644 = vsel %vm1623, %v1534, %v1566
  %v1645 = vsel %vm1623, %v1536, %v1568
  %v1646 = vsel %vm1623, %v1538, %v1570
  %v1647 = vsel %vm1623, %v1540, %v1572
  %v1648 = vsel %vm1623, %v1542, %v1574
  %v1649 = vsel %vm1623, %v1544, %v1576
  %v1650 = vsel %vm1623, %v1546, %v1578
  %v1651 = vsel %vm1623, %v1548, %v1580
  %v1652 = vsel %vm1623, %v1550, %v1582
  %v1653 = vsel %vm1623, %v1552, %v1584
  %v1654 = vsel %vm1623, %v1554, %v1586
  %v1655 = vsel %vm1623, %v1556, %v1588
  %v1656 = vsel %vm1623, %v1590, %v1526
  %v1657 = vsel %vm1623, %v1592, %v1528
  %v1658 = vsel %vm1623, %v1594, %v1530
  %v1659 = vsel %vm1623, %v1596, %v1532
  %v1660 = vsel %vm1623, %v1598, %v1534
  %v1661 = vsel %vm1623, %v1600, %v1536
  %v1662 = vsel %vm1623, %v1602, %v1538
  %v1663 = vsel %vm1623, %v1604, %v1540
  %v1664 = vsel %vm1623, %v1606, %v1542
  %v1665 = vsel %vm1623, %v1608, %v1544
  %v1666 = vsel %vm1623, %v1610, %v1546
  %v1667 = vsel %vm1623, %v1612, %v1548
  %v1668 = vsel %vm1623, %v1614, %v1550
  %v1669 = vsel %vm1623, %v1616, %v1552
  %v1670 = vsel %vm1623, %v1618, %v1554
  %v1671 = vsel %vm1623, %v1620, %v1556
  %v1672 = vpack.c.bf16 %v1641, %v1640
  %v1673 = vpack.c.bf16 %v1625, %v1624
  %v1674 = vpack.c.bf16 %v1657, %v1656
  %v1675 = vpack.c.bf16 %v1643, %v1642
  %v1676 = vpack.c.bf16 %v1627, %v1626
  %v1677 = vpack.c.bf16 %v1659, %v1658
  %v1678 = vpack.c.bf16 %v1645, %v1644
  %v1679 = vpack.c.bf16 %v1629, %v1628
  %v1680 = vpack.c.bf16 %v1661, %v1660
  %v1681 = vpack.c.bf16 %v1647, %v1646
  %v1682 = vpack.c.bf16 %v1631, %v1630
  %v1683 = vpack.c.bf16 %v1663, %v1662
  %v1684 = vpack.c.bf16 %v1649, %v1648
  %v1685 = vpack.c.bf16 %v1633, %v1632
  %v1686 = vpack.c.bf16 %v1665, %v1664
  %v1687 = vpack.c.bf16 %v1651, %v1650
  %v1688 = vpack.c.bf16 %v1635, %v1634
  %v1689 = vpack.c.bf16 %v1667, %v1666
  %v1690 = vpack.c.bf16 %v1653, %v1652
  %v1691 = vpack.c.bf16 %v1637, %v1636
  %v1692 = vpack.c.bf16 %v1669, %v1668
  %v1693 = vpack.c.bf16 %v1655, %v1654
  %v1694 = vpack.c.bf16 %v1639, %v1638
  %v1695 = vpack.c.bf16 %v1671, %v1670
  %1696 = vmatprep.subr.bf16.mxu0 %v640
  %1697 = vmatpush1.bf16.msra.mxu0 %v639
  %1698 = vmatprep.subr.bf16.mxu0 %v645
  %1699 = vmatpush1.bf16.msra.mxu0 %v644
  %1700 = vmatprep.subr.bf16.mxu0 %v650
  %1701 = vmatpush1.bf16.msra.mxu0 %v649
  %1702 = vmatprep.subr.bf16.mxu0 %v655
  %1703 = vmatpush1.bf16.msra.mxu0 %v654
  %1704 = vmatprep.subr.bf16.mxu0 %v660
  %1705 = vmatpush1.bf16.msra.mxu0 %v659
  %1706 = vmatprep.subr.bf16.mxu0 %v665
  %1707 = vmatpush1.bf16.msra.mxu0 %v664
  %1708 = vmatprep.subr.bf16.mxu0 %v670
  %1709 = vmatpush1.bf16.msra.mxu0 %v669
  %1710 = vmatprep.subr.bf16.mxu0 %v675
  %1711 = vmatpush1.bf16.msra.mxu0 %v674
  %1712 = vmatprep.subr.bf16.mxu0 %v680
  %1713 = vmatpush1.bf16.msra.mxu0 %v679
  %1714 = vmatprep.subr.bf16.mxu0 %v685
  %1715 = vmatpush1.bf16.msra.mxu0 %v684
  %1716 = vmatprep.subr.bf16.mxu0 %v690
  %1717 = vmatpush1.bf16.msra.mxu0 %v689
  %1718 = vmatprep.subr.bf16.mxu0 %v695
  %1719 = vmatpush1.bf16.msra.mxu0 %v694
  %1720 = vmatprep.subr.bf16.mxu0 %v700
  %1721 = vmatpush1.bf16.msra.mxu0 %v699
  %1722 = vmatprep.subr.bf16.mxu0 %v705
  %1723 = vmatpush1.bf16.msra.mxu0 %v704
  %1724 = vmatprep.subr.bf16.mxu0 %v710
  %1725 = vmatpush1.bf16.msra.mxu0 %v709
  %1726 = vmatprep.subr.bf16.mxu0 %v715
  %1727 = vmatpush1.bf16.msra.mxu0 %v714
  %1728 = vmatprep.mubr.bf16.mxu0 %v1673
  %1729 = vmatmul.mubr.bf16.gmra.mrb[0].mxu0 %v1672
  %v1730 = vpop.f32.mrb[0].mxu0
  %v1731 = vadd.f32 0.0, %v1730
  %v1732 = vpop.f32.mrb[0].mxu0
  %v1733 = vadd.f32 0.0, %v1732
  %v1734 = vpop.f32.mrb[0].mxu0
  %v1735 = vadd.f32 0.0, %v1734
  %v1736 = vpop.f32.mrb[0].mxu0
  %v1737 = vadd.f32 0.0, %v1736
  %1738 = vmatprep.mubr.bf16.mxu0 %v1676
  %1739 = vmatmul.mubr.bf16.gmra.mrb[0].mxu0 %v1675
  %v1740 = vpop.f32.mrb[0].mxu0
  %v1741 = vadd.f32 0.0, %v1740
  %v1742 = vpop.f32.mrb[0].mxu0
  %v1743 = vadd.f32 0.0, %v1742
  %v1744 = vpop.f32.mrb[0].mxu0
  %v1745 = vadd.f32 0.0, %v1744
  %v1746 = vpop.f32.mrb[0].mxu0
  %v1747 = vadd.f32 0.0, %v1746
  %1748 = vmatprep.mubr.bf16.mxu0 %v1679
  %1749 = vmatmul.mubr.bf16.gmra.mrb[0].mxu0 %v1678
  %v1750 = vpop.f32.mrb[0].mxu0
  %v1751 = vadd.f32 0.0, %v1750
  %v1752 = vpop.f32.mrb[0].mxu0
  %v1753 = vadd.f32 0.0, %v1752
  %v1754 = vpop.f32.mrb[0].mxu0
  %v1755 = vadd.f32 0.0, %v1754
  %v1756 = vpop.f32.mrb[0].mxu0
  %v1757 = vadd.f32 0.0, %v1756
  %1758 = vmatprep.mubr.bf16.mxu0 %v1682
  %1759 = vmatmul.mubr.bf16.gmra.mrb[0].mxu0 %v1681
  %v1760 = vpop.f32.mrb[0].mxu0
  %v1761 = vadd.f32 0.0, %v1760
  %v1762 = vpop.f32.mrb[0].mxu0
  %v1763 = vadd.f32 0.0, %v1762
  %v1764 = vpop.f32.mrb[0].mxu0
  %v1765 = vadd.f32 0.0, %v1764
  %v1766 = vpop.f32.mrb[0].mxu0
  %v1767 = vadd.f32 0.0, %v1766
  %1768 = vmatprep.mubr.bf16.mxu0 %v1685
  %1769 = vmatmul.mubr.bf16.gmra.mrb[0].mxu0 %v1684
  %v1770 = vpop.f32.mrb[0].mxu0
  %v1771 = vadd.f32 0.0, %v1770
  %v1772 = vpop.f32.mrb[0].mxu0
  %v1773 = vadd.f32 0.0, %v1772
  %v1774 = vpop.f32.mrb[0].mxu0
  %v1775 = vadd.f32 0.0, %v1774
  %v1776 = vpop.f32.mrb[0].mxu0
  %v1777 = vadd.f32 0.0, %v1776
  %1778 = vmatprep.mubr.bf16.mxu0 %v1688
  %1779 = vmatmul.mubr.bf16.gmra.mrb[0].mxu0 %v1687
  %v1780 = vpop.f32.mrb[0].mxu0
  %v1781 = vadd.f32 0.0, %v1780
  %v1782 = vpop.f32.mrb[0].mxu0
  %v1783 = vadd.f32 0.0, %v1782
  %v1784 = vpop.f32.mrb[0].mxu0
  %v1785 = vadd.f32 0.0, %v1784
  %v1786 = vpop.f32.mrb[0].mxu0
  %v1787 = vadd.f32 0.0, %v1786
  %1788 = vmatprep.mubr.bf16.mxu0 %v1691
  %1789 = vmatmul.mubr.bf16.gmra.mrb[0].mxu0 %v1690
  %v1790 = vpop.f32.mrb[0].mxu0
  %v1791 = vadd.f32 0.0, %v1790
  %v1792 = vpop.f32.mrb[0].mxu0
  %v1793 = vadd.f32 0.0, %v1792
  %v1794 = vpop.f32.mrb[0].mxu0
  %v1795 = vadd.f32 0.0, %v1794
  %v1796 = vpop.f32.mrb[0].mxu0
  %v1797 = vadd.f32 0.0, %v1796
  %1798 = vmatprep.mubr.bf16.mxu0 %v1694
  %1799 = vmatmul.mubr.bf16.gmra.mrb[0].mxu0 %v1693
  %v1800 = vpop.f32.mrb[0].mxu0
  %v1801 = vadd.f32 0.0, %v1800
  %v1802 = vpop.f32.mrb[0].mxu0
  %v1803 = vadd.f32 0.0, %v1802
  %v1804 = vpop.f32.mrb[0].mxu0
  %v1805 = vadd.f32 0.0, %v1804
  %v1806 = vpop.f32.mrb[0].mxu0
  %v1807 = vadd.f32 0.0, %v1806
  %1808 = vdwg.mxu0
  %1809 = vmatprep.subr.bf16.mxu0 %v720
  %1810 = vmatpush1.bf16.msra.mxu0 %v719
  %1811 = vmatprep.subr.bf16.mxu0 %v725
  %1812 = vmatpush1.bf16.msra.mxu0 %v724
  %1813 = vmatprep.subr.bf16.mxu0 %v730
  %1814 = vmatpush1.bf16.msra.mxu0 %v729
  %1815 = vmatprep.subr.bf16.mxu0 %v735
  %1816 = vmatpush1.bf16.msra.mxu0 %v734
  %1817 = vmatprep.subr.bf16.mxu0 %v740
  %1818 = vmatpush1.bf16.msra.mxu0 %v739
  %1819 = vmatprep.subr.bf16.mxu0 %v745
  %1820 = vmatpush1.bf16.msra.mxu0 %v744
  %1821 = vmatprep.subr.bf16.mxu0 %v750
  %1822 = vmatpush1.bf16.msra.mxu0 %v749
  %1823 = vmatprep.subr.bf16.mxu0 %v755
  %1824 = vmatpush1.bf16.msra.mxu0 %v754
  %1825 = vmatprep.subr.bf16.mxu0 0
  %1826 = vmatpush1.bf16.msra.mxu0 0
  %1827 = vmatprep.subr.bf16.mxu0 0
  %1828 = vmatpush1.bf16.msra.mxu0 0
  %1829 = vmatprep.subr.bf16.mxu0 0
  %1830 = vmatpush1.bf16.msra.mxu0 0
  %1831 = vmatprep.subr.bf16.mxu0 0
  %1832 = vmatpush1.bf16.msra.mxu0 0
  %1833 = vmatprep.subr.bf16.mxu0 0
  %1834 = vmatpush1.bf16.msra.mxu0 0
  %1835 = vmatprep.subr.bf16.mxu0 0
  %1836 = vmatpush1.bf16.msra.mxu0 0
  %1837 = vmatprep.subr.bf16.mxu0 0
  %1838 = vmatpush1.bf16.msra.mxu0 0
  %1839 = vmatprep.subr.bf16.mxu0 0
  %1840 = vmatpush1.bf16.msra.mxu0 0
  %1841 = vmatprep.mubr.bf16.mxu0 0
  %1842 = vmatmul.mubr.bf16.gmra.mrb[0].mxu0 %v1674
  %v1843 = vpop.f32.mrb[0].mxu0
  %v1844 = vadd.f32 %v1731, %v1843
  %v1845 = vpop.f32.mrb[0].mxu0
  %v1846 = vadd.f32 %v1733, %v1845
  %v1847 = vpop.f32.mrb[0].mxu0
  %v1848 = vadd.f32 %v1735, %v1847
  %v1849 = vpop.f32.mrb[0].mxu0
  %v1850 = vadd.f32 %v1737, %v1849
  %1851 = vmatprep.mubr.bf16.mxu0 0
  %1852 = vmatmul.mubr.bf16.gmra.mrb[0].mxu0 %v1677
  %v1853 = vpop.f32.mrb[0].mxu0
  %v1854 = vadd.f32 %v1741, %v1853
  %v1855 = vpop.f32.mrb[0].mxu0
  %v1856 = vadd.f32 %v1743, %v1855
  %v1857 = vpop.f32.mrb[0].mxu0
  %v1858 = vadd.f32 %v1745, %v1857
  %v1859 = vpop.f32.mrb[0].mxu0
  %v1860 = vadd.f32 %v1747, %v1859
  %1861 = vmatprep.mubr.bf16.mxu0 0
  %1862 = vmatmul.mubr.bf16.gmra.mrb[0].mxu0 %v1680
  %v1863 = vpop.f32.mrb[0].mxu0
  %v1864 = vadd.f32 %v1751, %v1863
  %v1865 = vpop.f32.mrb[0].mxu0
  %v1866 = vadd.f32 %v1753, %v1865
  %v1867 = vpop.f32.mrb[0].mxu0
  %v1868 = vadd.f32 %v1755, %v1867
  %v1869 = vpop.f32.mrb[0].mxu0
  %v1870 = vadd.f32 %v1757, %v1869
  %1871 = vmatprep.mubr.bf16.mxu0 0
  %1872 = vmatmul.mubr.bf16.gmra.mrb[0].mxu0 %v1683
  %v1873 = vpop.f32.mrb[0].mxu0
  %v1874 = vadd.f32 %v1761, %v1873
  %v1875 = vpop.f32.mrb[0].mxu0
  %v1876 = vadd.f32 %v1763, %v1875
  %v1877 = vpop.f32.mrb[0].mxu0
  %v1878 = vadd.f32 %v1765, %v1877
  %v1879 = vpop.f32.mrb[0].mxu0
  %v1880 = vadd.f32 %v1767, %v1879
  %1881 = vmatprep.mubr.bf16.mxu0 0
  %1882 = vmatmul.mubr.bf16.gmra.mrb[0].mxu0 %v1686
  %v1883 = vpop.f32.mrb[0].mxu0
  %v1884 = vadd.f32 %v1771, %v1883
  %v1885 = vpop.f32.mrb[0].mxu0
  %v1886 = vadd.f32 %v1773, %v1885
  %v1887 = vpop.f32.mrb[0].mxu0
  %v1888 = vadd.f32 %v1775, %v1887
  %v1889 = vpop.f32.mrb[0].mxu0
  %v1890 = vadd.f32 %v1777, %v1889
  %1891 = vmatprep.mubr.bf16.mxu0 0
  %1892 = vmatmul.mubr.bf16.gmra.mrb[0].mxu0 %v1689
  %v1893 = vpop.f32.mrb[0].mxu0
  %v1894 = vadd.f32 %v1781, %v1893
  %v1895 = vpop.f32.mrb[0].mxu0
  %v1896 = vadd.f32 %v1783, %v1895
  %v1897 = vpop.f32.mrb[0].mxu0
  %v1898 = vadd.f32 %v1785, %v1897
  %v1899 = vpop.f32.mrb[0].mxu0
  %v1900 = vadd.f32 %v1787, %v1899
  %1901 = vmatprep.mubr.bf16.mxu0 0
  %1902 = vmatmul.mubr.bf16.gmra.mrb[0].mxu0 %v1692
  %v1903 = vpop.f32.mrb[0].mxu0
  %v1904 = vadd.f32 %v1791, %v1903
  %v1905 = vpop.f32.mrb[0].mxu0
  %v1906 = vadd.f32 %v1793, %v1905
  %v1907 = vpop.f32.mrb[0].mxu0
  %v1908 = vadd.f32 %v1795, %v1907
  %v1909 = vpop.f32.mrb[0].mxu0
  %v1910 = vadd.f32 %v1797, %v1909
  %1911 = vmatprep.mubr.bf16.mxu0 0
  %1912 = vmatmul.mubr.bf16.gmra.mrb[0].mxu0 %v1695
  %v1913 = vpop.f32.mrb[0].mxu0
  %v1914 = vadd.f32 %v1801, %v1913
  %v1915 = vpop.f32.mrb[0].mxu0
  %v1916 = vadd.f32 %v1803, %v1915
  %v1917 = vpop.f32.mrb[0].mxu0
  %v1918 = vadd.f32 %v1805, %v1917
  %v1919 = vpop.f32.mrb[0].mxu0
  %v1920 = vadd.f32 %v1807, %v1919
  %1921 = vdwg.mxu0
  %1922 = vmatprep.subr.bf16.mxu0 %v642
  %1923 = vmatpush1.bf16.msra.mxu0 %v641
  %1924 = vmatprep.subr.bf16.mxu0 %v647
  %1925 = vmatpush1.bf16.msra.mxu0 %v646
  %1926 = vmatprep.subr.bf16.mxu0 %v652
  %1927 = vmatpush1.bf16.msra.mxu0 %v651
  %1928 = vmatprep.subr.bf16.mxu0 %v657
  %1929 = vmatpush1.bf16.msra.mxu0 %v656
  %1930 = vmatprep.subr.bf16.mxu0 %v662
  %1931 = vmatpush1.bf16.msra.mxu0 %v661
  %1932 = vmatprep.subr.bf16.mxu0 %v667
  %1933 = vmatpush1.bf16.msra.mxu0 %v666
  %1934 = vmatprep.subr.bf16.mxu0 %v672
  %1935 = vmatpush1.bf16.msra.mxu0 %v671
  %1936 = vmatprep.subr.bf16.mxu0 %v677
  %1937 = vmatpush1.bf16.msra.mxu0 %v676
  %1938 = vmatprep.subr.bf16.mxu0 %v682
  %1939 = vmatpush1.bf16.msra.mxu0 %v681
  %1940 = vmatprep.subr.bf16.mxu0 %v687
  %1941 = vmatpush1.bf16.msra.mxu0 %v686
  %1942 = vmatprep.subr.bf16.mxu0 %v692
  %1943 = vmatpush1.bf16.msra.mxu0 %v691
  %1944 = vmatprep.subr.bf16.mxu0 %v697
  %1945 = vmatpush1.bf16.msra.mxu0 %v696
  %1946 = vmatprep.subr.bf16.mxu0 %v702
  %1947 = vmatpush1.bf16.msra.mxu0 %v701
  %1948 = vmatprep.subr.bf16.mxu0 %v707
  %1949 = vmatpush1.bf16.msra.mxu0 %v706
  %1950 = vmatprep.subr.bf16.mxu0 %v712
  %1951 = vmatpush1.bf16.msra.mxu0 %v711
  %1952 = vmatprep.subr.bf16.mxu0 %v717
  %1953 = vmatpush1.bf16.msra.mxu0 %v716
  %1954 = vmatprep.mubr.bf16.mxu0 %v1673
  %1955 = vmatmul.mubr.bf16.gmra.mrb[0].mxu0 %v1672
  %v1956 = vpop.f32.mrb[0].mxu0
  %v1957 = vadd.f32 0.0, %v1956
  %v1958 = vpop.f32.mrb[0].mxu0
  %v1959 = vadd.f32 0.0, %v1958
  %v1960 = vpop.f32.mrb[0].mxu0
  %v1961 = vadd.f32 0.0, %v1960
  %v1962 = vpop.f32.mrb[0].mxu0
  %v1963 = vadd.f32 0.0, %v1962
  %1964 = vmatprep.mubr.bf16.mxu0 %v1676
  %1965 = vmatmul.mubr.bf16.gmra.mrb[0].mxu0 %v1675
  %v1966 = vpop.f32.mrb[0].mxu0
  %v1967 = vadd.f32 0.0, %v1966
  %v1968 = vpop.f32.mrb[0].mxu0
  %v1969 = vadd.f32 0.0, %v1968
  %v1970 = vpop.f32.mrb[0].mxu0
  %v1971 = vadd.f32 0.0, %v1970
  %v1972 = vpop.f32.mrb[0].mxu0
  %v1973 = vadd.f32 0.0, %v1972
  %1974 = vmatprep.mubr.bf16.mxu0 %v1679
  %1975 = vmatmul.mubr.bf16.gmra.mrb[0].mxu0 %v1678
  %v1976 = vpop.f32.mrb[0].mxu0
  %v1977 = vadd.f32 0.0, %v1976
  %v1978 = vpop.f32.mrb[0].mxu0
  %v1979 = vadd.f32 0.0, %v1978
  %v1980 = vpop.f32.mrb[0].mxu0
  %v1981 = vadd.f32 0.0, %v1980
  %v1982 = vpop.f32.mrb[0].mxu0
  %v1983 = vadd.f32 0.0, %v1982
  %1984 = vmatprep.mubr.bf16.mxu0 %v1682
  %1985 = vmatmul.mubr.bf16.gmra.mrb[0].mxu0 %v1681
  %v1986 = vpop.f32.mrb[0].mxu0
  %v1987 = vadd.f32 0.0, %v1986
  %v1988 = vpop.f32.mrb[0].mxu0
  %v1989 = vadd.f32 0.0, %v1988
  %v1990 = vpop.f32.mrb[0].mxu0
  %v1991 = vadd.f32 0.0, %v1990
  %v1992 = vpop.f32.mrb[0].mxu0
  %v1993 = vadd.f32 0.0, %v1992
  %1994 = vmatprep.mubr.bf16.mxu0 %v1685
  %1995 = vmatmul.mubr.bf16.gmra.mrb[0].mxu0 %v1684
  %v1996 = vpop.f32.mrb[0].mxu0
  %v1997 = vadd.f32 0.0, %v1996
  %v1998 = vpop.f32.mrb[0].mxu0
  %v1999 = vadd.f32 0.0, %v1998
  %v2000 = vpop.f32.mrb[0].mxu0
  %v2001 = vadd.f32 0.0, %v2000
  %v2002 = vpop.f32.mrb[0].mxu0
  %v2003 = vadd.f32 0.0, %v2002
  %2004 = vmatprep.mubr.bf16.mxu0 %v1688
  %2005 = vmatmul.mubr.bf16.gmra.mrb[0].mxu0 %v1687
  %v2006 = vpop.f32.mrb[0].mxu0
  %v2007 = vadd.f32 0.0, %v2006
  %v2008 = vpop.f32.mrb[0].mxu0
  %v2009 = vadd.f32 0.0, %v2008
  %v2010 = vpop.f32.mrb[0].mxu0
  %v2011 = vadd.f32 0.0, %v2010
  %v2012 = vpop.f32.mrb[0].mxu0
  %v2013 = vadd.f32 0.0, %v2012
  %2014 = vmatprep.mubr.bf16.mxu0 %v1691
  %2015 = vmatmul.mubr.bf16.gmra.mrb[0].mxu0 %v1690
  %v2016 = vpop.f32.mrb[0].mxu0
  %v2017 = vadd.f32 0.0, %v2016
  %v2018 = vpop.f32.mrb[0].mxu0
  %v2019 = vadd.f32 0.0, %v2018
  %v2020 = vpop.f32.mrb[0].mxu0
  %v2021 = vadd.f32 0.0, %v2020
  %v2022 = vpop.f32.mrb[0].mxu0
  %v2023 = vadd.f32 0.0, %v2022
  %2024 = vmatprep.mubr.bf16.mxu0 %v1694
  %2025 = vmatmul.mubr.bf16.gmra.mrb[0].mxu0 %v1693
  %v2026 = vpop.f32.mrb[0].mxu0
  %v2027 = vadd.f32 0.0, %v2026
  %v2028 = vpop.f32.mrb[0].mxu0
  %v2029 = vadd.f32 0.0, %v2028
  %v2030 = vpop.f32.mrb[0].mxu0
  %v2031 = vadd.f32 0.0, %v2030
  %v2032 = vpop.f32.mrb[0].mxu0
  %v2033 = vadd.f32 0.0, %v2032
  %2034 = vdwg.mxu0
  %2035 = vmatprep.subr.bf16.mxu0 %v722
  %2036 = vmatpush1.bf16.msra.mxu0 %v721
  %2037 = vmatprep.subr.bf16.mxu0 %v727
  %2038 = vmatpush1.bf16.msra.mxu0 %v726
  %2039 = vmatprep.subr.bf16.mxu0 %v732
  %2040 = vmatpush1.bf16.msra.mxu0 %v731
  %2041 = vmatprep.subr.bf16.mxu0 %v737
  %2042 = vmatpush1.bf16.msra.mxu0 %v736
  %2043 = vmatprep.subr.bf16.mxu0 %v742
  %2044 = vmatpush1.bf16.msra.mxu0 %v741
  %2045 = vmatprep.subr.bf16.mxu0 %v747
  %2046 = vmatpush1.bf16.msra.mxu0 %v746
  %2047 = vmatprep.subr.bf16.mxu0 %v752
  %2048 = vmatpush1.bf16.msra.mxu0 %v751
  %2049 = vmatprep.subr.bf16.mxu0 %v757
  %2050 = vmatpush1.bf16.msra.mxu0 %v756
  %2051 = vmatprep.subr.bf16.mxu0 0
  %2052 = vmatpush1.bf16.msra.mxu0 0
  %2053 = vmatprep.subr.bf16.mxu0 0
  %2054 = vmatpush1.bf16.msra.mxu0 0
  %2055 = vmatprep.subr.bf16.mxu0 0
  %2056 = vmatpush1.bf16.msra.mxu0 0
  %2057 = vmatprep.subr.bf16.mxu0 0
  %2058 = vmatpush1.bf16.msra.mxu0 0
  %2059 = vmatprep.subr.bf16.mxu0 0
  %2060 = vmatpush1.bf16.msra.mxu0 0
  %2061 = vmatprep.subr.bf16.mxu0 0
  %2062 = vmatpush1.bf16.msra.mxu0 0
  %2063 = vmatprep.subr.bf16.mxu0 0
  %2064 = vmatpush1.bf16.msra.mxu0 0
  %2065 = vmatprep.subr.bf16.mxu0 0
  %2066 = vmatpush1.bf16.msra.mxu0 0
  %2067 = vmatprep.mubr.bf16.mxu0 0
  %2068 = vmatmul.mubr.bf16.gmra.mrb[0].mxu0 %v1674
  %v2069 = vpop.f32.mrb[0].mxu0
  %v2070 = vadd.f32 %v1957, %v2069
  %v2071 = vpop.f32.mrb[0].mxu0
  %v2072 = vadd.f32 %v1959, %v2071
  %v2073 = vpop.f32.mrb[0].mxu0
  %v2074 = vadd.f32 %v1961, %v2073
  %v2075 = vpop.f32.mrb[0].mxu0
  %v2076 = vadd.f32 %v1963, %v2075
  %2077 = vmatprep.mubr.bf16.mxu0 0
  %2078 = vmatmul.mubr.bf16.gmra.mrb[0].mxu0 %v1677
  %v2079 = vpop.f32.mrb[0].mxu0
  %v2080 = vadd.f32 %v1967, %v2079
  %v2081 = vpop.f32.mrb[0].mxu0
  %v2082 = vadd.f32 %v1969, %v2081
  %v2083 = vpop.f32.mrb[0].mxu0
  %v2084 = vadd.f32 %v1971, %v2083
  %v2085 = vpop.f32.mrb[0].mxu0
  %v2086 = vadd.f32 %v1973, %v2085
  %2087 = vmatprep.mubr.bf16.mxu0 0
  %2088 = vmatmul.mubr.bf16.gmra.mrb[0].mxu0 %v1680
  %v2089 = vpop.f32.mrb[0].mxu0
  %v2090 = vadd.f32 %v1977, %v2089
  %v2091 = vpop.f32.mrb[0].mxu0
  %v2092 = vadd.f32 %v1979, %v2091
  %v2093 = vpop.f32.mrb[0].mxu0
  %v2094 = vadd.f32 %v1981, %v2093
  %v2095 = vpop.f32.mrb[0].mxu0
  %v2096 = vadd.f32 %v1983, %v2095
  %2097 = vmatprep.mubr.bf16.mxu0 0
  %2098 = vmatmul.mubr.bf16.gmra.mrb[0].mxu0 %v1683
  %v2099 = vpop.f32.mrb[0].mxu0
  %v2100 = vadd.f32 %v1987, %v2099
  %v2101 = vpop.f32.mrb[0].mxu0
  %v2102 = vadd.f32 %v1989, %v2101
  %v2103 = vpop.f32.mrb[0].mxu0
  %v2104 = vadd.f32 %v1991, %v2103
  %v2105 = vpop.f32.mrb[0].mxu0
  %v2106 = vadd.f32 %v1993, %v2105
  %2107 = vmatprep.mubr.bf16.mxu0 0
  %2108 = vmatmul.mubr.bf16.gmra.mrb[0].mxu0 %v1686
  %v2109 = vpop.f32.mrb[0].mxu0
  %v2110 = vadd.f32 %v1997, %v2109
  %v2111 = vpop.f32.mrb[0].mxu0
  %v2112 = vadd.f32 %v1999, %v2111
  %v2113 = vpop.f32.mrb[0].mxu0
  %v2114 = vadd.f32 %v2001, %v2113
  %v2115 = vpop.f32.mrb[0].mxu0
  %v2116 = vadd.f32 %v2003, %v2115
  %2117 = vmatprep.mubr.bf16.mxu0 0
  %2118 = vmatmul.mubr.bf16.gmra.mrb[0].mxu0 %v1689
  %v2119 = vpop.f32.mrb[0].mxu0
  %v2120 = vadd.f32 %v2007, %v2119
  %v2121 = vpop.f32.mrb[0].mxu0
  %v2122 = vadd.f32 %v2009, %v2121
  %v2123 = vpop.f32.mrb[0].mxu0
  %v2124 = vadd.f32 %v2011, %v2123
  %v2125 = vpop.f32.mrb[0].mxu0
  %v2126 = vadd.f32 %v2013, %v2125
  %2127 = vmatprep.mubr.bf16.mxu0 0
  %2128 = vmatmul.mubr.bf16.gmra.mrb[0].mxu0 %v1692
  %v2129 = vpop.f32.mrb[0].mxu0
  %v2130 = vadd.f32 %v2017, %v2129
  %v2131 = vpop.f32.mrb[0].mxu0
  %v2132 = vadd.f32 %v2019, %v2131
  %v2133 = vpop.f32.mrb[0].mxu0
  %v2134 = vadd.f32 %v2021, %v2133
  %v2135 = vpop.f32.mrb[0].mxu0
  %v2136 = vadd.f32 %v2023, %v2135
  %2137 = vmatprep.mubr.bf16.mxu0 0
  %2138 = vmatmul.mubr.bf16.gmra.mrb[0].mxu0 %v1695
  %v2139 = vpop.f32.mrb[0].mxu0
  %v2140 = vadd.f32 %v2027, %v2139
  %v2141 = vpop.f32.mrb[0].mxu0
  %v2142 = vadd.f32 %v2029, %v2141
  %v2143 = vpop.f32.mrb[0].mxu0
  %v2144 = vadd.f32 %v2031, %v2143
  %v2145 = vpop.f32.mrb[0].mxu0
  %v2146 = vadd.f32 %v2033, %v2145
  %2147 = vdwg.mxu0
  %2148 = vmatprep.subr.bf16.mxu0 0
  %2149 = vmatpush1.bf16.msra.mxu0 %v643
  %2150 = vmatprep.subr.bf16.mxu0 0
  %2151 = vmatpush1.bf16.msra.mxu0 %v648
  %2152 = vmatprep.subr.bf16.mxu0 0
  %2153 = vmatpush1.bf16.msra.mxu0 %v653
  %2154 = vmatprep.subr.bf16.mxu0 0
  %2155 = vmatpush1.bf16.msra.mxu0 %v658
  %2156 = vmatprep.subr.bf16.mxu0 0
  %2157 = vmatpush1.bf16.msra.mxu0 %v663
  %2158 = vmatprep.subr.bf16.mxu0 0
  %2159 = vmatpush1.bf16.msra.mxu0 %v668
  %2160 = vmatprep.subr.bf16.mxu0 0
  %2161 = vmatpush1.bf16.msra.mxu0 %v673
  %2162 = vmatprep.subr.bf16.mxu0 0
  %2163 = vmatpush1.bf16.msra.mxu0 %v678
  %2164 = vmatprep.subr.bf16.mxu0 0
  %2165 = vmatpush1.bf16.msra.mxu0 %v683
  %2166 = vmatprep.subr.bf16.mxu0 0
  %2167 = vmatpush1.bf16.msra.mxu0 %v688
  %2168 = vmatprep.subr.bf16.mxu0 0
  %2169 = vmatpush1.bf16.msra.mxu0 %v693
  %2170 = vmatprep.subr.bf16.mxu0 0
  %2171 = vmatpush1.bf16.msra.mxu0 %v698
  %2172 = vmatprep.subr.bf16.mxu0 0
  %2173 = vmatpush1.bf16.msra.mxu0 %v703
  %2174 = vmatprep.subr.bf16.mxu0 0
  %2175 = vmatpush1.bf16.msra.mxu0 %v708
  %2176 = vmatprep.subr.bf16.mxu0 0
  %2177 = vmatpush1.bf16.msra.mxu0 %v713
  %2178 = vmatprep.subr.bf16.mxu0 0
  %2179 = vmatpush1.bf16.msra.mxu0 %v718
  %2180 = vmatprep.mubr.bf16.mxu0 %v1673
  %2181 = vmatmul.mubr.bf16.gmra.mrb[0].mxu0 %v1672
  %v2182 = vpop.f32.mrb[0].mxu0
  %v2183 = vadd.f32 0.0, %v2182
  %v2184 = vpop.f32.mrb[0].mxu0
  %v2185 = vpop.f32.mrb[0].mxu0
  %v2186 = vadd.f32 0.0, %v2185
  %v2187 = vpop.f32.mrb[0].mxu0
  %2188 = vmatprep.mubr.bf16.mxu0 %v1676
  %2189 = vmatmul.mubr.bf16.gmra.mrb[0].mxu0 %v1675
  %v2190 = vpop.f32.mrb[0].mxu0
  %v2191 = vadd.f32 0.0, %v2190
  %v2192 = vpop.f32.mrb[0].mxu0
  %v2193 = vpop.f32.mrb[0].mxu0
  %v2194 = vadd.f32 0.0, %v2193
  %v2195 = vpop.f32.mrb[0].mxu0
  %2196 = vmatprep.mubr.bf16.mxu0 %v1679
  %2197 = vmatmul.mubr.bf16.gmra.mrb[0].mxu0 %v1678
  %v2198 = vpop.f32.mrb[0].mxu0
  %v2199 = vadd.f32 0.0, %v2198
  %v2200 = vpop.f32.mrb[0].mxu0
  %v2201 = vpop.f32.mrb[0].mxu0
  %v2202 = vadd.f32 0.0, %v2201
  %v2203 = vpop.f32.mrb[0].mxu0
  %2204 = vmatprep.mubr.bf16.mxu0 %v1682
  %2205 = vmatmul.mubr.bf16.gmra.mrb[0].mxu0 %v1681
  %v2206 = vpop.f32.mrb[0].mxu0
  %v2207 = vadd.f32 0.0, %v2206
  %v2208 = vpop.f32.mrb[0].mxu0
  %v2209 = vpop.f32.mrb[0].mxu0
  %v2210 = vadd.f32 0.0, %v2209
  %v2211 = vpop.f32.mrb[0].mxu0
  %2212 = vmatprep.mubr.bf16.mxu0 %v1685
  %2213 = vmatmul.mubr.bf16.gmra.mrb[0].mxu0 %v1684
  %v2214 = vpop.f32.mrb[0].mxu0
  %v2215 = vadd.f32 0.0, %v2214
  %v2216 = vpop.f32.mrb[0].mxu0
  %v2217 = vpop.f32.mrb[0].mxu0
  %v2218 = vadd.f32 0.0, %v2217
  %v2219 = vpop.f32.mrb[0].mxu0
  %2220 = vmatprep.mubr.bf16.mxu0 %v1688
  %2221 = vmatmul.mubr.bf16.gmra.mrb[0].mxu0 %v1687
  %v2222 = vpop.f32.mrb[0].mxu0
  %v2223 = vadd.f32 0.0, %v2222
  %v2224 = vpop.f32.mrb[0].mxu0
  %v2225 = vpop.f32.mrb[0].mxu0
  %v2226 = vadd.f32 0.0, %v2225
  %v2227 = vpop.f32.mrb[0].mxu0
  %2228 = vmatprep.mubr.bf16.mxu0 %v1691
  %2229 = vmatmul.mubr.bf16.gmra.mrb[0].mxu0 %v1690
  %v2230 = vpop.f32.mrb[0].mxu0
  %v2231 = vadd.f32 0.0, %v2230
  %v2232 = vpop.f32.mrb[0].mxu0
  %v2233 = vpop.f32.mrb[0].mxu0
  %v2234 = vadd.f32 0.0, %v2233
  %v2235 = vpop.f32.mrb[0].mxu0
  %2236 = vmatprep.mubr.bf16.mxu0 %v1694
  %2237 = vmatmul.mubr.bf16.gmra.mrb[0].mxu0 %v1693
  %v2238 = vpop.f32.mrb[0].mxu0
  %v2239 = vadd.f32 0.0, %v2238
  %v2240 = vpop.f32.mrb[0].mxu0
  %v2241 = vpop.f32.mrb[0].mxu0
  %v2242 = vadd.f32 0.0, %v2241
  %v2243 = vpop.f32.mrb[0].mxu0
  %2244 = vdwg.mxu0
  %2245 = vmatprep.subr.bf16.mxu0 0
  %2246 = vmatpush1.bf16.msra.mxu0 %v723
  %2247 = vmatprep.subr.bf16.mxu0 0
  %2248 = vmatpush1.bf16.msra.mxu0 %v728
  %2249 = vmatprep.subr.bf16.mxu0 0
  %2250 = vmatpush1.bf16.msra.mxu0 %v733
  %2251 = vmatprep.subr.bf16.mxu0 0
  %2252 = vmatpush1.bf16.msra.mxu0 %v738
  %2253 = vmatprep.subr.bf16.mxu0 0
  %2254 = vmatpush1.bf16.msra.mxu0 %v743
  %2255 = vmatprep.subr.bf16.mxu0 0
  %2256 = vmatpush1.bf16.msra.mxu0 %v748
  %2257 = vmatprep.subr.bf16.mxu0 0
  %2258 = vmatpush1.bf16.msra.mxu0 %v753
  %2259 = vmatprep.subr.bf16.mxu0 0
  %2260 = vmatpush1.bf16.msra.mxu0 %v758
  %2261 = vmatprep.subr.bf16.mxu0 0
  %2262 = vmatpush1.bf16.msra.mxu0 0
  %2263 = vmatprep.subr.bf16.mxu0 0
  %2264 = vmatpush1.bf16.msra.mxu0 0
  %2265 = vmatprep.subr.bf16.mxu0 0
  %2266 = vmatpush1.bf16.msra.mxu0 0
  %2267 = vmatprep.subr.bf16.mxu0 0
  %2268 = vmatpush1.bf16.msra.mxu0 0
  %2269 = vmatprep.subr.bf16.mxu0 0
  %2270 = vmatpush1.bf16.msra.mxu0 0
  %2271 = vmatprep.subr.bf16.mxu0 0
  %2272 = vmatpush1.bf16.msra.mxu0 0
  %2273 = vmatprep.subr.bf16.mxu0 0
  %2274 = vmatpush1.bf16.msra.mxu0 0
  %2275 = vmatprep.subr.bf16.mxu0 0
  %2276 = vmatpush1.bf16.msra.mxu0 0
  %2277 = vmatprep.mubr.bf16.mxu0 0
  %2278 = vmatmul.mubr.bf16.gmra.mrb[0].mxu0 %v1674
  %v2279 = vpop.f32.mrb[0].mxu0
  %v2280 = vadd.f32 %v2183, %v2279
  %v2281 = vpop.f32.mrb[0].mxu0
  %v2282 = vpop.f32.mrb[0].mxu0
  %v2283 = vadd.f32 %v2186, %v2282
  %v2284 = vpop.f32.mrb[0].mxu0
  %2285 = vmatprep.mubr.bf16.mxu0 0
  %2286 = vmatmul.mubr.bf16.gmra.mrb[0].mxu0 %v1677
  %v2287 = vpop.f32.mrb[0].mxu0
  %v2288 = vadd.f32 %v2191, %v2287
  %v2289 = vpop.f32.mrb[0].mxu0
  %v2290 = vpop.f32.mrb[0].mxu0
  %v2291 = vadd.f32 %v2194, %v2290
  %v2292 = vpop.f32.mrb[0].mxu0
  %2293 = vmatprep.mubr.bf16.mxu0 0
  %2294 = vmatmul.mubr.bf16.gmra.mrb[0].mxu0 %v1680
  %v2295 = vpop.f32.mrb[0].mxu0
  %v2296 = vadd.f32 %v2199, %v2295
  %v2297 = vpop.f32.mrb[0].mxu0
  %v2298 = vpop.f32.mrb[0].mxu0
  %v2299 = vadd.f32 %v2202, %v2298
  %v2300 = vpop.f32.mrb[0].mxu0
  %2301 = vmatprep.mubr.bf16.mxu0 0
  %2302 = vmatmul.mubr.bf16.gmra.mrb[0].mxu0 %v1683
  %v2303 = vpop.f32.mrb[0].mxu0
  %v2304 = vadd.f32 %v2207, %v2303
  %v2305 = vpop.f32.mrb[0].mxu0
  %v2306 = vpop.f32.mrb[0].mxu0
  %v2307 = vadd.f32 %v2210, %v2306
  %v2308 = vpop.f32.mrb[0].mxu0
  %2309 = vmatprep.mubr.bf16.mxu0 0
  %2310 = vmatmul.mubr.bf16.gmra.mrb[0].mxu0 %v1686
  %v2311 = vpop.f32.mrb[0].mxu0
  %v2312 = vadd.f32 %v2215, %v2311
  %v2313 = vpop.f32.mrb[0].mxu0
  %v2314 = vpop.f32.mrb[0].mxu0
  %v2315 = vadd.f32 %v2218, %v2314
  %v2316 = vpop.f32.mrb[0].mxu0
  %2317 = vmatprep.mubr.bf16.mxu0 0
  %2318 = vmatmul.mubr.bf16.gmra.mrb[0].mxu0 %v1689
  %v2319 = vpop.f32.mrb[0].mxu0
  %v2320 = vadd.f32 %v2223, %v2319
  %v2321 = vpop.f32.mrb[0].mxu0
  %v2322 = vpop.f32.mrb[0].mxu0
  %v2323 = vadd.f32 %v2226, %v2322
  %v2324 = vpop.f32.mrb[0].mxu0
  %2325 = vmatprep.mubr.bf16.mxu0 0
  %2326 = vmatmul.mubr.bf16.gmra.mrb[0].mxu0 %v1692
  %v2327 = vpop.f32.mrb[0].mxu0
  %v2328 = vadd.f32 %v2231, %v2327
  %v2329 = vpop.f32.mrb[0].mxu0
  %v2330 = vpop.f32.mrb[0].mxu0
  %v2331 = vadd.f32 %v2234, %v2330
  %v2332 = vpop.f32.mrb[0].mxu0
  %2333 = vmatprep.mubr.bf16.mxu0 0
  %2334 = vmatmul.mubr.bf16.gmra.mrb[0].mxu0 %v1695
  %v2335 = vpop.f32.mrb[0].mxu0
  %v2336 = vadd.f32 %v2239, %v2335
  %v2337 = vpop.f32.mrb[0].mxu0
  %v2338 = vpop.f32.mrb[0].mxu0
  %v2339 = vadd.f32 %v2242, %v2338
  %v2340 = vpop.f32.mrb[0].mxu0
  %2341 = vdwg.mxu0
  %v2342 = vmax.f32 %v1027, %v1844
  %v2343 = vmax.f32 %v1029, %v1846
  %v2344 = vmax.f32 %v1253, %v2070
  %v2345 = vmax.f32 %v1255, %v2072
  %v2346 = vmax.f32 %v1463, %v2280
  %v2347 = vmax.f32 %v1031, %v1848
  %v2348 = vmax.f32 %v1033, %v1850
  %v2349 = vmax.f32 %v1257, %v2074
  %v2350 = vmax.f32 %v1259, %v2076
  %v2351 = vmax.f32 %v1466, %v2283
  %v2352 = vmax.f32 %v1037, %v1854
  %v2353 = vmax.f32 %v1039, %v1856
  %v2354 = vmax.f32 %v1263, %v2080
  %v2355 = vmax.f32 %v1265, %v2082
  %v2356 = vmax.f32 %v1471, %v2288
  %v2357 = vmax.f32 %v1041, %v1858
  %v2358 = vmax.f32 %v1043, %v1860
  %v2359 = vmax.f32 %v1267, %v2084
  %v2360 = vmax.f32 %v1269, %v2086
  %v2361 = vmax.f32 %v1474, %v2291
  %v2362 = vmax.f32 %v1047, %v1864
  %v2363 = vmax.f32 %v1049, %v1866
  %v2364 = vmax.f32 %v1273, %v2090
  %v2365 = vmax.f32 %v1275, %v2092
  %v2366 = vmax.f32 %v1479, %v2296
  %v2367 = vmax.f32 %v1051, %v1868
  %v2368 = vmax.f32 %v1053, %v1870
  %v2369 = vmax.f32 %v1277, %v2094
  %v2370 = vmax.f32 %v1279, %v2096
  %v2371 = vmax.f32 %v1482, %v2299
  %v2372 = vmax.f32 %v1057, %v1874
  %v2373 = vmax.f32 %v1059, %v1876
  %v2374 = vmax.f32 %v1283, %v2100
  %v2375 = vmax.f32 %v1285, %v2102
  %v2376 = vmax.f32 %v1487, %v2304
  %v2377 = vmax.f32 %v1061, %v1878
  %v2378 = vmax.f32 %v1063, %v1880
  %v2379 = vmax.f32 %v1287, %v2104
  %v2380 = vmax.f32 %v1289, %v2106
  %v2381 = vmax.f32 %v1490, %v2307
  %v2382 = vmax.f32 %v1067, %v1884
  %v2383 = vmax.f32 %v1069, %v1886
  %v2384 = vmax.f32 %v1293, %v2110
  %v2385 = vmax.f32 %v1295, %v2112
  %v2386 = vmax.f32 %v1495, %v2312
  %v2387 = vmax.f32 %v1071, %v1888
  %v2388 = vmax.f32 %v1073, %v1890
  %v2389 = vmax.f32 %v1297, %v2114
  %v2390 = vmax.f32 %v1299, %v2116
  %v2391 = vmax.f32 %v1498, %v2315
  %v2392 = vmax.f32 %v1077, %v1894
  %v2393 = vmax.f32 %v1079, %v1896
  %v2394 = vmax.f32 %v1303, %v2120
  %v2395 = vmax.f32 %v1305, %v2122
  %v2396 = vmax.f32 %v1503, %v2320
  %v2397 = vmax.f32 %v1081, %v1898
  %v2398 = vmax.f32 %v1083, %v1900
  %v2399 = vmax.f32 %v1307, %v2124
  %v2400 = vmax.f32 %v1309, %v2126
  %v2401 = vmax.f32 %v1506, %v2323
  %v2402 = vmax.f32 %v1087, %v1904
  %v2403 = vmax.f32 %v1089, %v1906
  %v2404 = vmax.f32 %v1313, %v2130
  %v2405 = vmax.f32 %v1315, %v2132
  %v2406 = vmax.f32 %v1511, %v2328
  %v2407 = vmax.f32 %v1091, %v1908
  %v2408 = vmax.f32 %v1093, %v1910
  %v2409 = vmax.f32 %v1317, %v2134
  %v2410 = vmax.f32 %v1319, %v2136
  %v2411 = vmax.f32 %v1514, %v2331
  %v2412 = vmax.f32 %v1097, %v1914
  %v2413 = vmax.f32 %v1099, %v1916
  %v2414 = vmax.f32 %v1323, %v2140
  %v2415 = vmax.f32 %v1325, %v2142
  %v2416 = vmax.f32 %v1519, %v2336
  %v2417 = vmax.f32 %v1101, %v1918
  %v2418 = vmax.f32 %v1103, %v1920
  %v2419 = vmax.f32 %v1327, %v2144
  %v2420 = vmax.f32 %v1329, %v2146
  %v2421 = vmax.f32 %v1522, %v2339
  %v2422 = vld [vmem:[%s2] sm:$0x1f]
  %v2424 = vlaneseq
  %v2425 = vshrl.u32 %v2424, 7
  %v2426 = vsub.s32 0, %v2425
  %v2427 = vrot.slane %v2422, %v2426
  %v2428 = vlaneseq
  %v2429 = vshrl.u32 %v2428, 7
  %v2430 = vsub.s32 1, %v2429
  %v2431 = vrot.slane %v2422, %v2430
  %v2432 = vlaneseq
  %v2433 = vshrl.u32 %v2432, 7
  %v2434 = vsub.s32 2, %v2433
  %v2435 = vrot.slane %v2422, %v2434
  %v2436 = vlaneseq
  %v2437 = vshrl.u32 %v2436, 7
  %v2438 = vsub.s32 3, %v2437
  %v2439 = vrot.slane %v2422, %v2438
  %v2440 = vlaneseq
  %v2441 = vshrl.u32 %v2440, 7
  %v2442 = vsub.s32 4, %v2441
  %v2443 = vrot.slane %v2422, %v2442
  %v2449 = vadd.f32 %v2342, %v2427
  %v2450 = vadd.f32 %v2343, %v2431
  %v2451 = vadd.f32 %v2344, %v2435
  %v2452 = vadd.f32 %v2345, %v2439
  %v2453 = vadd.f32 %v2346, %v2443
  %v2454 = vadd.f32 %v2347, %v2427
  %v2455 = vadd.f32 %v2348, %v2431
  %v2456 = vadd.f32 %v2349, %v2435
  %v2457 = vadd.f32 %v2350, %v2439
  %v2458 = vadd.f32 %v2351, %v2443
  %v2459 = vadd.f32 %v2352, %v2427
  %v2460 = vadd.f32 %v2353, %v2431
  %v2461 = vadd.f32 %v2354, %v2435
  %v2462 = vadd.f32 %v2355, %v2439
  %v2463 = vadd.f32 %v2356, %v2443
  %v2464 = vadd.f32 %v2357, %v2427
  %v2465 = vadd.f32 %v2358, %v2431
  %v2466 = vadd.f32 %v2359, %v2435
  %v2467 = vadd.f32 %v2360, %v2439
  %v2468 = vadd.f32 %v2361, %v2443
  %v2469 = vadd.f32 %v2362, %v2427
  %v2470 = vadd.f32 %v2363, %v2431
  %v2471 = vadd.f32 %v2364, %v2435
  %v2472 = vadd.f32 %v2365, %v2439
  %v2473 = vadd.f32 %v2366, %v2443
  %v2474 = vadd.f32 %v2367, %v2427
  %v2475 = vadd.f32 %v2368, %v2431
  %v2476 = vadd.f32 %v2369, %v2435
  %v2477 = vadd.f32 %v2370, %v2439
  %v2478 = vadd.f32 %v2371, %v2443
  %v2479 = vadd.f32 %v2372, %v2427
  %v2480 = vadd.f32 %v2373, %v2431
  %v2481 = vadd.f32 %v2374, %v2435
  %v2482 = vadd.f32 %v2375, %v2439
  %v2483 = vadd.f32 %v2376, %v2443
  %v2484 = vadd.f32 %v2377, %v2427
  %v2485 = vadd.f32 %v2378, %v2431
  %v2486 = vadd.f32 %v2379, %v2435
  %v2487 = vadd.f32 %v2380, %v2439
  %v2488 = vadd.f32 %v2381, %v2443
  %v2489 = vadd.f32 %v2382, %v2427
  %v2490 = vadd.f32 %v2383, %v2431
  %v2491 = vadd.f32 %v2384, %v2435
  %v2492 = vadd.f32 %v2385, %v2439
  %v2493 = vadd.f32 %v2386, %v2443
  %v2494 = vadd.f32 %v2387, %v2427
  %v2495 = vadd.f32 %v2388, %v2431
  %v2496 = vadd.f32 %v2389, %v2435
  %v2497 = vadd.f32 %v2390, %v2439
  %v2498 = vadd.f32 %v2391, %v2443
  %v2499 = vadd.f32 %v2392, %v2427
  %v2500 = vadd.f32 %v2393, %v2431
  %v2501 = vadd.f32 %v2394, %v2435
  %v2502 = vadd.f32 %v2395, %v2439
  %v2503 = vadd.f32 %v2396, %v2443
  %v2504 = vadd.f32 %v2397, %v2427
  %v2505 = vadd.f32 %v2398, %v2431
  %v2506 = vadd.f32 %v2399, %v2435
  %v2507 = vadd.f32 %v2400, %v2439
  %v2508 = vadd.f32 %v2401, %v2443
  %v2509 = vadd.f32 %v2402, %v2427
  %v2510 = vadd.f32 %v2403, %v2431
  %v2511 = vadd.f32 %v2404, %v2435
  %v2512 = vadd.f32 %v2405, %v2439
  %v2513 = vadd.f32 %v2406, %v2443
  %v2514 = vadd.f32 %v2407, %v2427
  %v2515 = vadd.f32 %v2408, %v2431
  %v2516 = vadd.f32 %v2409, %v2435
  %v2517 = vadd.f32 %v2410, %v2439
  %v2518 = vadd.f32 %v2411, %v2443
  %v2519 = vadd.f32 %v2412, %v2427
  %v2520 = vadd.f32 %v2413, %v2431
  %v2521 = vadd.f32 %v2414, %v2435
  %v2522 = vadd.f32 %v2415, %v2439
  %v2523 = vadd.f32 %v2416, %v2443
  %v2524 = vadd.f32 %v2417, %v2427
  %v2525 = vadd.f32 %v2418, %v2431
  %v2526 = vadd.f32 %v2419, %v2435
  %v2527 = vadd.f32 %v2420, %v2439
  %v2528 = vadd.f32 %v2421, %v2443
  %v2529 = vmax.f32 %v2449, 0.0
  %v2530 = vmax.f32 %v2450, 0.0
  %v2531 = vmax.f32 %v2451, 0.0
  %v2532 = vmax.f32 %v2452, 0.0
  %v2533 = vmax.f32 %v2453, 0.0
  %v2534 = vmax.f32 %v2454, 0.0
  %v2535 = vmax.f32 %v2455, 0.0
  %v2536 = vmax.f32 %v2456, 0.0
  %v2537 = vmax.f32 %v2457, 0.0
  %v2538 = vmax.f32 %v2458, 0.0
  %v2539 = vmax.f32 %v2459, 0.0
  %v2540 = vmax.f32 %v2460, 0.0
  %v2541 = vmax.f32 %v2461, 0.0
  %v2542 = vmax.f32 %v2462, 0.0
  %v2543 = vmax.f32 %v2463, 0.0
  %v2544 = vmax.f32 %v2464, 0.0
  %v2545 = vmax.f32 %v2465, 0.0
  %v2546 = vmax.f32 %v2466, 0.0
  %v2547 = vmax.f32 %v2467, 0.0
  %v2548 = vmax.f32 %v2468, 0.0
  %v2549 = vmax.f32 %v2469, 0.0
  %v2550 = vmax.f32 %v2470, 0.0
  %v2551 = vmax.f32 %v2471, 0.0
  %v2552 = vmax.f32 %v2472, 0.0
  %v2553 = vmax.f32 %v2473, 0.0
  %v2554 = vmax.f32 %v2474, 0.0
  %v2555 = vmax.f32 %v2475, 0.0
  %v2556 = vmax.f32 %v2476, 0.0
  %v2557 = vmax.f32 %v2477, 0.0
  %v2558 = vmax.f32 %v2478, 0.0
  %v2559 = vmax.f32 %v2479, 0.0
  %v2560 = vmax.f32 %v2480, 0.0
  %v2561 = vmax.f32 %v2481, 0.0
  %v2562 = vmax.f32 %v2482, 0.0
  %v2563 = vmax.f32 %v2483, 0.0
  %v2564 = vmax.f32 %v2484, 0.0
  %v2565 = vmax.f32 %v2485, 0.0
  %v2566 = vmax.f32 %v2486, 0.0
  %v2567 = vmax.f32 %v2487, 0.0
  %v2568 = vmax.f32 %v2488, 0.0
  %v2569 = vmax.f32 %v2489, 0.0
  %v2570 = vmax.f32 %v2490, 0.0
  %v2571 = vmax.f32 %v2491, 0.0
  %v2572 = vmax.f32 %v2492, 0.0
  %v2573 = vmax.f32 %v2493, 0.0
  %v2574 = vmax.f32 %v2494, 0.0
  %v2575 = vmax.f32 %v2495, 0.0
  %v2576 = vmax.f32 %v2496, 0.0
  %v2577 = vmax.f32 %v2497, 0.0
  %v2578 = vmax.f32 %v2498, 0.0
  %v2579 = vmax.f32 %v2499, 0.0
  %v2580 = vmax.f32 %v2500, 0.0
  %v2581 = vmax.f32 %v2501, 0.0
  %v2582 = vmax.f32 %v2502, 0.0
  %v2583 = vmax.f32 %v2503, 0.0
  %v2584 = vmax.f32 %v2504, 0.0
  %v2585 = vmax.f32 %v2505, 0.0
  %v2586 = vmax.f32 %v2506, 0.0
  %v2587 = vmax.f32 %v2507, 0.0
  %v2588 = vmax.f32 %v2508, 0.0
  %v2589 = vmax.f32 %v2509, 0.0
  %v2590 = vmax.f32 %v2510, 0.0
  %v2591 = vmax.f32 %v2511, 0.0
  %v2592 = vmax.f32 %v2512, 0.0
  %v2593 = vmax.f32 %v2513, 0.0
  %v2594 = vmax.f32 %v2514, 0.0
  %v2595 = vmax.f32 %v2515, 0.0
  %v2596 = vmax.f32 %v2516, 0.0
  %v2597 = vmax.f32 %v2517, 0.0
  %v2598 = vmax.f32 %v2518, 0.0
  %v2599 = vmax.f32 %v2519, 0.0
  %v2600 = vmax.f32 %v2520, 0.0
  %v2601 = vmax.f32 %v2521, 0.0
  %v2602 = vmax.f32 %v2522, 0.0
  %v2603 = vmax.f32 %v2523, 0.0
  %v2604 = vmax.f32 %v2524, 0.0
  %v2605 = vmax.f32 %v2525, 0.0
  %v2606 = vmax.f32 %v2526, 0.0
  %v2607 = vmax.f32 %v2527, 0.0
  %v2608 = vmax.f32 %v2528, 0.0
  %v2609 = vpack.c.bf16 %v2534, %v2529
  %v2610 = vpack.c.bf16 %v2535, %v2530
  %v2611 = vpack.c.bf16 %v2536, %v2531
  %v2612 = vpack.c.bf16 %v2537, %v2532
  %v2613 = vpack.c.bf16 %v2538, %v2533
  %v2614 = vpack.c.bf16 %v2544, %v2539
  %v2615 = vpack.c.bf16 %v2545, %v2540
  %v2616 = vpack.c.bf16 %v2546, %v2541
  %v2617 = vpack.c.bf16 %v2547, %v2542
  %v2618 = vpack.c.bf16 %v2548, %v2543
  %v2619 = vpack.c.bf16 %v2554, %v2549
  %v2620 = vpack.c.bf16 %v2555, %v2550
  %v2621 = vpack.c.bf16 %v2556, %v2551
  %v2622 = vpack.c.bf16 %v2557, %v2552
  %v2623 = vpack.c.bf16 %v2558, %v2553
  %v2624 = vpack.c.bf16 %v2564, %v2559
  %v2625 = vpack.c.bf16 %v2565, %v2560
  %v2626 = vpack.c.bf16 %v2566, %v2561
  %v2627 = vpack.c.bf16 %v2567, %v2562
  %v2628 = vpack.c.bf16 %v2568, %v2563
  %v2629 = vpack.c.bf16 %v2574, %v2569
  %v2630 = vpack.c.bf16 %v2575, %v2570
  %v2631 = vpack.c.bf16 %v2576, %v2571
  %v2632 = vpack.c.bf16 %v2577, %v2572
  %v2633 = vpack.c.bf16 %v2578, %v2573
  %v2634 = vpack.c.bf16 %v2584, %v2579
  %v2635 = vpack.c.bf16 %v2585, %v2580
  %v2636 = vpack.c.bf16 %v2586, %v2581
  %v2637 = vpack.c.bf16 %v2587, %v2582
  %v2638 = vpack.c.bf16 %v2588, %v2583
  %v2639 = vpack.c.bf16 %v2594, %v2589
  %v2640 = vpack.c.bf16 %v2595, %v2590
  %v2641 = vpack.c.bf16 %v2596, %v2591
  %v2642 = vpack.c.bf16 %v2597, %v2592
  %v2643 = vpack.c.bf16 %v2598, %v2593
  %v2644 = vpack.c.bf16 %v2604, %v2599
  %v2645 = vpack.c.bf16 %v2605, %v2600
  %v2646 = vpack.c.bf16 %v2606, %v2601
  %v2647 = vpack.c.bf16 %v2607, %v2602
  %v2648 = vpack.c.bf16 %v2608, %v2603
  %v2649 = vld [vmem:[%s3] sm:$0xff]
  %v2650 = vld [vmem:[%s3 + $0x8] sm:$0xf]
  %v2651 = vld [vmem:[%s3 + $0xc] sm:$0xff]
  %v2652 = vld [vmem:[%s3 + $0x14] sm:$0xf]
  %v2653 = vld [vmem:[%s3 + $0x18] sm:$0xff]
  %v2654 = vld [vmem:[%s3 + $0x20] sm:$0xf]
  %v2655 = vld [vmem:[%s3 + $0x24] sm:$0xff]
  %v2656 = vld [vmem:[%s3 + $0x2c] sm:$0xf]
  %v2657 = vld [vmem:[%s3 + $0x30] sm:$0xff]
  %v2658 = vld [vmem:[%s3 + $0x38] sm:$0xf]
  %v2659 = vld [vmem:[%s3 + $0x3c] sm:$0xff]
  %v2660 = vld [vmem:[%s3 + $0x44] sm:$0xf]
  %v2661 = vld [vmem:[%s3 + $0x48] sm:$0xff]
  %v2662 = vld [vmem:[%s3 + $0x50] sm:$0xf]
  %v2663 = vld [vmem:[%s3 + $0x54] sm:$0xff]
  %v2664 = vld [vmem:[%s3 + $0x5c] sm:$0xf]
  %v2665 = vld [vmem:[%s3 + $0x60] sm:$0xff]
  %v2666 = vld [vmem:[%s3 + $0x68] sm:$0xf]
  %v2667 = vld [vmem:[%s3 + $0x6c] sm:$0xff]
  %v2668 = vld [vmem:[%s3 + $0x74] sm:$0xf]
  %v2669 = vld [vmem:[%s3 + $0x78] sm:$0xff]
  %v2670 = vld [vmem:[%s3 + $0x80] sm:$0xf]
  %v2671 = vld [vmem:[%s3 + $0x84] sm:$0xff]
  %v2672 = vld [vmem:[%s3 + $0x8c] sm:$0xf]
  %v2673 = vld [vmem:[%s3 + $0x90] sm:$0xff]
  %v2674 = vld [vmem:[%s3 + $0x98] sm:$0xf]
  %v2675 = vld [vmem:[%s3 + $0x9c] sm:$0xff]
  %v2676 = vld [vmem:[%s3 + $0xa4] sm:$0xf]
  %v2677 = vld [vmem:[%s3 + $0xa8] sm:$0xff]
  %v2678 = vld [vmem:[%s3 + $0xb0] sm:$0xf]
  %v2679 = vld [vmem:[%s3 + $0xb4] sm:$0xff]
  %v2680 = vld [vmem:[%s3 + $0xbc] sm:$0xf]
  %v2681 = vld [vmem:[%s3 + $0xc0] sm:$0xff]
  %v2682 = vld [vmem:[%s3 + $0xc8] sm:$0xf]
  %v2683 = vld [vmem:[%s3 + $0xcc] sm:$0xff]
  %v2684 = vld [vmem:[%s3 + $0xd4] sm:$0xf]
  %v2685 = vld [vmem:[%s3 + $0xd8] sm:$0xff]
  %v2686 = vld [vmem:[%s3 + $0xe0] sm:$0xf]
  %v2687 = vld [vmem:[%s3 + $0xe4] sm:$0xff]
  %v2688 = vld [vmem:[%s3 + $0xec] sm:$0xf]
  %v2689 = vld [vmem:[%s3 + $0xf0] sm:$0xff]
  %v2690 = vld [vmem:[%s3 + $0xf8] sm:$0xf]
  %v2691 = vld [vmem:[%s3 + $0xfc] sm:$0xff]
  %v2692 = vld [vmem:[%s3 + $0x104] sm:$0xf]
  %v2693 = vld [vmem:[%s3 + $0x108] sm:$0xff]
  %v2694 = vld [vmem:[%s3 + $0x110] sm:$0xf]
  %v2695 = vld [vmem:[%s3 + $0x114] sm:$0xff]
  %v2696 = vld [vmem:[%s3 + $0x11c] sm:$0xf]
  %v2697 = vld [vmem:[%s3 + $0x120] sm:$0xff]
  %v2698 = vld [vmem:[%s3 + $0x128] sm:$0xf]
  %v2699 = vld [vmem:[%s3 + $0x12c] sm:$0xff]
  %v2700 = vld [vmem:[%s3 + $0x134] sm:$0xf]
  %v2701 = vld [vmem:[%s3 + $0x138] sm:$0xff]
  %v2702 = vld [vmem:[%s3 + $0x140] sm:$0xf]
  %v2703 = vld [vmem:[%s3 + $0x144] sm:$0xff]
  %v2704 = vld [vmem:[%s3 + $0x14c] sm:$0xf]
  %v2705 = vld [vmem:[%s3 + $0x150] sm:$0xff]
  %v2706 = vld [vmem:[%s3 + $0x158] sm:$0xf]
  %v2707 = vld [vmem:[%s3 + $0x15c] sm:$0xff]
  %v2708 = vld [vmem:[%s3 + $0x164] sm:$0xf]
  %v2709 = vld [vmem:[%s3 + $0x168] sm:$0xff]
  %v2710 = vld [vmem:[%s3 + $0x170] sm:$0xf]
  %v2711 = vld [vmem:[%s3 + $0x174] sm:$0xff]
  %v2712 = vld [vmem:[%s3 + $0x17c] sm:$0xf]
  %v2713 = vld [vmem:[%s3 + $0x180] sm:$0xff]
  %v2714 = vld [vmem:[%s3 + $0x188] sm:$0xf]
  %v2715 = vld [vmem:[%s3 + $0x18c] sm:$0xff]
  %v2716 = vld [vmem:[%s3 + $0x194] sm:$0xf]
  %v2717 = vld [vmem:[%s3 + $0x198] sm:$0xff]
  %v2718 = vld [vmem:[%s3 + $0x1a0] sm:$0xf]
  %v2719 = vld [vmem:[%s3 + $0x1a4] sm:$0xff]
  %v2720 = vld [vmem:[%s3 + $0x1ac] sm:$0xf]
  %v2721 = vld [vmem:[%s3 + $0x1b0] sm:$0xff]
  %v2722 = vld [vmem:[%s3 + $0x1b8] sm:$0xf]
  %v2723 = vld [vmem:[%s3 + $0x1bc] sm:$0xff]
  %v2724 = vld [vmem:[%s3 + $0x1c4] sm:$0xf]
  %v2725 = vld [vmem:[%s3 + $0x1c8] sm:$0xff]
  %v2726 = vld [vmem:[%s3 + $0x1d0] sm:$0xf]
  %v2727 = vld [vmem:[%s3 + $0x1d4] sm:$0xff]
  %v2728 = vld [vmem:[%s3 + $0x1dc] sm:$0xf]
  %v2729 = vld [vmem:[%s3 + $0x1e0] sm:$0xff]
  %v2730 = vld [vmem:[%s3 + $0x1e8] sm:$0xf]
  %v2731 = vld [vmem:[%s3 + $0x1ec] sm:$0xff]
  %v2732 = vld [vmem:[%s3 + $0x1f4] sm:$0xf]
  %v2733 = vld [vmem:[%s3 + $0x1f8] sm:$0xff]
  %v2734 = vld [vmem:[%s3 + $0x200] sm:$0xf]
  %v2735 = vld [vmem:[%s3 + $0x204] sm:$0xff]
  %v2736 = vld [vmem:[%s3 + $0x20c] sm:$0xf]
  %v2737 = vld [vmem:[%s3 + $0x210] sm:$0xff]
  %v2738 = vld [vmem:[%s3 + $0x218] sm:$0xf]
  %v2739 = vld [vmem:[%s3 + $0x21c] sm:$0xff]
  %v2740 = vld [vmem:[%s3 + $0x224] sm:$0xf]
  %v2741 = vld [vmem:[%s3 + $0x228] sm:$0xff]
  %v2742 = vld [vmem:[%s3 + $0x230] sm:$0xf]
  %v2743 = vld [vmem:[%s3 + $0x234] sm:$0xff]
  %v2744 = vld [vmem:[%s3 + $0x23c] sm:$0xf]
  %v2745 = vld [vmem:[%s3 + $0x240] sm:$0xff]
  %v2746 = vld [vmem:[%s3 + $0x248] sm:$0xf]
  %v2747 = vld [vmem:[%s3 + $0x24c] sm:$0xff]
  %v2748 = vld [vmem:[%s3 + $0x254] sm:$0xf]
  %v2749 = vld [vmem:[%s3 + $0x258] sm:$0xff]
  %v2750 = vld [vmem:[%s3 + $0x260] sm:$0xf]
  %v2751 = vld [vmem:[%s3 + $0x264] sm:$0xff]
  %v2752 = vld [vmem:[%s3 + $0x26c] sm:$0xf]
  %v2753 = vld [vmem:[%s3 + $0x270] sm:$0xff]
  %v2754 = vld [vmem:[%s3 + $0x278] sm:$0xf]
  %v2755 = vld [vmem:[%s3 + $0x27c] sm:$0xff]
  %v2756 = vld [vmem:[%s3 + $0x284] sm:$0xf]
  %v2757 = vld [vmem:[%s3 + $0x288] sm:$0xff]
  %v2758 = vld [vmem:[%s3 + $0x290] sm:$0xf]
  %v2759 = vld [vmem:[%s3 + $0x294] sm:$0xff]
  %v2760 = vld [vmem:[%s3 + $0x29c] sm:$0xf]
  %v2761 = vld [vmem:[%s3 + $0x2a0] sm:$0xff]
  %v2762 = vld [vmem:[%s3 + $0x2a8] sm:$0xf]
  %v2763 = vld [vmem:[%s3 + $0x2ac] sm:$0xff]
  %v2764 = vld [vmem:[%s3 + $0x2b4] sm:$0xf]
  %v2765 = vld [vmem:[%s3 + $0x2b8] sm:$0xff]
  %v2766 = vld [vmem:[%s3 + $0x2c0] sm:$0xf]
  %v2767 = vld [vmem:[%s3 + $0x2c4] sm:$0xff]
  %v2768 = vld [vmem:[%s3 + $0x2cc] sm:$0xf]
  %v2769 = vld [vmem:[%s3 + $0x2d0] sm:$0xff]
  %v2770 = vld [vmem:[%s3 + $0x2d8] sm:$0xf]
  %v2771 = vld [vmem:[%s3 + $0x2dc] sm:$0xff]
  %v2772 = vld [vmem:[%s3 + $0x2e4] sm:$0xf]
  %v2773 = vld [vmem:[%s3 + $0x2e8] sm:$0xff]
  %v2774 = vld [vmem:[%s3 + $0x2f0] sm:$0xf]
  %v2775 = vld [vmem:[%s3 + $0x2f4] sm:$0xff]
  %v2776 = vld [vmem:[%s3 + $0x2fc] sm:$0xf]
  %v2777 = vld [vmem:[%s3 + $0x300] sm:$0xff]
  %v2778 = vld [vmem:[%s3 + $0x308] sm:$0xf]
  %v2779 = vld [vmem:[%s3 + $0x30c] sm:$0xff]
  %v2780 = vld [vmem:[%s3 + $0x314] sm:$0xf]
  %v2781 = vld [vmem:[%s3 + $0x318] sm:$0xff]
  %v2782 = vld [vmem:[%s3 + $0x320] sm:$0xf]
  %v2783 = vld [vmem:[%s3 + $0x324] sm:$0xff]
  %v2784 = vld [vmem:[%s3 + $0x32c] sm:$0xf]
  %v2785 = vld [vmem:[%s3 + $0x330] sm:$0xff]
  %v2786 = vld [vmem:[%s3 + $0x338] sm:$0xf]
  %v2787 = vld [vmem:[%s3 + $0x33c] sm:$0xff]
  %v2788 = vld [vmem:[%s3 + $0x344] sm:$0xf]
  %v2789 = vld [vmem:[%s3 + $0x348] sm:$0xff]
  %v2790 = vld [vmem:[%s3 + $0x350] sm:$0xf]
  %v2791 = vld [vmem:[%s3 + $0x354] sm:$0xff]
  %v2792 = vld [vmem:[%s3 + $0x35c] sm:$0xf]
  %v2793 = vld [vmem:[%s3 + $0x360] sm:$0xff]
  %v2794 = vld [vmem:[%s3 + $0x368] sm:$0xf]
  %v2795 = vld [vmem:[%s3 + $0x36c] sm:$0xff]
  %v2796 = vld [vmem:[%s3 + $0x374] sm:$0xf]
  %v2797 = vld [vmem:[%s3 + $0x378] sm:$0xff]
  %v2798 = vld [vmem:[%s3 + $0x380] sm:$0xf]
  %v2799 = vld [vmem:[%s3 + $0x384] sm:$0xff]
  %v2800 = vld [vmem:[%s3 + $0x38c] sm:$0xf]
  %v2801 = vld [vmem:[%s3 + $0x390] sm:$0xff]
  %v2802 = vld [vmem:[%s3 + $0x398] sm:$0xf]
  %v2803 = vld [vmem:[%s3 + $0x39c] sm:$0xff]
  %v2804 = vld [vmem:[%s3 + $0x3a4] sm:$0xf]
  %v2805 = vld [vmem:[%s3 + $0x3a8] sm:$0xff]
  %v2806 = vld [vmem:[%s3 + $0x3b0] sm:$0xf]
  %v2807 = vld [vmem:[%s3 + $0x3b4] sm:$0xff]
  %v2808 = vld [vmem:[%s3 + $0x3bc] sm:$0xf]
  %v2809 = vld [vmem:[%s4] sm:$0x7]
  %v2811 = vlaneseq
  %v2812 = vshrl.u32 %v2811, 7
  %v2813 = vsub.s32 0, %v2812
  %v2814 = vrot.slane %v2809, %v2813
  %v2815 = vlaneseq
  %v2816 = vshrl.u32 %v2815, 7
  %v2817 = vsub.s32 1, %v2816
  %v2818 = vrot.slane %v2809, %v2817
  %v2819 = vlaneseq
  %v2820 = vshrl.u32 %v2819, 7
  %v2821 = vsub.s32 2, %v2820
  %v2822 = vrot.slane %v2809, %v2821
  %v2986 = vunpack.c.l.b16 %v2649
  %v2987 = vunpack.c.h.b16 %v2649
  %v2988 = vunpack.c.l.b16 %v2650
  %v2989 = vunpack.c.l.b16 %v2651
  %v2990 = vunpack.c.h.b16 %v2651
  %v2991 = vunpack.c.l.b16 %v2652
  %v2992 = vunpack.c.l.b16 %v2653
  %v2993 = vunpack.c.h.b16 %v2653
  %v2994 = vunpack.c.l.b16 %v2654
  %v2995 = vunpack.c.l.b16 %v2655
  %v2996 = vunpack.c.h.b16 %v2655
  %v2997 = vunpack.c.l.b16 %v2656
  %v2998 = vunpack.c.l.b16 %v2657
  %v2999 = vunpack.c.h.b16 %v2657
  %v3000 = vunpack.c.l.b16 %v2658
  %v3001 = vunpack.c.l.b16 %v2659
  %v3002 = vunpack.c.h.b16 %v2659
  %v3003 = vunpack.c.l.b16 %v2660
  %v3004 = vunpack.c.l.b16 %v2661
  %v3005 = vunpack.c.h.b16 %v2661
  %v3006 = vunpack.c.l.b16 %v2662
  %v3007 = vunpack.c.l.b16 %v2663
  %v3008 = vunpack.c.h.b16 %v2663
  %v3009 = vunpack.c.l.b16 %v2664
  %v3010 = vunpack.c.l.b16 %v2665
  %v3011 = vunpack.c.h.b16 %v2665
  %v3012 = vunpack.c.l.b16 %v2666
  %v3013 = vunpack.c.l.b16 %v2667
  %v3014 = vunpack.c.h.b16 %v2667
  %v3015 = vunpack.c.l.b16 %v2668
  %v3016 = vunpack.c.l.b16 %v2669
  %v3017 = vunpack.c.h.b16 %v2669
  %v3018 = vunpack.c.l.b16 %v2670
  %v3019 = vunpack.c.l.b16 %v2671
  %v3020 = vunpack.c.h.b16 %v2671
  %v3021 = vunpack.c.l.b16 %v2672
  %v3022 = vunpack.c.l.b16 %v2673
  %v3023 = vunpack.c.h.b16 %v2673
  %v3024 = vunpack.c.l.b16 %v2674
  %v3025 = vunpack.c.l.b16 %v2675
  %v3026 = vunpack.c.h.b16 %v2675
  %v3027 = vunpack.c.l.b16 %v2676
  %v3028 = vunpack.c.l.b16 %v2677
  %v3029 = vunpack.c.h.b16 %v2677
  %v3030 = vunpack.c.l.b16 %v2678
  %v3031 = vunpack.c.l.b16 %v2679
  %v3032 = vunpack.c.h.b16 %v2679
  %v3033 = vunpack.c.l.b16 %v2680
  %v3034 = vunpack.c.l.b16 %v2681
  %v3035 = vunpack.c.h.b16 %v2681
  %v3036 = vunpack.c.l.b16 %v2682
  %v3037 = vunpack.c.l.b16 %v2683
  %v3038 = vunpack.c.h.b16 %v2683
  %v3039 = vunpack.c.l.b16 %v2684
  %v3040 = vunpack.c.l.b16 %v2685
  %v3041 = vunpack.c.h.b16 %v2685
  %v3042 = vunpack.c.l.b16 %v2686
  %v3043 = vunpack.c.l.b16 %v2687
  %v3044 = vunpack.c.h.b16 %v2687
  %v3045 = vunpack.c.l.b16 %v2688
  %v3046 = vunpack.c.l.b16 %v2689
  %v3047 = vunpack.c.h.b16 %v2689
  %v3048 = vunpack.c.l.b16 %v2690
  %v3049 = vunpack.c.l.b16 %v2691
  %v3050 = vunpack.c.h.b16 %v2691
  %v3051 = vunpack.c.l.b16 %v2692
  %v3052 = vunpack.c.l.b16 %v2693
  %v3053 = vunpack.c.h.b16 %v2693
  %v3054 = vunpack.c.l.b16 %v2694
  %v3055 = vunpack.c.l.b16 %v2695
  %v3056 = vunpack.c.h.b16 %v2695
  %v3057 = vunpack.c.l.b16 %v2696
  %v3058 = vunpack.c.l.b16 %v2697
  %v3059 = vunpack.c.h.b16 %v2697
  %v3060 = vunpack.c.l.b16 %v2698
  %v3061 = vunpack.c.l.b16 %v2699
  %v3062 = vunpack.c.h.b16 %v2699
  %v3063 = vunpack.c.l.b16 %v2700
  %v3064 = vunpack.c.l.b16 %v2701
  %v3065 = vunpack.c.h.b16 %v2701
  %v3066 = vunpack.c.l.b16 %v2702
  %v3067 = vunpack.c.l.b16 %v2703
  %v3068 = vunpack.c.h.b16 %v2703
  %v3069 = vunpack.c.l.b16 %v2704
  %v3070 = vunpack.c.l.b16 %v2705
  %v3071 = vunpack.c.h.b16 %v2705
  %v3072 = vunpack.c.l.b16 %v2706
  %v3073 = vunpack.c.l.b16 %v2707
  %v3074 = vunpack.c.h.b16 %v2707
  %v3075 = vunpack.c.l.b16 %v2708
  %v3076 = vunpack.c.l.b16 %v2709
  %v3077 = vunpack.c.h.b16 %v2709
  %v3078 = vunpack.c.l.b16 %v2710
  %v3079 = vunpack.c.l.b16 %v2711
  %v3080 = vunpack.c.h.b16 %v2711
  %v3081 = vunpack.c.l.b16 %v2712
  %v3082 = vunpack.c.l.b16 %v2713
  %v3083 = vunpack.c.h.b16 %v2713
  %v3084 = vunpack.c.l.b16 %v2714
  %v3085 = vunpack.c.l.b16 %v2715
  %v3086 = vunpack.c.h.b16 %v2715
  %v3087 = vunpack.c.l.b16 %v2716
  %v3088 = vunpack.c.l.b16 %v2717
  %v3089 = vunpack.c.h.b16 %v2717
  %v3090 = vunpack.c.l.b16 %v2718
  %v3091 = vunpack.c.l.b16 %v2719
  %v3092 = vunpack.c.h.b16 %v2719
  %v3093 = vunpack.c.l.b16 %v2720
  %v3094 = vunpack.c.l.b16 %v2721
  %v3095 = vunpack.c.h.b16 %v2721
  %v3096 = vunpack.c.l.b16 %v2722
  %v3097 = vunpack.c.l.b16 %v2723
  %v3098 = vunpack.c.h.b16 %v2723
  %v3099 = vunpack.c.l.b16 %v2724
  %v3100 = vunpack.c.l.b16 %v2725
  %v3101 = vunpack.c.h.b16 %v2725
  %v3102 = vunpack.c.l.b16 %v2726
  %v3103 = vunpack.c.l.b16 %v2727
  %v3104 = vunpack.c.h.b16 %v2727
  %v3105 = vunpack.c.l.b16 %v2728
  %v3106 = vunpack.c.l.b16 %v2729
  %v3107 = vunpack.c.h.b16 %v2729
  %v3108 = vunpack.c.l.b16 %v2730
  %v3109 = vunpack.c.l.b16 %v2731
  %v3110 = vunpack.c.h.b16 %v2731
  %v3111 = vunpack.c.l.b16 %v2732
  %v3112 = vunpack.c.l.b16 %v2733
  %v3113 = vunpack.c.h.b16 %v2733
  %v3114 = vunpack.c.l.b16 %v2734
  %v3115 = vunpack.c.l.b16 %v2735
  %v3116 = vunpack.c.h.b16 %v2735
  %v3117 = vunpack.c.l.b16 %v2736
  %v3118 = vunpack.c.l.b16 %v2737
  %v3119 = vunpack.c.h.b16 %v2737
  %v3120 = vunpack.c.l.b16 %v2738
  %v3121 = vunpack.c.l.b16 %v2739
  %v3122 = vunpack.c.h.b16 %v2739
  %v3123 = vunpack.c.l.b16 %v2740
  %v3124 = vunpack.c.l.b16 %v2741
  %v3125 = vunpack.c.h.b16 %v2741
  %v3126 = vunpack.c.l.b16 %v2742
  %v3127 = vunpack.c.l.b16 %v2743
  %v3128 = vunpack.c.h.b16 %v2743
  %v3129 = vunpack.c.l.b16 %v2744
  %v3130 = vunpack.c.l.b16 %v2745
  %v3131 = vunpack.c.h.b16 %v2745
  %v3132 = vunpack.c.l.b16 %v2746
  %v3133 = vunpack.c.l.b16 %v2747
  %v3134 = vunpack.c.h.b16 %v2747
  %v3135 = vunpack.c.l.b16 %v2748
  %v3136 = vunpack.c.l.b16 %v2749
  %v3137 = vunpack.c.h.b16 %v2749
  %v3138 = vunpack.c.l.b16 %v2750
  %v3139 = vunpack.c.l.b16 %v2751
  %v3140 = vunpack.c.h.b16 %v2751
  %v3141 = vunpack.c.l.b16 %v2752
  %v3142 = vunpack.c.l.b16 %v2753
  %v3143 = vunpack.c.h.b16 %v2753
  %v3144 = vunpack.c.l.b16 %v2754
  %v3145 = vunpack.c.l.b16 %v2755
  %v3146 = vunpack.c.h.b16 %v2755
  %v3147 = vunpack.c.l.b16 %v2756
  %v3148 = vunpack.c.l.b16 %v2757
  %v3149 = vunpack.c.h.b16 %v2757
  %v3150 = vunpack.c.l.b16 %v2758
  %v3151 = vunpack.c.l.b16 %v2759
  %v3152 = vunpack.c.h.b16 %v2759
  %v3153 = vunpack.c.l.b16 %v2760
  %v3154 = vunpack.c.l.b16 %v2761
  %v3155 = vunpack.c.h.b16 %v2761
  %v3156 = vunpack.c.l.b16 %v2762
  %v3157 = vunpack.c.l.b16 %v2763
  %v3158 = vunpack.c.h.b16 %v2763
  %v3159 = vunpack.c.l.b16 %v2764
  %v3160 = vunpack.c.l.b16 %v2765
  %v3161 = vunpack.c.h.b16 %v2765
  %v3162 = vunpack.c.l.b16 %v2766
  %v3163 = vunpack.c.l.b16 %v2767
  %v3164 = vunpack.c.h.b16 %v2767
  %v3165 = vunpack.c.l.b16 %v2768
  %v3166 = vunpack.c.l.b16 %v2769
  %v3167 = vunpack.c.h.b16 %v2769
  %v3168 = vunpack.c.l.b16 %v2770
  %v3169 = vunpack.c.l.b16 %v2771
  %v3170 = vunpack.c.h.b16 %v2771
  %v3171 = vunpack.c.l.b16 %v2772
  %v3172 = vunpack.c.l.b16 %v2773
  %v3173 = vunpack.c.h.b16 %v2773
  %v3174 = vunpack.c.l.b16 %v2774
  %v3175 = vunpack.c.l.b16 %v2775
  %v3176 = vunpack.c.h.b16 %v2775
  %v3177 = vunpack.c.l.b16 %v2776
  %v3178 = vunpack.c.l.b16 %v2777
  %v3179 = vunpack.c.h.b16 %v2777
  %v3180 = vunpack.c.l.b16 %v2778
  %v3181 = vunpack.c.l.b16 %v2779
  %v3182 = vunpack.c.h.b16 %v2779
  %v3183 = vunpack.c.l.b16 %v2780
  %v3184 = vunpack.c.l.b16 %v2781
  %v3185 = vunpack.c.h.b16 %v2781
  %v3186 = vunpack.c.l.b16 %v2782
  %v3187 = vunpack.c.l.b16 %v2783
  %v3188 = vunpack.c.h.b16 %v2783
  %v3189 = vunpack.c.l.b16 %v2784
  %v3190 = vunpack.c.l.b16 %v2785
  %v3191 = vunpack.c.h.b16 %v2785
  %v3192 = vunpack.c.l.b16 %v2786
  %v3193 = vunpack.c.l.b16 %v2787
  %v3194 = vunpack.c.h.b16 %v2787
  %v3195 = vunpack.c.l.b16 %v2788
  %v3196 = vunpack.c.l.b16 %v2789
  %v3197 = vunpack.c.h.b16 %v2789
  %v3198 = vunpack.c.l.b16 %v2790
  %v3199 = vunpack.c.l.b16 %v2791
  %v3200 = vunpack.c.h.b16 %v2791
  %v3201 = vunpack.c.l.b16 %v2792
  %v3202 = vunpack.c.l.b16 %v2793
  %v3203 = vunpack.c.h.b16 %v2793
  %v3204 = vunpack.c.l.b16 %v2794
  %v3205 = vunpack.c.l.b16 %v2795
  %v3206 = vunpack.c.h.b16 %v2795
  %v3207 = vunpack.c.l.b16 %v2796
  %v3208 = vunpack.c.l.b16 %v2797
  %v3209 = vunpack.c.h.b16 %v2797
  %v3210 = vunpack.c.l.b16 %v2798
  %v3211 = vunpack.c.l.b16 %v2799
  %v3212 = vunpack.c.h.b16 %v2799
  %v3213 = vunpack.c.l.b16 %v2800
  %v3214 = vunpack.c.l.b16 %v2801
  %v3215 = vunpack.c.h.b16 %v2801
  %v3216 = vunpack.c.l.b16 %v2802
  %v3217 = vunpack.c.l.b16 %v2803
  %v3218 = vunpack.c.h.b16 %v2803
  %v3219 = vunpack.c.l.b16 %v2804
  %v3220 = vunpack.c.l.b16 %v2805
  %v3221 = vunpack.c.h.b16 %v2805
  %v3222 = vunpack.c.l.b16 %v2806
  %v3223 = vunpack.c.l.b16 %v2807
  %v3224 = vunpack.c.h.b16 %v2807
  %v3225 = vunpack.c.l.b16 %v2808
  %v3226 = vpack.c.b16 %v2989, %v2986
  %v3227 = vpack.c.b16 %v2990, %v2987
  %v3228 = vpack.c.b16 %v2991, %v2988
  %v3229 = vpack.c.b16 %v2995, %v2992
  %v3230 = vpack.c.b16 %v2996, %v2993
  %v3231 = vpack.c.b16 %v2997, %v2994
  %v3232 = vpack.c.b16 %v3001, %v2998
  %v3233 = vpack.c.b16 %v3002, %v2999
  %v3234 = vpack.c.b16 %v3003, %v3000
  %v3235 = vpack.c.b16 %v3007, %v3004
  %v3236 = vpack.c.b16 %v3008, %v3005
  %v3237 = vpack.c.b16 %v3009, %v3006
  %v3238 = vpack.c.b16 %v3013, %v3010
  %v3239 = vpack.c.b16 %v3014, %v3011
  %v3240 = vpack.c.b16 %v3015, %v3012
  %v3241 = vpack.c.b16 %v3019, %v3016
  %v3242 = vpack.c.b16 %v3020, %v3017
  %v3243 = vpack.c.b16 %v3021, %v3018
  %v3244 = vpack.c.b16 %v3025, %v3022
  %v3245 = vpack.c.b16 %v3026, %v3023
  %v3246 = vpack.c.b16 %v3027, %v3024
  %v3247 = vpack.c.b16 %v3031, %v3028
  %v3248 = vpack.c.b16 %v3032, %v3029
  %v3249 = vpack.c.b16 %v3033, %v3030
  %v3250 = vpack.c.b16 %v3037, %v3034
  %v3251 = vpack.c.b16 %v3038, %v3035
  %v3252 = vpack.c.b16 %v3039, %v3036
  %v3253 = vpack.c.b16 %v3043, %v3040
  %v3254 = vpack.c.b16 %v3044, %v3041
  %v3255 = vpack.c.b16 %v3045, %v3042
  %v3256 = vpack.c.b16 %v3049, %v3046
  %v3257 = vpack.c.b16 %v3050, %v3047
  %v3258 = vpack.c.b16 %v3051, %v3048
  %v3259 = vpack.c.b16 %v3055, %v3052
  %v3260 = vpack.c.b16 %v3056, %v3053
  %v3261 = vpack.c.b16 %v3057, %v3054
  %v3262 = vpack.c.b16 %v3061, %v3058
  %v3263 = vpack.c.b16 %v3062, %v3059
  %v3264 = vpack.c.b16 %v3063, %v3060
  %v3265 = vpack.c.b16 %v3067, %v3064
  %v3266 = vpack.c.b16 %v3068, %v3065
  %v3267 = vpack.c.b16 %v3069, %v3066
  %v3268 = vpack.c.b16 %v3073, %v3070
  %v3269 = vpack.c.b16 %v3074, %v3071
  %v3270 = vpack.c.b16 %v3075, %v3072
  %v3271 = vpack.c.b16 %v3079, %v3076
  %v3272 = vpack.c.b16 %v3080, %v3077
  %v3273 = vpack.c.b16 %v3081, %v3078
  %v3274 = vpack.c.b16 %v3085, %v3082
  %v3275 = vpack.c.b16 %v3086, %v3083
  %v3276 = vpack.c.b16 %v3087, %v3084
  %v3277 = vpack.c.b16 %v3091, %v3088
  %v3278 = vpack.c.b16 %v3092, %v3089
  %v3279 = vpack.c.b16 %v3093, %v3090
  %v3280 = vpack.c.b16 %v3097, %v3094
  %v3281 = vpack.c.b16 %v3098, %v3095
  %v3282 = vpack.c.b16 %v3099, %v3096
  %v3283 = vpack.c.b16 %v3103, %v3100
  %v3284 = vpack.c.b16 %v3104, %v3101
  %v3285 = vpack.c.b16 %v3105, %v3102
  %v3286 = vpack.c.b16 %v3109, %v3106
  %v3287 = vpack.c.b16 %v3110, %v3107
  %v3288 = vpack.c.b16 %v3111, %v3108
  %v3289 = vpack.c.b16 %v3115, %v3112
  %v3290 = vpack.c.b16 %v3116, %v3113
  %v3291 = vpack.c.b16 %v3117, %v3114
  %v3292 = vpack.c.b16 %v3121, %v3118
  %v3293 = vpack.c.b16 %v3122, %v3119
  %v3294 = vpack.c.b16 %v3123, %v3120
  %v3295 = vpack.c.b16 %v3127, %v3124
  %v3296 = vpack.c.b16 %v3128, %v3125
  %v3297 = vpack.c.b16 %v3129, %v3126
  %v3298 = vpack.c.b16 %v3133, %v3130
  %v3299 = vpack.c.b16 %v3134, %v3131
  %v3300 = vpack.c.b16 %v3135, %v3132
  %v3301 = vpack.c.b16 %v3139, %v3136
  %v3302 = vpack.c.b16 %v3140, %v3137
  %v3303 = vpack.c.b16 %v3141, %v3138
  %v3304 = vpack.c.b16 %v3145, %v3142
  %v3305 = vpack.c.b16 %v3146, %v3143
  %v3306 = vpack.c.b16 %v3147, %v3144
  %v3307 = vpack.c.b16 %v3151, %v3148
  %v3308 = vpack.c.b16 %v3152, %v3149
  %v3309 = vpack.c.b16 %v3153, %v3150
  %v3310 = vpack.c.b16 %v3157, %v3154
  %v3311 = vpack.c.b16 %v3158, %v3155
  %v3312 = vpack.c.b16 %v3159, %v3156
  %v3313 = vpack.c.b16 %v3163, %v3160
  %v3314 = vpack.c.b16 %v3164, %v3161
  %v3315 = vpack.c.b16 %v3165, %v3162
  %v3316 = vpack.c.b16 %v3169, %v3166
  %v3317 = vpack.c.b16 %v3170, %v3167
  %v3318 = vpack.c.b16 %v3171, %v3168
  %v3319 = vpack.c.b16 %v3175, %v3172
  %v3320 = vpack.c.b16 %v3176, %v3173
  %v3321 = vpack.c.b16 %v3177, %v3174
  %v3322 = vpack.c.b16 %v3181, %v3178
  %v3323 = vpack.c.b16 %v3182, %v3179
  %v3324 = vpack.c.b16 %v3183, %v3180
  %v3325 = vpack.c.b16 %v3187, %v3184
  %v3326 = vpack.c.b16 %v3188, %v3185
  %v3327 = vpack.c.b16 %v3189, %v3186
  %v3328 = vpack.c.b16 %v3193, %v3190
  %v3329 = vpack.c.b16 %v3194, %v3191
  %v3330 = vpack.c.b16 %v3195, %v3192
  %v3331 = vpack.c.b16 %v3199, %v3196
  %v3332 = vpack.c.b16 %v3200, %v3197
  %v3333 = vpack.c.b16 %v3201, %v3198
  %v3334 = vpack.c.b16 %v3205, %v3202
  %v3335 = vpack.c.b16 %v3206, %v3203
  %v3336 = vpack.c.b16 %v3207, %v3204
  %v3337 = vpack.c.b16 %v3211, %v3208
  %v3338 = vpack.c.b16 %v3212, %v3209
  %v3339 = vpack.c.b16 %v3213, %v3210
  %v3340 = vpack.c.b16 %v3217, %v3214
  %v3341 = vpack.c.b16 %v3218, %v3215
  %v3342 = vpack.c.b16 %v3219, %v3216
  %v3343 = vpack.c.b16 %v3223, %v3220
  %v3344 = vpack.c.b16 %v3224, %v3221
  %v3345 = vpack.c.b16 %v3225, %v3222
  %3466 = vmatprep.subr.bf16.mxu0 %v3227
  %3467 = vmatpush1.bf16.msra.mxu0 %v3226
  %3468 = vmatprep.subr.bf16.mxu0 %v3230
  %3469 = vmatpush1.bf16.msra.mxu0 %v3229
  %3470 = vmatprep.subr.bf16.mxu0 %v3233
  %3471 = vmatpush1.bf16.msra.mxu0 %v3232
  %3472 = vmatprep.subr.bf16.mxu0 %v3236
  %3473 = vmatpush1.bf16.msra.mxu0 %v3235
  %3474 = vmatprep.subr.bf16.mxu0 %v3239
  %3475 = vmatpush1.bf16.msra.mxu0 %v3238
  %3476 = vmatprep.subr.bf16.mxu0 %v3242
  %3477 = vmatpush1.bf16.msra.mxu0 %v3241
  %3478 = vmatprep.subr.bf16.mxu0 %v3245
  %3479 = vmatpush1.bf16.msra.mxu0 %v3244
  %3480 = vmatprep.subr.bf16.mxu0 %v3248
  %3481 = vmatpush1.bf16.msra.mxu0 %v3247
  %3482 = vmatprep.subr.bf16.mxu0 %v3251
  %3483 = vmatpush1.bf16.msra.mxu0 %v3250
  %3484 = vmatprep.subr.bf16.mxu0 %v3254
  %3485 = vmatpush1.bf16.msra.mxu0 %v3253
  %3486 = vmatprep.subr.bf16.mxu0 %v3257
  %3487 = vmatpush1.bf16.msra.mxu0 %v3256
  %3488 = vmatprep.subr.bf16.mxu0 %v3260
  %3489 = vmatpush1.bf16.msra.mxu0 %v3259
  %3490 = vmatprep.subr.bf16.mxu0 %v3263
  %3491 = vmatpush1.bf16.msra.mxu0 %v3262
  %3492 = vmatprep.subr.bf16.mxu0 %v3266
  %3493 = vmatpush1.bf16.msra.mxu0 %v3265
  %3494 = vmatprep.subr.bf16.mxu0 %v3269
  %3495 = vmatpush1.bf16.msra.mxu0 %v3268
  %3496 = vmatprep.subr.bf16.mxu0 %v3272
  %3497 = vmatpush1.bf16.msra.mxu0 %v3271
  %3498 = vmatprep.mubr.bf16.mxu0 %v2610
  %3499 = vmatmul.mubr.bf16.gmra.mrb[0].mxu0 %v2609
  %v3500 = vpop.f32.mrb[0].mxu0
  %v3501 = vadd.f32 %v2814, %v3500
  %v3502 = vpop.f32.mrb[0].mxu0
  %v3503 = vadd.f32 %v2818, %v3502
  %v3504 = vpop.f32.mrb[0].mxu0
  %v3505 = vadd.f32 %v2814, %v3504
  %v3506 = vpop.f32.mrb[0].mxu0
  %v3507 = vadd.f32 %v2818, %v3506
  %3508 = vmatprep.mubr.bf16.mxu0 %v2615
  %3509 = vmatmul.mubr.bf16.gmra.mrb[0].mxu0 %v2614
  %v3510 = vpop.f32.mrb[0].mxu0
  %v3511 = vadd.f32 %v2814, %v3510
  %v3512 = vpop.f32.mrb[0].mxu0
  %v3513 = vadd.f32 %v2818, %v3512
  %v3514 = vpop.f32.mrb[0].mxu0
  %v3515 = vadd.f32 %v2814, %v3514
  %v3516 = vpop.f32.mrb[0].mxu0
  %v3517 = vadd.f32 %v2818, %v3516
  %3518 = vmatprep.mubr.bf16.mxu0 %v2620
  %3519 = vmatmul.mubr.bf16.gmra.mrb[0].mxu0 %v2619
  %v3520 = vpop.f32.mrb[0].mxu0
  %v3521 = vadd.f32 %v2814, %v3520
  %v3522 = vpop.f32.mrb[0].mxu0
  %v3523 = vadd.f32 %v2818, %v3522
  %v3524 = vpop.f32.mrb[0].mxu0
  %v3525 = vadd.f32 %v2814, %v3524
  %v3526 = vpop.f32.mrb[0].mxu0
  %v3527 = vadd.f32 %v2818, %v3526
  %3528 = vmatprep.mubr.bf16.mxu0 %v2625
  %3529 = vmatmul.mubr.bf16.gmra.mrb[0].mxu0 %v2624
  %v3530 = vpop.f32.mrb[0].mxu0
  %v3531 = vadd.f32 %v2814, %v3530
  %v3532 = vpop.f32.mrb[0].mxu0
  %v3533 = vadd.f32 %v2818, %v3532
  %v3534 = vpop.f32.mrb[0].mxu0
  %v3535 = vadd.f32 %v2814, %v3534
  %v3536 = vpop.f32.mrb[0].mxu0
  %v3537 = vadd.f32 %v2818, %v3536
  %3538 = vmatprep.mubr.bf16.mxu0 %v2630
  %3539 = vmatmul.mubr.bf16.gmra.mrb[0].mxu0 %v2629
  %v3540 = vpop.f32.mrb[0].mxu0
  %v3541 = vadd.f32 %v2814, %v3540
  %v3542 = vpop.f32.mrb[0].mxu0
  %v3543 = vadd.f32 %v2818, %v3542
  %v3544 = vpop.f32.mrb[0].mxu0
  %v3545 = vadd.f32 %v2814, %v3544
  %v3546 = vpop.f32.mrb[0].mxu0
  %v3547 = vadd.f32 %v2818, %v3546
  %3548 = vmatprep.mubr.bf16.mxu0 %v2635
  %3549 = vmatmul.mubr.bf16.gmra.mrb[0].mxu0 %v2634
  %v3550 = vpop.f32.mrb[0].mxu0
  %v3551 = vadd.f32 %v2814, %v3550
  %v3552 = vpop.f32.mrb[0].mxu0
  %v3553 = vadd.f32 %v2818, %v3552
  %v3554 = vpop.f32.mrb[0].mxu0
  %v3555 = vadd.f32 %v2814, %v3554
  %v3556 = vpop.f32.mrb[0].mxu0
  %v3557 = vadd.f32 %v2818, %v3556
  %3558 = vmatprep.mubr.bf16.mxu0 %v2640
  %3559 = vmatmul.mubr.bf16.gmra.mrb[0].mxu0 %v2639
  %v3560 = vpop.f32.mrb[0].mxu0
  %v3561 = vadd.f32 %v2814, %v3560
  %v3562 = vpop.f32.mrb[0].mxu0
  %v3563 = vadd.f32 %v2818, %v3562
  %v3564 = vpop.f32.mrb[0].mxu0
  %v3565 = vadd.f32 %v2814, %v3564
  %v3566 = vpop.f32.mrb[0].mxu0
  %v3567 = vadd.f32 %v2818, %v3566
  %3568 = vmatprep.mubr.bf16.mxu0 %v2645
  %3569 = vmatmul.mubr.bf16.gmra.mrb[0].mxu0 %v2644
  %v3570 = vpop.f32.mrb[0].mxu0
  %v3571 = vadd.f32 %v2814, %v3570
  %v3572 = vpop.f32.mrb[0].mxu0
  %v3573 = vadd.f32 %v2818, %v3572
  %v3574 = vpop.f32.mrb[0].mxu0
  %v3575 = vadd.f32 %v2814, %v3574
  %v3576 = vpop.f32.mrb[0].mxu0
  %v3577 = vadd.f32 %v2818, %v3576
  %3578 = vdwg.mxu0
  %3579 = vmatprep.subr.bf16.mxu0 %v3275
  %3580 = vmatpush1.bf16.msra.mxu0 %v3274
  %3581 = vmatprep.subr.bf16.mxu0 %v3278
  %3582 = vmatpush1.bf16.msra.mxu0 %v3277
  %3583 = vmatprep.subr.bf16.mxu0 %v3281
  %3584 = vmatpush1.bf16.msra.mxu0 %v3280
  %3585 = vmatprep.subr.bf16.mxu0 %v3284
  %3586 = vmatpush1.bf16.msra.mxu0 %v3283
  %3587 = vmatprep.subr.bf16.mxu0 %v3287
  %3588 = vmatpush1.bf16.msra.mxu0 %v3286
  %3589 = vmatprep.subr.bf16.mxu0 %v3290
  %3590 = vmatpush1.bf16.msra.mxu0 %v3289
  %3591 = vmatprep.subr.bf16.mxu0 %v3293
  %3592 = vmatpush1.bf16.msra.mxu0 %v3292
  %3593 = vmatprep.subr.bf16.mxu0 %v3296
  %3594 = vmatpush1.bf16.msra.mxu0 %v3295
  %3595 = vmatprep.subr.bf16.mxu0 %v3299
  %3596 = vmatpush1.bf16.msra.mxu0 %v3298
  %3597 = vmatprep.subr.bf16.mxu0 %v3302
  %3598 = vmatpush1.bf16.msra.mxu0 %v3301
  %3599 = vmatprep.subr.bf16.mxu0 %v3305
  %3600 = vmatpush1.bf16.msra.mxu0 %v3304
  %3601 = vmatprep.subr.bf16.mxu0 %v3308
  %3602 = vmatpush1.bf16.msra.mxu0 %v3307
  %3603 = vmatprep.subr.bf16.mxu0 %v3311
  %3604 = vmatpush1.bf16.msra.mxu0 %v3310
  %3605 = vmatprep.subr.bf16.mxu0 %v3314
  %3606 = vmatpush1.bf16.msra.mxu0 %v3313
  %3607 = vmatprep.subr.bf16.mxu0 %v3317
  %3608 = vmatpush1.bf16.msra.mxu0 %v3316
  %3609 = vmatprep.subr.bf16.mxu0 %v3320
  %3610 = vmatpush1.bf16.msra.mxu0 %v3319
  %3611 = vmatprep.mubr.bf16.mxu0 %v2612
  %3612 = vmatmul.mubr.bf16.gmra.mrb[0].mxu0 %v2611
  %v3613 = vpop.f32.mrb[0].mxu0
  %v3614 = vadd.f32 %v3501, %v3613
  %v3615 = vpop.f32.mrb[0].mxu0
  %v3616 = vadd.f32 %v3503, %v3615
  %v3617 = vpop.f32.mrb[0].mxu0
  %v3618 = vadd.f32 %v3505, %v3617
  %v3619 = vpop.f32.mrb[0].mxu0
  %v3620 = vadd.f32 %v3507, %v3619
  %3621 = vmatprep.mubr.bf16.mxu0 %v2617
  %3622 = vmatmul.mubr.bf16.gmra.mrb[0].mxu0 %v2616
  %v3623 = vpop.f32.mrb[0].mxu0
  %v3624 = vadd.f32 %v3511, %v3623
  %v3625 = vpop.f32.mrb[0].mxu0
  %v3626 = vadd.f32 %v3513, %v3625
  %v3627 = vpop.f32.mrb[0].mxu0
  %v3628 = vadd.f32 %v3515, %v3627
  %v3629 = vpop.f32.mrb[0].mxu0
  %v3630 = vadd.f32 %v3517, %v3629
  %3631 = vmatprep.mubr.bf16.mxu0 %v2622
  %3632 = vmatmul.mubr.bf16.gmra.mrb[0].mxu0 %v2621
  %v3633 = vpop.f32.mrb[0].mxu0
  %v3634 = vadd.f32 %v3521, %v3633
  %v3635 = vpop.f32.mrb[0].mxu0
  %v3636 = vadd.f32 %v3523, %v3635
  %v3637 = vpop.f32.mrb[0].mxu0
  %v3638 = vadd.f32 %v3525, %v3637
  %v3639 = vpop.f32.mrb[0].mxu0
  %v3640 = vadd.f32 %v3527, %v3639
  %3641 = vmatprep.mubr.bf16.mxu0 %v2627
  %3642 = vmatmul.mubr.bf16.gmra.mrb[0].mxu0 %v2626
  %v3643 = vpop.f32.mrb[0].mxu0
  %v3644 = vadd.f32 %v3531, %v3643
  %v3645 = vpop.f32.mrb[0].mxu0
  %v3646 = vadd.f32 %v3533, %v3645
  %v3647 = vpop.f32.mrb[0].mxu0
  %v3648 = vadd.f32 %v3535, %v3647
  %v3649 = vpop.f32.mrb[0].mxu0
  %v3650 = vadd.f32 %v3537, %v3649
  %3651 = vmatprep.mubr.bf16.mxu0 %v2632
  %3652 = vmatmul.mubr.bf16.gmra.mrb[0].mxu0 %v2631
  %v3653 = vpop.f32.mrb[0].mxu0
  %v3654 = vadd.f32 %v3541, %v3653
  %v3655 = vpop.f32.mrb[0].mxu0
  %v3656 = vadd.f32 %v3543, %v3655
  %v3657 = vpop.f32.mrb[0].mxu0
  %v3658 = vadd.f32 %v3545, %v3657
  %v3659 = vpop.f32.mrb[0].mxu0
  %v3660 = vadd.f32 %v3547, %v3659
  %3661 = vmatprep.mubr.bf16.mxu0 %v2637
  %3662 = vmatmul.mubr.bf16.gmra.mrb[0].mxu0 %v2636
  %v3663 = vpop.f32.mrb[0].mxu0
  %v3664 = vadd.f32 %v3551, %v3663
  %v3665 = vpop.f32.mrb[0].mxu0
  %v3666 = vadd.f32 %v3553, %v3665
  %v3667 = vpop.f32.mrb[0].mxu0
  %v3668 = vadd.f32 %v3555, %v3667
  %v3669 = vpop.f32.mrb[0].mxu0
  %v3670 = vadd.f32 %v3557, %v3669
  %3671 = vmatprep.mubr.bf16.mxu0 %v2642
  %3672 = vmatmul.mubr.bf16.gmra.mrb[0].mxu0 %v2641
  %v3673 = vpop.f32.mrb[0].mxu0
  %v3674 = vadd.f32 %v3561, %v3673
  %v3675 = vpop.f32.mrb[0].mxu0
  %v3676 = vadd.f32 %v3563, %v3675
  %v3677 = vpop.f32.mrb[0].mxu0
  %v3678 = vadd.f32 %v3565, %v3677
  %v3679 = vpop.f32.mrb[0].mxu0
  %v3680 = vadd.f32 %v3567, %v3679
  %3681 = vmatprep.mubr.bf16.mxu0 %v2647
  %3682 = vmatmul.mubr.bf16.gmra.mrb[0].mxu0 %v2646
  %v3683 = vpop.f32.mrb[0].mxu0
  %v3684 = vadd.f32 %v3571, %v3683
  %v3685 = vpop.f32.mrb[0].mxu0
  %v3686 = vadd.f32 %v3573, %v3685
  %v3687 = vpop.f32.mrb[0].mxu0
  %v3688 = vadd.f32 %v3575, %v3687
  %v3689 = vpop.f32.mrb[0].mxu0
  %v3690 = vadd.f32 %v3577, %v3689
  %3691 = vdwg.mxu0
  %3692 = vmatprep.subr.bf16.mxu0 %v3323
  %3693 = vmatpush1.bf16.msra.mxu0 %v3322
  %3694 = vmatprep.subr.bf16.mxu0 %v3326
  %3695 = vmatpush1.bf16.msra.mxu0 %v3325
  %3696 = vmatprep.subr.bf16.mxu0 %v3329
  %3697 = vmatpush1.bf16.msra.mxu0 %v3328
  %3698 = vmatprep.subr.bf16.mxu0 %v3332
  %3699 = vmatpush1.bf16.msra.mxu0 %v3331
  %3700 = vmatprep.subr.bf16.mxu0 %v3335
  %3701 = vmatpush1.bf16.msra.mxu0 %v3334
  %3702 = vmatprep.subr.bf16.mxu0 %v3338
  %3703 = vmatpush1.bf16.msra.mxu0 %v3337
  %3704 = vmatprep.subr.bf16.mxu0 %v3341
  %3705 = vmatpush1.bf16.msra.mxu0 %v3340
  %3706 = vmatprep.subr.bf16.mxu0 %v3344
  %3707 = vmatpush1.bf16.msra.mxu0 %v3343
  %3708 = vmatprep.subr.bf16.mxu0 0
  %3709 = vmatpush1.bf16.msra.mxu0 0
  %3710 = vmatprep.subr.bf16.mxu0 0
  %3711 = vmatpush1.bf16.msra.mxu0 0
  %3712 = vmatprep.subr.bf16.mxu0 0
  %3713 = vmatpush1.bf16.msra.mxu0 0
  %3714 = vmatprep.subr.bf16.mxu0 0
  %3715 = vmatpush1.bf16.msra.mxu0 0
  %3716 = vmatprep.subr.bf16.mxu0 0
  %3717 = vmatpush1.bf16.msra.mxu0 0
  %3718 = vmatprep.subr.bf16.mxu0 0
  %3719 = vmatpush1.bf16.msra.mxu0 0
  %3720 = vmatprep.subr.bf16.mxu0 0
  %3721 = vmatpush1.bf16.msra.mxu0 0
  %3722 = vmatprep.subr.bf16.mxu0 0
  %3723 = vmatpush1.bf16.msra.mxu0 0
  %3724 = vmatprep.mubr.bf16.mxu0 0
  %3725 = vmatmul.mubr.bf16.gmra.mrb[0].mxu0 %v2613
  %v3726 = vpop.f32.mrb[0].mxu0
  %v3727 = vadd.f32 %v3614, %v3726
  %v3728 = vpop.f32.mrb[0].mxu0
  %v3729 = vadd.f32 %v3616, %v3728
  %v3730 = vpop.f32.mrb[0].mxu0
  %v3731 = vadd.f32 %v3618, %v3730
  %v3732 = vpop.f32.mrb[0].mxu0
  %v3733 = vadd.f32 %v3620, %v3732
  %3734 = vmatprep.mubr.bf16.mxu0 0
  %3735 = vmatmul.mubr.bf16.gmra.mrb[0].mxu0 %v2618
  %v3736 = vpop.f32.mrb[0].mxu0
  %v3737 = vadd.f32 %v3624, %v3736
  %v3738 = vpop.f32.mrb[0].mxu0
  %v3739 = vadd.f32 %v3626, %v3738
  %v3740 = vpop.f32.mrb[0].mxu0
  %v3741 = vadd.f32 %v3628, %v3740
  %v3742 = vpop.f32.mrb[0].mxu0
  %v3743 = vadd.f32 %v3630, %v3742
  %3744 = vmatprep.mubr.bf16.mxu0 0
  %3745 = vmatmul.mubr.bf16.gmra.mrb[0].mxu0 %v2623
  %v3746 = vpop.f32.mrb[0].mxu0
  %v3747 = vadd.f32 %v3634, %v3746
  %v3748 = vpop.f32.mrb[0].mxu0
  %v3749 = vadd.f32 %v3636, %v3748
  %v3750 = vpop.f32.mrb[0].mxu0
  %v3751 = vadd.f32 %v3638, %v3750
  %v3752 = vpop.f32.mrb[0].mxu0
  %v3753 = vadd.f32 %v3640, %v3752
  %3754 = vmatprep.mubr.bf16.mxu0 0
  %3755 = vmatmul.mubr.bf16.gmra.mrb[0].mxu0 %v2628
  %v3756 = vpop.f32.mrb[0].mxu0
  %v3757 = vadd.f32 %v3644, %v3756
  %v3758 = vpop.f32.mrb[0].mxu0
  %v3759 = vadd.f32 %v3646, %v3758
  %v3760 = vpop.f32.mrb[0].mxu0
  %v3761 = vadd.f32 %v3648, %v3760
  %v3762 = vpop.f32.mrb[0].mxu0
  %v3763 = vadd.f32 %v3650, %v3762
  %3764 = vmatprep.mubr.bf16.mxu0 0
  %3765 = vmatmul.mubr.bf16.gmra.mrb[0].mxu0 %v2633
  %v3766 = vpop.f32.mrb[0].mxu0
  %v3767 = vadd.f32 %v3654, %v3766
  %v3768 = vpop.f32.mrb[0].mxu0
  %v3769 = vadd.f32 %v3656, %v3768
  %v3770 = vpop.f32.mrb[0].mxu0
  %v3771 = vadd.f32 %v3658, %v3770
  %v3772 = vpop.f32.mrb[0].mxu0
  %v3773 = vadd.f32 %v3660, %v3772
  %3774 = vmatprep.mubr.bf16.mxu0 0
  %3775 = vmatmul.mubr.bf16.gmra.mrb[0].mxu0 %v2638
  %v3776 = vpop.f32.mrb[0].mxu0
  %v3777 = vadd.f32 %v3664, %v3776
  %v3778 = vpop.f32.mrb[0].mxu0
  %v3779 = vadd.f32 %v3666, %v3778
  %v3780 = vpop.f32.mrb[0].mxu0
  %v3781 = vadd.f32 %v3668, %v3780
  %v3782 = vpop.f32.mrb[0].mxu0
  %v3783 = vadd.f32 %v3670, %v3782
  %3784 = vmatprep.mubr.bf16.mxu0 0
  %3785 = vmatmul.mubr.bf16.gmra.mrb[0].mxu0 %v2643
  %v3786 = vpop.f32.mrb[0].mxu0
  %v3787 = vadd.f32 %v3674, %v3786
  %v3788 = vpop.f32.mrb[0].mxu0
  %v3789 = vadd.f32 %v3676, %v3788
  %v3790 = vpop.f32.mrb[0].mxu0
  %v3791 = vadd.f32 %v3678, %v3790
  %v3792 = vpop.f32.mrb[0].mxu0
  %v3793 = vadd.f32 %v3680, %v3792
  %3794 = vmatprep.mubr.bf16.mxu0 0
  %3795 = vmatmul.mubr.bf16.gmra.mrb[0].mxu0 %v2648
  %v3796 = vpop.f32.mrb[0].mxu0
  %v3797 = vadd.f32 %v3684, %v3796
  %v3798 = vpop.f32.mrb[0].mxu0
  %v3799 = vadd.f32 %v3686, %v3798
  %v3800 = vpop.f32.mrb[0].mxu0
  %v3801 = vadd.f32 %v3688, %v3800
  %v3802 = vpop.f32.mrb[0].mxu0
  %v3803 = vadd.f32 %v3690, %v3802
  %3804 = vdwg.mxu0
  %3805 = vmatprep.subr.bf16.mxu0 0
  %3806 = vmatpush1.bf16.msra.mxu0 %v3228
  %3807 = vmatprep.subr.bf16.mxu0 0
  %3808 = vmatpush1.bf16.msra.mxu0 %v3231
  %3809 = vmatprep.subr.bf16.mxu0 0
  %3810 = vmatpush1.bf16.msra.mxu0 %v3234
  %3811 = vmatprep.subr.bf16.mxu0 0
  %3812 = vmatpush1.bf16.msra.mxu0 %v3237
  %3813 = vmatprep.subr.bf16.mxu0 0
  %3814 = vmatpush1.bf16.msra.mxu0 %v3240
  %3815 = vmatprep.subr.bf16.mxu0 0
  %3816 = vmatpush1.bf16.msra.mxu0 %v3243
  %3817 = vmatprep.subr.bf16.mxu0 0
  %3818 = vmatpush1.bf16.msra.mxu0 %v3246
  %3819 = vmatprep.subr.bf16.mxu0 0
  %3820 = vmatpush1.bf16.msra.mxu0 %v3249
  %3821 = vmatprep.subr.bf16.mxu0 0
  %3822 = vmatpush1.bf16.msra.mxu0 %v3252
  %3823 = vmatprep.subr.bf16.mxu0 0
  %3824 = vmatpush1.bf16.msra.mxu0 %v3255
  %3825 = vmatprep.subr.bf16.mxu0 0
  %3826 = vmatpush1.bf16.msra.mxu0 %v3258
  %3827 = vmatprep.subr.bf16.mxu0 0
  %3828 = vmatpush1.bf16.msra.mxu0 %v3261
  %3829 = vmatprep.subr.bf16.mxu0 0
  %3830 = vmatpush1.bf16.msra.mxu0 %v3264
  %3831 = vmatprep.subr.bf16.mxu0 0
  %3832 = vmatpush1.bf16.msra.mxu0 %v3267
  %3833 = vmatprep.subr.bf16.mxu0 0
  %3834 = vmatpush1.bf16.msra.mxu0 %v3270
  %3835 = vmatprep.subr.bf16.mxu0 0
  %3836 = vmatpush1.bf16.msra.mxu0 %v3273
  %3837 = vmatprep.mubr.bf16.mxu0 %v2610
  %3838 = vmatmul.mubr.bf16.gmra.mrb[0].mxu0 %v2609
  %v3839 = vpop.f32.mrb[0].mxu0
  %v3840 = vadd.f32 %v2822, %v3839
  %v3841 = vpop.f32.mrb[0].mxu0
  %v3842 = vpop.f32.mrb[0].mxu0
  %v3843 = vadd.f32 %v2822, %v3842
  %v3844 = vpop.f32.mrb[0].mxu0
  %3845 = vmatprep.mubr.bf16.mxu0 %v2615
  %3846 = vmatmul.mubr.bf16.gmra.mrb[0].mxu0 %v2614
  %v3847 = vpop.f32.mrb[0].mxu0
  %v3848 = vadd.f32 %v2822, %v3847
  %v3849 = vpop.f32.mrb[0].mxu0
  %v3850 = vpop.f32.mrb[0].mxu0
  %v3851 = vadd.f32 %v2822, %v3850
  %v3852 = vpop.f32.mrb[0].mxu0
  %3853 = vmatprep.mubr.bf16.mxu0 %v2620
  %3854 = vmatmul.mubr.bf16.gmra.mrb[0].mxu0 %v2619
  %v3855 = vpop.f32.mrb[0].mxu0
  %v3856 = vadd.f32 %v2822, %v3855
  %v3857 = vpop.f32.mrb[0].mxu0
  %v3858 = vpop.f32.mrb[0].mxu0
  %v3859 = vadd.f32 %v2822, %v3858
  %v3860 = vpop.f32.mrb[0].mxu0
  %3861 = vmatprep.mubr.bf16.mxu0 %v2625
  %3862 = vmatmul.mubr.bf16.gmra.mrb[0].mxu0 %v2624
  %v3863 = vpop.f32.mrb[0].mxu0
  %v3864 = vadd.f32 %v2822, %v3863
  %v3865 = vpop.f32.mrb[0].mxu0
  %v3866 = vpop.f32.mrb[0].mxu0
  %v3867 = vadd.f32 %v2822, %v3866
  %v3868 = vpop.f32.mrb[0].mxu0
  %3869 = vmatprep.mubr.bf16.mxu0 %v2630
  %3870 = vmatmul.mubr.bf16.gmra.mrb[0].mxu0 %v2629
  %v3871 = vpop.f32.mrb[0].mxu0
  %v3872 = vadd.f32 %v2822, %v3871
  %v3873 = vpop.f32.mrb[0].mxu0
  %v3874 = vpop.f32.mrb[0].mxu0
  %v3875 = vadd.f32 %v2822, %v3874
  %v3876 = vpop.f32.mrb[0].mxu0
  %3877 = vmatprep.mubr.bf16.mxu0 %v2635
  %3878 = vmatmul.mubr.bf16.gmra.mrb[0].mxu0 %v2634
  %v3879 = vpop.f32.mrb[0].mxu0
  %v3880 = vadd.f32 %v2822, %v3879
  %v3881 = vpop.f32.mrb[0].mxu0
  %v3882 = vpop.f32.mrb[0].mxu0
  %v3883 = vadd.f32 %v2822, %v3882
  %v3884 = vpop.f32.mrb[0].mxu0
  %3885 = vmatprep.mubr.bf16.mxu0 %v2640
  %3886 = vmatmul.mubr.bf16.gmra.mrb[0].mxu0 %v2639
  %v3887 = vpop.f32.mrb[0].mxu0
  %v3888 = vadd.f32 %v2822, %v3887
  %v3889 = vpop.f32.mrb[0].mxu0
  %v3890 = vpop.f32.mrb[0].mxu0
  %v3891 = vadd.f32 %v2822, %v3890
  %v3892 = vpop.f32.mrb[0].mxu0
  %3893 = vmatprep.mubr.bf16.mxu0 %v2645
  %3894 = vmatmul.mubr.bf16.gmra.mrb[0].mxu0 %v2644
  %v3895 = vpop.f32.mrb[0].mxu0
  %v3896 = vadd.f32 %v2822, %v3895
  %v3897 = vpop.f32.mrb[0].mxu0
  %v3898 = vpop.f32.mrb[0].mxu0
  %v3899 = vadd.f32 %v2822, %v3898
  %v3900 = vpop.f32.mrb[0].mxu0
  %3901 = vdwg.mxu0
  %3902 = vmatprep.subr.bf16.mxu0 0
  %3903 = vmatpush1.bf16.msra.mxu0 %v3276
  %3904 = vmatprep.subr.bf16.mxu0 0
  %3905 = vmatpush1.bf16.msra.mxu0 %v3279
  %3906 = vmatprep.subr.bf16.mxu0 0
  %3907 = vmatpush1.bf16.msra.mxu0 %v3282
  %3908 = vmatprep.subr.bf16.mxu0 0
  %3909 = vmatpush1.bf16.msra.mxu0 %v3285
  %3910 = vmatprep.subr.bf16.mxu0 0
  %3911 = vmatpush1.bf16.msra.mxu0 %v3288
  %3912 = vmatprep.subr.bf16.mxu0 0
  %3913 = vmatpush1.bf16.msra.mxu0 %v3291
  %3914 = vmatprep.subr.bf16.mxu0 0
  %3915 = vmatpush1.bf16.msra.mxu0 %v3294
  %3916 = vmatprep.subr.bf16.mxu0 0
  %3917 = vmatpush1.bf16.msra.mxu0 %v3297
  %3918 = vmatprep.subr.bf16.mxu0 0
  %3919 = vmatpush1.bf16.msra.mxu0 %v3300
  %3920 = vmatprep.subr.bf16.mxu0 0
  %3921 = vmatpush1.bf16.msra.mxu0 %v3303
  %3922 = vmatprep.subr.bf16.mxu0 0
  %3923 = vmatpush1.bf16.msra.mxu0 %v3306
  %3924 = vmatprep.subr.bf16.mxu0 0
  %3925 = vmatpush1.bf16.msra.mxu0 %v3309
  %3926 = vmatprep.subr.bf16.mxu0 0
  %3927 = vmatpush1.bf16.msra.mxu0 %v3312
  %3928 = vmatprep.subr.bf16.mxu0 0
  %3929 = vmatpush1.bf16.msra.mxu0 %v3315
  %3930 = vmatprep.subr.bf16.mxu0 0
  %3931 = vmatpush1.bf16.msra.mxu0 %v3318
  %3932 = vmatprep.subr.bf16.mxu0 0
  %3933 = vmatpush1.bf16.msra.mxu0 %v3321
  %3934 = vmatprep.mubr.bf16.mxu0 %v2612
  %3935 = vmatmul.mubr.bf16.gmra.mrb[0].mxu0 %v2611
  %v3936 = vpop.f32.mrb[0].mxu0
  %v3937 = vadd.f32 %v3840, %v3936
  %v3938 = vpop.f32.mrb[0].mxu0
  %v3939 = vpop.f32.mrb[0].mxu0
  %v3940 = vadd.f32 %v3843, %v3939
  %v3941 = vpop.f32.mrb[0].mxu0
  %3942 = vmatprep.mubr.bf16.mxu0 %v2617
  %3943 = vmatmul.mubr.bf16.gmra.mrb[0].mxu0 %v2616
  %v3944 = vpop.f32.mrb[0].mxu0
  %v3945 = vadd.f32 %v3848, %v3944
  %v3946 = vpop.f32.mrb[0].mxu0
  %v3947 = vpop.f32.mrb[0].mxu0
  %v3948 = vadd.f32 %v3851, %v3947
  %v3949 = vpop.f32.mrb[0].mxu0
  %3950 = vmatprep.mubr.bf16.mxu0 %v2622
  %3951 = vmatmul.mubr.bf16.gmra.mrb[0].mxu0 %v2621
  %v3952 = vpop.f32.mrb[0].mxu0
  %v3953 = vadd.f32 %v3856, %v3952
  %v3954 = vpop.f32.mrb[0].mxu0
  %v3955 = vpop.f32.mrb[0].mxu0
  %v3956 = vadd.f32 %v3859, %v3955
  %v3957 = vpop.f32.mrb[0].mxu0
  %3958 = vmatprep.mubr.bf16.mxu0 %v2627
  %3959 = vmatmul.mubr.bf16.gmra.mrb[0].mxu0 %v2626
  %v3960 = vpop.f32.mrb[0].mxu0
  %v3961 = vadd.f32 %v3864, %v3960
  %v3962 = vpop.f32.mrb[0].mxu0
  %v3963 = vpop.f32.mrb[0].mxu0
  %v3964 = vadd.f32 %v3867, %v3963
  %v3965 = vpop.f32.mrb[0].mxu0
  %3966 = vmatprep.mubr.bf16.mxu0 %v2632
  %3967 = vmatmul.mubr.bf16.gmra.mrb[0].mxu0 %v2631
  %v3968 = vpop.f32.mrb[0].mxu0
  %v3969 = vadd.f32 %v3872, %v3968
  %v3970 = vpop.f32.mrb[0].mxu0
  %v3971 = vpop.f32.mrb[0].mxu0
  %v3972 = vadd.f32 %v3875, %v3971
  %v3973 = vpop.f32.mrb[0].mxu0
  %3974 = vmatprep.mubr.bf16.mxu0 %v2637
  %3975 = vmatmul.mubr.bf16.gmra.mrb[0].mxu0 %v2636
  %v3976 = vpop.f32.mrb[0].mxu0
  %v3977 = vadd.f32 %v3880, %v3976
  %v3978 = vpop.f32.mrb[0].mxu0
  %v3979 = vpop.f32.mrb[0].mxu0
  %v3980 = vadd.f32 %v3883, %v3979
  %v3981 = vpop.f32.mrb[0].mxu0
  %3982 = vmatprep.mubr.bf16.mxu0 %v2642
  %3983 = vmatmul.mubr.bf16.gmra.mrb[0].mxu0 %v2641
  %v3984 = vpop.f32.mrb[0].mxu0
  %v3985 = vadd.f32 %v3888, %v3984
  %v3986 = vpop.f32.mrb[0].mxu0
  %v3987 = vpop.f32.mrb[0].mxu0
  %v3988 = vadd.f32 %v3891, %v3987
  %v3989 = vpop.f32.mrb[0].mxu0
  %3990 = vmatprep.mubr.bf16.mxu0 %v2647
  %3991 = vmatmul.mubr.bf16.gmra.mrb[0].mxu0 %v2646
  %v3992 = vpop.f32.mrb[0].mxu0
  %v3993 = vadd.f32 %v3896, %v3992
  %v3994 = vpop.f32.mrb[0].mxu0
  %v3995 = vpop.f32.mrb[0].mxu0
  %v3996 = vadd.f32 %v3899, %v3995
  %v3997 = vpop.f32.mrb[0].mxu0
  %3998 = vdwg.mxu0
  %3999 = vmatprep.subr.bf16.mxu0 0
  %4000 = vmatpush1.bf16.msra.mxu0 %v3324
  %4001 = vmatprep.subr.bf16.mxu0 0
  %4002 = vmatpush1.bf16.msra.mxu0 %v3327
  %4003 = vmatprep.subr.bf16.mxu0 0
  %4004 = vmatpush1.bf16.msra.mxu0 %v3330
  %4005 = vmatprep.subr.bf16.mxu0 0
  %4006 = vmatpush1.bf16.msra.mxu0 %v3333
  %4007 = vmatprep.subr.bf16.mxu0 0
  %4008 = vmatpush1.bf16.msra.mxu0 %v3336
  %4009 = vmatprep.subr.bf16.mxu0 0
  %4010 = vmatpush1.bf16.msra.mxu0 %v3339
  %4011 = vmatprep.subr.bf16.mxu0 0
  %4012 = vmatpush1.bf16.msra.mxu0 %v3342
  %4013 = vmatprep.subr.bf16.mxu0 0
  %4014 = vmatpush1.bf16.msra.mxu0 %v3345
  %4015 = vmatprep.subr.bf16.mxu0 0
  %4016 = vmatpush1.bf16.msra.mxu0 0
  %4017 = vmatprep.subr.bf16.mxu0 0
  %4018 = vmatpush1.bf16.msra.mxu0 0
  %4019 = vmatprep.subr.bf16.mxu0 0
  %4020 = vmatpush1.bf16.msra.mxu0 0
  %4021 = vmatprep.subr.bf16.mxu0 0
  %4022 = vmatpush1.bf16.msra.mxu0 0
  %4023 = vmatprep.subr.bf16.mxu0 0
  %4024 = vmatpush1.bf16.msra.mxu0 0
  %4025 = vmatprep.subr.bf16.mxu0 0
  %4026 = vmatpush1.bf16.msra.mxu0 0
  %4027 = vmatprep.subr.bf16.mxu0 0
  %4028 = vmatpush1.bf16.msra.mxu0 0
  %4029 = vmatprep.subr.bf16.mxu0 0
  %4030 = vmatpush1.bf16.msra.mxu0 0
  %4031 = vmatprep.mubr.bf16.mxu0 0
  %4032 = vmatmul.mubr.bf16.gmra.mrb[0].mxu0 %v2613
  %v4033 = vpop.f32.mrb[0].mxu0
  %v4034 = vadd.f32 %v3937, %v4033
  %v4035 = vpop.f32.mrb[0].mxu0
  %v4036 = vpop.f32.mrb[0].mxu0
  %v4037 = vadd.f32 %v3940, %v4036
  %v4038 = vpop.f32.mrb[0].mxu0
  %4039 = vmatprep.mubr.bf16.mxu0 0
  %4040 = vmatmul.mubr.bf16.gmra.mrb[0].mxu0 %v2618
  %v4041 = vpop.f32.mrb[0].mxu0
  %v4042 = vadd.f32 %v3945, %v4041
  %v4043 = vpop.f32.mrb[0].mxu0
  %v4044 = vpop.f32.mrb[0].mxu0
  %v4045 = vadd.f32 %v3948, %v4044
  %v4046 = vpop.f32.mrb[0].mxu0
  %4047 = vmatprep.mubr.bf16.mxu0 0
  %4048 = vmatmul.mubr.bf16.gmra.mrb[0].mxu0 %v2623
  %v4049 = vpop.f32.mrb[0].mxu0
  %v4050 = vadd.f32 %v3953, %v4049
  %v4051 = vpop.f32.mrb[0].mxu0
  %v4052 = vpop.f32.mrb[0].mxu0
  %v4053 = vadd.f32 %v3956, %v4052
  %v4054 = vpop.f32.mrb[0].mxu0
  %4055 = vmatprep.mubr.bf16.mxu0 0
  %4056 = vmatmul.mubr.bf16.gmra.mrb[0].mxu0 %v2628
  %v4057 = vpop.f32.mrb[0].mxu0
  %v4058 = vadd.f32 %v3961, %v4057
  %v4059 = vpop.f32.mrb[0].mxu0
  %v4060 = vpop.f32.mrb[0].mxu0
  %v4061 = vadd.f32 %v3964, %v4060
  %v4062 = vpop.f32.mrb[0].mxu0
  %4063 = vmatprep.mubr.bf16.mxu0 0
  %4064 = vmatmul.mubr.bf16.gmra.mrb[0].mxu0 %v2633
  %v4065 = vpop.f32.mrb[0].mxu0
  %v4066 = vadd.f32 %v3969, %v4065
  %v4067 = vpop.f32.mrb[0].mxu0
  %v4068 = vpop.f32.mrb[0].mxu0
  %v4069 = vadd.f32 %v3972, %v4068
  %v4070 = vpop.f32.mrb[0].mxu0
  %4071 = vmatprep.mubr.bf16.mxu0 0
  %4072 = vmatmul.mubr.bf16.gmra.mrb[0].mxu0 %v2638
  %v4073 = vpop.f32.mrb[0].mxu0
  %v4074 = vadd.f32 %v3977, %v4073
  %v4075 = vpop.f32.mrb[0].mxu0
  %v4076 = vpop.f32.mrb[0].mxu0
  %v4077 = vadd.f32 %v3980, %v4076
  %v4078 = vpop.f32.mrb[0].mxu0
  %4079 = vmatprep.mubr.bf16.mxu0 0
  %4080 = vmatmul.mubr.bf16.gmra.mrb[0].mxu0 %v2643
  %v4081 = vpop.f32.mrb[0].mxu0
  %v4082 = vadd.f32 %v3985, %v4081
  %v4083 = vpop.f32.mrb[0].mxu0
  %v4084 = vpop.f32.mrb[0].mxu0
  %v4085 = vadd.f32 %v3988, %v4084
  %v4086 = vpop.f32.mrb[0].mxu0
  %4087 = vmatprep.mubr.bf16.mxu0 0
  %4088 = vmatmul.mubr.bf16.gmra.mrb[0].mxu0 %v2648
  %v4089 = vpop.f32.mrb[0].mxu0
  %v4090 = vadd.f32 %v3993, %v4089
  %v4091 = vpop.f32.mrb[0].mxu0
  %v4092 = vpop.f32.mrb[0].mxu0
  %v4093 = vadd.f32 %v3996, %v4092
  %v4094 = vpop.f32.mrb[0].mxu0
  %4095 = vdwg.mxu0
  %v4096 = vmax.f32 %v3727, 0.0
  %v4097 = vmax.f32 %v3729, 0.0
  %v4098 = vmax.f32 %v4034, 0.0
  %v4099 = vmax.f32 %v3731, 0.0
  %v4100 = vmax.f32 %v3733, 0.0
  %v4101 = vmax.f32 %v4037, 0.0
  %v4102 = vmax.f32 %v3737, 0.0
  %v4103 = vmax.f32 %v3739, 0.0
  %v4104 = vmax.f32 %v4042, 0.0
  %v4105 = vmax.f32 %v3741, 0.0
  %v4106 = vmax.f32 %v3743, 0.0
  %v4107 = vmax.f32 %v4045, 0.0
  %v4108 = vmax.f32 %v3747, 0.0
  %v4109 = vmax.f32 %v3749, 0.0
  %v4110 = vmax.f32 %v4050, 0.0
  %v4111 = vmax.f32 %v3751, 0.0
  %v4112 = vmax.f32 %v3753, 0.0
  %v4113 = vmax.f32 %v4053, 0.0
  %v4114 = vmax.f32 %v3757, 0.0
  %v4115 = vmax.f32 %v3759, 0.0
  %v4116 = vmax.f32 %v4058, 0.0
  %v4117 = vmax.f32 %v3761, 0.0
  %v4118 = vmax.f32 %v3763, 0.0
  %v4119 = vmax.f32 %v4061, 0.0
  %v4120 = vmax.f32 %v3767, 0.0
  %v4121 = vmax.f32 %v3769, 0.0
  %v4122 = vmax.f32 %v4066, 0.0
  %v4123 = vmax.f32 %v3771, 0.0
  %v4124 = vmax.f32 %v3773, 0.0
  %v4125 = vmax.f32 %v4069, 0.0
  %v4126 = vmax.f32 %v3777, 0.0
  %v4127 = vmax.f32 %v3779, 0.0
  %v4128 = vmax.f32 %v4074, 0.0
  %v4129 = vmax.f32 %v3781, 0.0
  %v4130 = vmax.f32 %v3783, 0.0
  %v4131 = vmax.f32 %v4077, 0.0
  %v4132 = vmax.f32 %v3787, 0.0
  %v4133 = vmax.f32 %v3789, 0.0
  %v4134 = vmax.f32 %v4082, 0.0
  %v4135 = vmax.f32 %v3791, 0.0
  %v4136 = vmax.f32 %v3793, 0.0
  %v4137 = vmax.f32 %v4085, 0.0
  %v4138 = vmax.f32 %v3797, 0.0
  %v4139 = vmax.f32 %v3799, 0.0
  %v4140 = vmax.f32 %v4090, 0.0
  %v4141 = vmax.f32 %v3801, 0.0
  %v4142 = vmax.f32 %v3803, 0.0
  %v4143 = vmax.f32 %v4093, 0.0
  %v4144 = vpack.c.bf16 %v4099, %v4096
  %v4145 = vpack.c.bf16 %v4100, %v4097
  %v4146 = vpack.c.bf16 %v4101, %v4098
  %v4147 = vpack.c.bf16 %v4105, %v4102
  %v4148 = vpack.c.bf16 %v4106, %v4103
  %v4149 = vpack.c.bf16 %v4107, %v4104
  %v4150 = vpack.c.bf16 %v4111, %v4108
  %v4151 = vpack.c.bf16 %v4112, %v4109
  %v4152 = vpack.c.bf16 %v4113, %v4110
  %v4153 = vpack.c.bf16 %v4117, %v4114
  %v4154 = vpack.c.bf16 %v4118, %v4115
  %v4155 = vpack.c.bf16 %v4119, %v4116
  %v4156 = vpack.c.bf16 %v4123, %v4120
  %v4157 = vpack.c.bf16 %v4124, %v4121
  %v4158 = vpack.c.bf16 %v4125, %v4122
  %v4159 = vpack.c.bf16 %v4129, %v4126
  %v4160 = vpack.c.bf16 %v4130, %v4127
  %v4161 = vpack.c.bf16 %v4131, %v4128
  %v4162 = vpack.c.bf16 %v4135, %v4132
  %v4163 = vpack.c.bf16 %v4136, %v4133
  %v4164 = vpack.c.bf16 %v4137, %v4134
  %v4165 = vpack.c.bf16 %v4141, %v4138
  %v4166 = vpack.c.bf16 %v4142, %v4139
  %v4167 = vpack.c.bf16 %v4143, %v4140
  %v4168 = vld [vmem:[%s5] sm:$0xf]
  %v4169 = vld [vmem:[%s5 + $0x4] sm:$0xf]
  %v4170 = vld [vmem:[%s5 + $0x8] sm:$0xf]
  %v4171 = vld [vmem:[%s5 + $0xc] sm:$0xf]
  %v4172 = vld [vmem:[%s5 + $0x10] sm:$0xf]
  %v4173 = vld [vmem:[%s5 + $0x14] sm:$0xf]
  %v4174 = vld [vmem:[%s5 + $0x18] sm:$0xf]
  %v4175 = vld [vmem:[%s5 + $0x1c] sm:$0xf]
  %v4176 = vld [vmem:[%s5 + $0x20] sm:$0xf]
  %v4177 = vld [vmem:[%s5 + $0x24] sm:$0xf]
  %v4178 = vld [vmem:[%s5 + $0x28] sm:$0xf]
  %v4179 = vld [vmem:[%s5 + $0x2c] sm:$0xf]
  %v4180 = vld [vmem:[%s5 + $0x30] sm:$0xf]
  %v4181 = vld [vmem:[%s5 + $0x34] sm:$0xf]
  %v4182 = vld [vmem:[%s5 + $0x38] sm:$0xf]
  %v4183 = vld [vmem:[%s5 + $0x3c] sm:$0xf]
  %v4184 = vld [vmem:[%s5 + $0x40] sm:$0xf]
  %v4185 = vld [vmem:[%s5 + $0x44] sm:$0xf]
  %v4186 = vld [vmem:[%s5 + $0x48] sm:$0xf]
  %v4187 = vld [vmem:[%s5 + $0x4c] sm:$0xf]
  %v4188 = vld [vmem:[%s5 + $0x50] sm:$0xf]
  %v4189 = vld [vmem:[%s5 + $0x54] sm:$0xf]
  %v4190 = vld [vmem:[%s5 + $0x58] sm:$0xf]
  %v4191 = vld [vmem:[%s5 + $0x5c] sm:$0xf]
  %v4192 = vld [vmem:[%s5 + $0x60] sm:$0xf]
  %v4193 = vld [vmem:[%s5 + $0x64] sm:$0xf]
  %v4194 = vld [vmem:[%s5 + $0x68] sm:$0xf]
  %v4195 = vld [vmem:[%s5 + $0x6c] sm:$0xf]
  %v4196 = vld [vmem:[%s5 + $0x70] sm:$0xf]
  %v4197 = vld [vmem:[%s5 + $0x74] sm:$0xf]
  %v4198 = vld [vmem:[%s5 + $0x78] sm:$0xf]
  %v4199 = vld [vmem:[%s5 + $0x7c] sm:$0xf]
  %v4200 = vld [vmem:[%s5 + $0x80] sm:$0xf]
  %v4201 = vld [vmem:[%s5 + $0x84] sm:$0xf]
  %v4202 = vld [vmem:[%s5 + $0x88] sm:$0xf]
  %v4203 = vld [vmem:[%s5 + $0x8c] sm:$0xf]
  %v4204 = vld [vmem:[%s5 + $0x90] sm:$0x1]
  %v4205 = vld [vmem:[%s6] sm:$0x1]
  %v4207 = vlaneseq
  %v4208 = vshrl.u32 %v4207, 7
  %v4209 = vsub.s32 0, %v4208
  %v4210 = vrot.slane %v4205, %v4209
  %v4249 = vunpack.c.l.b16 %v4168
  %v4250 = vunpack.c.l.b16 %v4169
  %v4251 = vunpack.c.l.b16 %v4170
  %v4252 = vunpack.c.l.b16 %v4171
  %v4253 = vunpack.c.l.b16 %v4172
  %v4254 = vunpack.c.l.b16 %v4173
  %v4255 = vunpack.c.l.b16 %v4174
  %v4256 = vunpack.c.l.b16 %v4175
  %v4257 = vunpack.c.l.b16 %v4176
  %v4258 = vunpack.c.l.b16 %v4177
  %v4259 = vunpack.c.l.b16 %v4178
  %v4260 = vunpack.c.l.b16 %v4179
  %v4261 = vunpack.c.l.b16 %v4180
  %v4262 = vunpack.c.l.b16 %v4181
  %v4263 = vunpack.c.l.b16 %v4182
  %v4264 = vunpack.c.l.b16 %v4183
  %v4265 = vunpack.c.l.b16 %v4184
  %v4266 = vunpack.c.l.b16 %v4185
  %v4267 = vunpack.c.l.b16 %v4186
  %v4268 = vunpack.c.l.b16 %v4187
  %v4269 = vunpack.c.l.b16 %v4188
  %v4270 = vunpack.c.l.b16 %v4189
  %v4271 = vunpack.c.l.b16 %v4190
  %v4272 = vunpack.c.l.b16 %v4191
  %v4273 = vunpack.c.l.b16 %v4192
  %v4274 = vunpack.c.l.b16 %v4193
  %v4275 = vunpack.c.l.b16 %v4194
  %v4276 = vunpack.c.l.b16 %v4195
  %v4277 = vunpack.c.l.b16 %v4196
  %v4278 = vunpack.c.l.b16 %v4197
  %v4279 = vunpack.c.l.b16 %v4198
  %v4280 = vunpack.c.l.b16 %v4199
  %v4281 = vunpack.c.l.b16 %v4200
  %v4282 = vunpack.c.l.b16 %v4201
  %v4283 = vunpack.c.l.b16 %v4202
  %v4284 = vunpack.c.l.b16 %v4203
  %v4285 = vunpack.c.l.b16 %v4204
  %v4286 = vpack.c.b16 %v4250, %v4249
  %v4287 = vpack.c.b16 %v4252, %v4251
  %v4288 = vpack.c.b16 %v4254, %v4253
  %v4289 = vpack.c.b16 %v4256, %v4255
  %v4290 = vpack.c.b16 %v4258, %v4257
  %v4291 = vpack.c.b16 %v4260, %v4259
  %v4292 = vpack.c.b16 %v4262, %v4261
  %v4293 = vpack.c.b16 %v4264, %v4263
  %v4294 = vpack.c.b16 %v4266, %v4265
  %v4295 = vpack.c.b16 %v4268, %v4267
  %v4296 = vpack.c.b16 %v4270, %v4269
  %v4297 = vpack.c.b16 %v4272, %v4271
  %v4298 = vpack.c.b16 %v4274, %v4273
  %v4299 = vpack.c.b16 %v4276, %v4275
  %v4300 = vpack.c.b16 %v4278, %v4277
  %v4301 = vpack.c.b16 %v4280, %v4279
  %v4302 = vpack.c.b16 %v4282, %v4281
  %v4303 = vpack.c.b16 %v4284, %v4283
  %v4304 = vpack.c.b16 %v4285, %v4285
  %vm4323 = vcmask 277504
  %v4325 = vsel %vm4323, %v4146, 0
  %v4328 = vsel %vm4323, %v4149, 0
  %v4331 = vsel %vm4323, %v4152, 0
  %v4334 = vsel %vm4323, %v4155, 0
  %v4337 = vsel %vm4323, %v4158, 0
  %v4340 = vsel %vm4323, %v4161, 0
  %v4343 = vsel %vm4323, %v4164, 0
  %v4346 = vsel %vm4323, %v4167, 0
  %vm4348 = vcmask 1040384
  %v4350 = vsel %vm4348, %v4304, 0
  %4352 = vmatprep.subr.bf16.mxu0 0
  %4353 = vmatpush1.bf16.msra.mxu0 %v4286
  %4354 = vmatprep.subr.bf16.mxu0 0
  %4355 = vmatpush1.bf16.msra.mxu0 %v4287
  %4356 = vmatprep.subr.bf16.mxu0 0
  %4357 = vmatpush1.bf16.msra.mxu0 %v4288
  %4358 = vmatprep.subr.bf16.mxu0 0
  %4359 = vmatpush1.bf16.msra.mxu0 %v4289
  %4360 = vmatprep.subr.bf16.mxu0 0
  %4361 = vmatpush1.bf16.msra.mxu0 %v4290
  %4362 = vmatprep.subr.bf16.mxu0 0
  %4363 = vmatpush1.bf16.msra.mxu0 %v4291
  %4364 = vmatprep.subr.bf16.mxu0 0
  %4365 = vmatpush1.bf16.msra.mxu0 %v4292
  %4366 = vmatprep.subr.bf16.mxu0 0
  %4367 = vmatpush1.bf16.msra.mxu0 %v4293
  %4368 = vmatprep.subr.bf16.mxu0 0
  %4369 = vmatpush1.bf16.msra.mxu0 %v4294
  %4370 = vmatprep.subr.bf16.mxu0 0
  %4371 = vmatpush1.bf16.msra.mxu0 %v4295
  %4372 = vmatprep.subr.bf16.mxu0 0
  %4373 = vmatpush1.bf16.msra.mxu0 %v4296
  %4374 = vmatprep.subr.bf16.mxu0 0
  %4375 = vmatpush1.bf16.msra.mxu0 %v4297
  %4376 = vmatprep.subr.bf16.mxu0 0
  %4377 = vmatpush1.bf16.msra.mxu0 %v4298
  %4378 = vmatprep.subr.bf16.mxu0 0
  %4379 = vmatpush1.bf16.msra.mxu0 %v4299
  %4380 = vmatprep.subr.bf16.mxu0 0
  %4381 = vmatpush1.bf16.msra.mxu0 %v4300
  %4382 = vmatprep.subr.bf16.mxu0 0
  %4383 = vmatpush1.bf16.msra.mxu0 %v4301
  %4384 = vmatprep.mubr.bf16.mxu0 %v4145
  %4385 = vmatmul.mubr.bf16.gmra.mrb[0].mxu0 %v4144
  %v4386 = vpop.f32.mrb[0].mxu0
  %v4387 = vadd.f32 %v4210, %v4386
  %v4388 = vpop.f32.mrb[0].mxu0
  %v4389 = vpop.f32.mrb[0].mxu0
  %v4390 = vadd.f32 %v4210, %v4389
  %v4391 = vpop.f32.mrb[0].mxu0
  %4392 = vmatprep.mubr.bf16.mxu0 %v4148
  %4393 = vmatmul.mubr.bf16.gmra.mrb[0].mxu0 %v4147
  %v4394 = vpop.f32.mrb[0].mxu0
  %v4395 = vadd.f32 %v4210, %v4394
  %v4396 = vpop.f32.mrb[0].mxu0
  %v4397 = vpop.f32.mrb[0].mxu0
  %v4398 = vadd.f32 %v4210, %v4397
  %v4399 = vpop.f32.mrb[0].mxu0
  %4400 = vmatprep.mubr.bf16.mxu0 %v4151
  %4401 = vmatmul.mubr.bf16.gmra.mrb[0].mxu0 %v4150
  %v4402 = vpop.f32.mrb[0].mxu0
  %v4403 = vadd.f32 %v4210, %v4402
  %v4404 = vpop.f32.mrb[0].mxu0
  %v4405 = vpop.f32.mrb[0].mxu0
  %v4406 = vadd.f32 %v4210, %v4405
  %v4407 = vpop.f32.mrb[0].mxu0
  %4408 = vmatprep.mubr.bf16.mxu0 %v4154
  %4409 = vmatmul.mubr.bf16.gmra.mrb[0].mxu0 %v4153
  %v4410 = vpop.f32.mrb[0].mxu0
  %v4411 = vadd.f32 %v4210, %v4410
  %v4412 = vpop.f32.mrb[0].mxu0
  %v4413 = vpop.f32.mrb[0].mxu0
  %v4414 = vadd.f32 %v4210, %v4413
  %v4415 = vpop.f32.mrb[0].mxu0
  %4416 = vmatprep.mubr.bf16.mxu0 %v4157
  %4417 = vmatmul.mubr.bf16.gmra.mrb[0].mxu0 %v4156
  %v4418 = vpop.f32.mrb[0].mxu0
  %v4419 = vadd.f32 %v4210, %v4418
  %v4420 = vpop.f32.mrb[0].mxu0
  %v4421 = vpop.f32.mrb[0].mxu0
  %v4422 = vadd.f32 %v4210, %v4421
  %v4423 = vpop.f32.mrb[0].mxu0
  %4424 = vmatprep.mubr.bf16.mxu0 %v4160
  %4425 = vmatmul.mubr.bf16.gmra.mrb[0].mxu0 %v4159
  %v4426 = vpop.f32.mrb[0].mxu0
  %v4427 = vadd.f32 %v4210, %v4426
  %v4428 = vpop.f32.mrb[0].mxu0
  %v4429 = vpop.f32.mrb[0].mxu0
  %v4430 = vadd.f32 %v4210, %v4429
  %v4431 = vpop.f32.mrb[0].mxu0
  %4432 = vmatprep.mubr.bf16.mxu0 %v4163
  %4433 = vmatmul.mubr.bf16.gmra.mrb[0].mxu0 %v4162
  %v4434 = vpop.f32.mrb[0].mxu0
  %v4435 = vadd.f32 %v4210, %v4434
  %v4436 = vpop.f32.mrb[0].mxu0
  %v4437 = vpop.f32.mrb[0].mxu0
  %v4438 = vadd.f32 %v4210, %v4437
  %v4439 = vpop.f32.mrb[0].mxu0
  %4440 = vmatprep.mubr.bf16.mxu0 %v4166
  %4441 = vmatmul.mubr.bf16.gmra.mrb[0].mxu0 %v4165
  %v4442 = vpop.f32.mrb[0].mxu0
  %v4443 = vadd.f32 %v4210, %v4442
  %v4444 = vpop.f32.mrb[0].mxu0
  %v4445 = vpop.f32.mrb[0].mxu0
  %v4446 = vadd.f32 %v4210, %v4445
  %v4447 = vpop.f32.mrb[0].mxu0
  %4448 = vdwg.mxu0
  %4449 = vmatprep.subr.bf16.mxu0 0
  %4450 = vmatpush1.bf16.msra.mxu0 %v4302
  %4451 = vmatprep.subr.bf16.mxu0 0
  %4452 = vmatpush1.bf16.msra.mxu0 %v4303
  %4453 = vmatprep.subr.bf16.mxu0 0
  %4454 = vmatpush1.bf16.msra.mxu0 %v4350
  %4455 = vmatprep.subr.bf16.mxu0 0
  %4456 = vmatpush1.bf16.msra.mxu0 0
  %4457 = vmatprep.subr.bf16.mxu0 0
  %4458 = vmatpush1.bf16.msra.mxu0 0
  %4459 = vmatprep.subr.bf16.mxu0 0
  %4460 = vmatpush1.bf16.msra.mxu0 0
  %4461 = vmatprep.subr.bf16.mxu0 0
  %4462 = vmatpush1.bf16.msra.mxu0 0
  %4463 = vmatprep.subr.bf16.mxu0 0
  %4464 = vmatpush1.bf16.msra.mxu0 0
  %4465 = vmatprep.subr.bf16.mxu0 0
  %4466 = vmatpush1.bf16.msra.mxu0 0
  %4467 = vmatprep.subr.bf16.mxu0 0
  %4468 = vmatpush1.bf16.msra.mxu0 0
  %4469 = vmatprep.subr.bf16.mxu0 0
  %4470 = vmatpush1.bf16.msra.mxu0 0
  %4471 = vmatprep.subr.bf16.mxu0 0
  %4472 = vmatpush1.bf16.msra.mxu0 0
  %4473 = vmatprep.subr.bf16.mxu0 0
  %4474 = vmatpush1.bf16.msra.mxu0 0
  %4475 = vmatprep.subr.bf16.mxu0 0
  %4476 = vmatpush1.bf16.msra.mxu0 0
  %4477 = vmatprep.subr.bf16.mxu0 0
  %4478 = vmatpush1.bf16.msra.mxu0 0
  %4479 = vmatprep.subr.bf16.mxu0 0
  %4480 = vmatpush1.bf16.msra.mxu0 0
  %4481 = vmatprep.mubr.bf16.mxu0 0
  %4482 = vmatmul.mubr.bf16.gmra.mrb[0].mxu0 %v4325
  %v4483 = vpop.f32.mrb[0].mxu0
  %v4484 = vadd.f32 %v4387, %v4483
  %v4485 = vpop.f32.mrb[0].mxu0
  %v4486 = vpop.f32.mrb[0].mxu0
  %v4487 = vadd.f32 %v4390, %v4486
  %v4488 = vpop.f32.mrb[0].mxu0
  %4489 = vmatprep.mubr.bf16.mxu0 0
  %4490 = vmatmul.mubr.bf16.gmra.mrb[0].mxu0 %v4328
  %v4491 = vpop.f32.mrb[0].mxu0
  %v4492 = vadd.f32 %v4395, %v4491
  %v4493 = vpop.f32.mrb[0].mxu0
  %v4494 = vpop.f32.mrb[0].mxu0
  %v4495 = vadd.f32 %v4398, %v4494
  %v4496 = vpop.f32.mrb[0].mxu0
  %4497 = vmatprep.mubr.bf16.mxu0 0
  %4498 = vmatmul.mubr.bf16.gmra.mrb[0].mxu0 %v4331
  %v4499 = vpop.f32.mrb[0].mxu0
  %v4500 = vadd.f32 %v4403, %v4499
  %v4501 = vpop.f32.mrb[0].mxu0
  %v4502 = vpop.f32.mrb[0].mxu0
  %v4503 = vadd.f32 %v4406, %v4502
  %v4504 = vpop.f32.mrb[0].mxu0
  %4505 = vmatprep.mubr.bf16.mxu0 0
  %4506 = vmatmul.mubr.bf16.gmra.mrb[0].mxu0 %v4334
  %v4507 = vpop.f32.mrb[0].mxu0
  %v4508 = vadd.f32 %v4411, %v4507
  %v4509 = vpop.f32.mrb[0].mxu0
  %v4510 = vpop.f32.mrb[0].mxu0
  %v4511 = vadd.f32 %v4414, %v4510
  %v4512 = vpop.f32.mrb[0].mxu0
  %4513 = vmatprep.mubr.bf16.mxu0 0
  %4514 = vmatmul.mubr.bf16.gmra.mrb[0].mxu0 %v4337
  %v4515 = vpop.f32.mrb[0].mxu0
  %v4516 = vadd.f32 %v4419, %v4515
  %v4517 = vpop.f32.mrb[0].mxu0
  %v4518 = vpop.f32.mrb[0].mxu0
  %v4519 = vadd.f32 %v4422, %v4518
  %v4520 = vpop.f32.mrb[0].mxu0
  %4521 = vmatprep.mubr.bf16.mxu0 0
  %4522 = vmatmul.mubr.bf16.gmra.mrb[0].mxu0 %v4340
  %v4523 = vpop.f32.mrb[0].mxu0
  %v4524 = vadd.f32 %v4427, %v4523
  %v4525 = vpop.f32.mrb[0].mxu0
  %v4526 = vpop.f32.mrb[0].mxu0
  %v4527 = vadd.f32 %v4430, %v4526
  %v4528 = vpop.f32.mrb[0].mxu0
  %4529 = vmatprep.mubr.bf16.mxu0 0
  %4530 = vmatmul.mubr.bf16.gmra.mrb[0].mxu0 %v4343
  %v4531 = vpop.f32.mrb[0].mxu0
  %v4532 = vadd.f32 %v4435, %v4531
  %v4533 = vpop.f32.mrb[0].mxu0
  %v4534 = vpop.f32.mrb[0].mxu0
  %v4535 = vadd.f32 %v4438, %v4534
  %v4536 = vpop.f32.mrb[0].mxu0
  %4537 = vmatprep.mubr.bf16.mxu0 0
  %4538 = vmatmul.mubr.bf16.gmra.mrb[0].mxu0 %v4346
  %v4539 = vpop.f32.mrb[0].mxu0
  %v4540 = vadd.f32 %v4443, %v4539
  %v4541 = vpop.f32.mrb[0].mxu0
  %v4542 = vpop.f32.mrb[0].mxu0
  %v4543 = vadd.f32 %v4446, %v4542
  %v4544 = vpop.f32.mrb[0].mxu0
  %4545 = vdwg.mxu0
  %v4546 = vmax.f32 %v4484, 0.0
  %v4547 = vmax.f32 %v4487, 0.0
  %v4548 = vmax.f32 %v4492, 0.0
  %v4549 = vmax.f32 %v4495, 0.0
  %v4550 = vmax.f32 %v4500, 0.0
  %v4551 = vmax.f32 %v4503, 0.0
  %v4552 = vmax.f32 %v4508, 0.0
  %v4553 = vmax.f32 %v4511, 0.0
  %v4554 = vmax.f32 %v4516, 0.0
  %v4555 = vmax.f32 %v4519, 0.0
  %v4556 = vmax.f32 %v4524, 0.0
  %v4557 = vmax.f32 %v4527, 0.0
  %v4558 = vmax.f32 %v4532, 0.0
  %v4559 = vmax.f32 %v4535, 0.0
  %v4560 = vmax.f32 %v4540, 0.0
  %v4561 = vmax.f32 %v4543, 0.0
  %v4562 = vpack.c.bf16 %v4547, %v4546
  %v4563 = vpack.c.bf16 %v4549, %v4548
  %v4564 = vpack.c.bf16 %v4551, %v4550
  %v4565 = vpack.c.bf16 %v4553, %v4552
  %v4566 = vpack.c.bf16 %v4555, %v4554
  %v4567 = vpack.c.bf16 %v4557, %v4556
  %v4568 = vpack.c.bf16 %v4559, %v4558
  %v4569 = vpack.c.bf16 %v4561, %v4560
  %v4570 = vld [vmem:[%s7] sm:$0xf]
  %v4571 = vld [vmem:[%s7 + $0x4] sm:$0xf]
  %v4572 = vld [vmem:[%s7 + $0x8] sm:$0xf]
  %v4573 = vld [vmem:[%s7 + $0xc] sm:$0xf]
  %v4574 = vld [vmem:[%s7 + $0x10] sm:$0xf]
  %v4575 = vld [vmem:[%s7 + $0x14] sm:$0xf]
  %v4576 = vld [vmem:[%s7 + $0x18] sm:$0xf]
  %v4577 = vld [vmem:[%s7 + $0x1c] sm:$0xf]
  %v4578 = vld [vmem:[%s7 + $0x20] sm:$0xf]
  %v4579 = vld [vmem:[%s7 + $0x24] sm:$0xf]
  %v4580 = vld [vmem:[%s7 + $0x28] sm:$0xf]
  %v4581 = vld [vmem:[%s7 + $0x2c] sm:$0xf]
  %v4582 = vld [vmem:[%s7 + $0x30] sm:$0xf]
  %v4583 = vld [vmem:[%s7 + $0x34] sm:$0xf]
  %v4584 = vld [vmem:[%s7 + $0x38] sm:$0xf]
  %v4585 = vld [vmem:[%s7 + $0x3c] sm:$0xf]
  %v4586 = vld [vmem:[%s8] sm:$0x1]
  %v4588 = vlaneseq
  %v4589 = vshrl.u32 %v4588, 7
  %v4590 = vsub.s32 0, %v4589
  %v4591 = vrot.slane %v4586, %v4590
  %v4609 = vunpack.c.l.b16 %v4570
  %v4610 = vunpack.c.l.b16 %v4571
  %v4611 = vunpack.c.l.b16 %v4572
  %v4612 = vunpack.c.l.b16 %v4573
  %v4613 = vunpack.c.l.b16 %v4574
  %v4614 = vunpack.c.l.b16 %v4575
  %v4615 = vunpack.c.l.b16 %v4576
  %v4616 = vunpack.c.l.b16 %v4577
  %v4617 = vunpack.c.l.b16 %v4578
  %v4618 = vunpack.c.l.b16 %v4579
  %v4619 = vunpack.c.l.b16 %v4580
  %v4620 = vunpack.c.l.b16 %v4581
  %v4621 = vunpack.c.l.b16 %v4582
  %v4622 = vunpack.c.l.b16 %v4583
  %v4623 = vunpack.c.l.b16 %v4584
  %v4624 = vunpack.c.l.b16 %v4585
  %v4625 = vpack.c.b16 %v4610, %v4609
  %v4626 = vpack.c.b16 %v4612, %v4611
  %v4627 = vpack.c.b16 %v4614, %v4613
  %v4628 = vpack.c.b16 %v4616, %v4615
  %v4629 = vpack.c.b16 %v4618, %v4617
  %v4630 = vpack.c.b16 %v4620, %v4619
  %v4631 = vpack.c.b16 %v4622, %v4621
  %v4632 = vpack.c.b16 %v4624, %v4623
  %4641 = vmatprep.subr.bf16.mxu0 0
  %4642 = vmatpush1.bf16.msra.mxu0 %v4625
  %4643 = vmatprep.subr.bf16.mxu0 0
  %4644 = vmatpush1.bf16.msra.mxu0 %v4626
  %4645 = vmatprep.subr.bf16.mxu0 0
  %4646 = vmatpush1.bf16.msra.mxu0 %v4627
  %4647 = vmatprep.subr.bf16.mxu0 0
  %4648 = vmatpush1.bf16.msra.mxu0 %v4628
  %4649 = vmatprep.subr.bf16.mxu0 0
  %4650 = vmatpush1.bf16.msra.mxu0 %v4629
  %4651 = vmatprep.subr.bf16.mxu0 0
  %4652 = vmatpush1.bf16.msra.mxu0 %v4630
  %4653 = vmatprep.subr.bf16.mxu0 0
  %4654 = vmatpush1.bf16.msra.mxu0 %v4631
  %4655 = vmatprep.subr.bf16.mxu0 0
  %4656 = vmatpush1.bf16.msra.mxu0 %v4632
  %4657 = vmatprep.subr.bf16.mxu0 0
  %4658 = vmatpush1.bf16.msra.mxu0 0
  %4659 = vmatprep.subr.bf16.mxu0 0
  %4660 = vmatpush1.bf16.msra.mxu0 0
  %4661 = vmatprep.subr.bf16.mxu0 0
  %4662 = vmatpush1.bf16.msra.mxu0 0
  %4663 = vmatprep.subr.bf16.mxu0 0
  %4664 = vmatpush1.bf16.msra.mxu0 0
  %4665 = vmatprep.subr.bf16.mxu0 0
  %4666 = vmatpush1.bf16.msra.mxu0 0
  %4667 = vmatprep.subr.bf16.mxu0 0
  %4668 = vmatpush1.bf16.msra.mxu0 0
  %4669 = vmatprep.subr.bf16.mxu0 0
  %4670 = vmatpush1.bf16.msra.mxu0 0
  %4671 = vmatprep.subr.bf16.mxu0 0
  %4672 = vmatpush1.bf16.msra.mxu0 0
  %4673 = vmatprep.mubr.bf16.mxu0 0
  %4674 = vmatmul.mubr.bf16.gmra.mrb[0].mxu0 %v4562
  %v4675 = vpop.f32.mrb[0].mxu0
  %v4676 = vadd.f32 %v4591, %v4675
  %v4677 = vpop.f32.mrb[0].mxu0
  %v4678 = vpop.f32.mrb[0].mxu0
  %v4679 = vadd.f32 %v4591, %v4678
  %v4680 = vpop.f32.mrb[0].mxu0
  %4681 = vmatprep.mubr.bf16.mxu0 0
  %4682 = vmatmul.mubr.bf16.gmra.mrb[0].mxu0 %v4563
  %v4683 = vpop.f32.mrb[0].mxu0
  %v4684 = vadd.f32 %v4591, %v4683
  %v4685 = vpop.f32.mrb[0].mxu0
  %v4686 = vpop.f32.mrb[0].mxu0
  %v4687 = vadd.f32 %v4591, %v4686
  %v4688 = vpop.f32.mrb[0].mxu0
  %4689 = vmatprep.mubr.bf16.mxu0 0
  %4690 = vmatmul.mubr.bf16.gmra.mrb[0].mxu0 %v4564
  %v4691 = vpop.f32.mrb[0].mxu0
  %v4692 = vadd.f32 %v4591, %v4691
  %v4693 = vpop.f32.mrb[0].mxu0
  %v4694 = vpop.f32.mrb[0].mxu0
  %v4695 = vadd.f32 %v4591, %v4694
  %v4696 = vpop.f32.mrb[0].mxu0
  %4697 = vmatprep.mubr.bf16.mxu0 0
  %4698 = vmatmul.mubr.bf16.gmra.mrb[0].mxu0 %v4565
  %v4699 = vpop.f32.mrb[0].mxu0
  %v4700 = vadd.f32 %v4591, %v4699
  %v4701 = vpop.f32.mrb[0].mxu0
  %v4702 = vpop.f32.mrb[0].mxu0
  %v4703 = vadd.f32 %v4591, %v4702
  %v4704 = vpop.f32.mrb[0].mxu0
  %4705 = vmatprep.mubr.bf16.mxu0 0
  %4706 = vmatmul.mubr.bf16.gmra.mrb[0].mxu0 %v4566
  %v4707 = vpop.f32.mrb[0].mxu0
  %v4708 = vadd.f32 %v4591, %v4707
  %v4709 = vpop.f32.mrb[0].mxu0
  %v4710 = vpop.f32.mrb[0].mxu0
  %v4711 = vadd.f32 %v4591, %v4710
  %v4712 = vpop.f32.mrb[0].mxu0
  %4713 = vmatprep.mubr.bf16.mxu0 0
  %4714 = vmatmul.mubr.bf16.gmra.mrb[0].mxu0 %v4567
  %v4715 = vpop.f32.mrb[0].mxu0
  %v4716 = vadd.f32 %v4591, %v4715
  %v4717 = vpop.f32.mrb[0].mxu0
  %v4718 = vpop.f32.mrb[0].mxu0
  %v4719 = vadd.f32 %v4591, %v4718
  %v4720 = vpop.f32.mrb[0].mxu0
  %4721 = vmatprep.mubr.bf16.mxu0 0
  %4722 = vmatmul.mubr.bf16.gmra.mrb[0].mxu0 %v4568
  %v4723 = vpop.f32.mrb[0].mxu0
  %v4724 = vadd.f32 %v4591, %v4723
  %v4725 = vpop.f32.mrb[0].mxu0
  %v4726 = vpop.f32.mrb[0].mxu0
  %v4727 = vadd.f32 %v4591, %v4726
  %v4728 = vpop.f32.mrb[0].mxu0
  %4729 = vmatprep.mubr.bf16.mxu0 0
  %4730 = vmatmul.mubr.bf16.gmra.mrb[0].mxu0 %v4569
  %v4731 = vpop.f32.mrb[0].mxu0
  %v4732 = vadd.f32 %v4591, %v4731
  %v4733 = vpop.f32.mrb[0].mxu0
  %v4734 = vpop.f32.mrb[0].mxu0
  %v4735 = vadd.f32 %v4591, %v4734
  %v4736 = vpop.f32.mrb[0].mxu0
  %4737 = vdwg.mxu0
  %v4738 = vmax.f32 %v4676, 0.0
  %v4739 = vmax.f32 %v4679, 0.0
  %v4740 = vmax.f32 %v4684, 0.0
  %v4741 = vmax.f32 %v4687, 0.0
  %v4742 = vmax.f32 %v4692, 0.0
  %v4743 = vmax.f32 %v4695, 0.0
  %v4744 = vmax.f32 %v4700, 0.0
  %v4745 = vmax.f32 %v4703, 0.0
  %v4746 = vmax.f32 %v4708, 0.0
  %v4747 = vmax.f32 %v4711, 0.0
  %v4748 = vmax.f32 %v4716, 0.0
  %v4749 = vmax.f32 %v4719, 0.0
  %v4750 = vmax.f32 %v4724, 0.0
  %v4751 = vmax.f32 %v4727, 0.0
  %v4752 = vmax.f32 %v4732, 0.0
  %v4753 = vmax.f32 %v4735, 0.0
  %v4754 = vpack.c.bf16 %v4739, %v4738
  %v4755 = vpack.c.bf16 %v4741, %v4740
  %v4756 = vpack.c.bf16 %v4743, %v4742
  %v4757 = vpack.c.bf16 %v4745, %v4744
  %v4758 = vpack.c.bf16 %v4747, %v4746
  %v4759 = vpack.c.bf16 %v4749, %v4748
  %v4760 = vpack.c.bf16 %v4751, %v4750
  %v4761 = vpack.c.bf16 %v4753, %v4752
  %v4762 = vld [vmem:[%s9] sm:$0xf]
  %v4763 = vld [vmem:[%s9 + $0x4] sm:$0xf]
  %v4764 = vld [vmem:[%s9 + $0x8] sm:$0xf]
  %v4765 = vld [vmem:[%s9 + $0xc] sm:$0xf]
  %v4766 = vld [vmem:[%s9 + $0x10] sm:$0xf]
  %v4767 = vld [vmem:[%s9 + $0x14] sm:$0xf]
  %v4768 = vld [vmem:[%s9 + $0x18] sm:$0xf]
  %v4769 = vld [vmem:[%s9 + $0x1c] sm:$0xf]
  %v4770 = vld [vmem:[%s10] sm:$0x1]
  %v4772 = vlaneseq
  %v4773 = vshrl.u32 %v4772, 7
  %v4774 = vsub.s32 0, %v4773
  %v4775 = vrot.slane %v4770, %v4774
  %v4785 = vunpack.c.l.b16 %v4762
  %v4786 = vunpack.c.l.b16 %v4763
  %v4787 = vunpack.c.l.b16 %v4764
  %v4788 = vunpack.c.l.b16 %v4765
  %v4789 = vunpack.c.l.b16 %v4766
  %v4790 = vunpack.c.l.b16 %v4767
  %v4791 = vunpack.c.l.b16 %v4768
  %v4792 = vunpack.c.l.b16 %v4769
  %v4793 = vpack.c.b16 %v4786, %v4785
  %v4794 = vpack.c.b16 %v4788, %v4787
  %v4795 = vpack.c.b16 %v4790, %v4789
  %v4796 = vpack.c.b16 %v4792, %v4791
  %vm4801 = vcmask 523264
  %v4803 = vsel %vm4801, %v4754, 0
  %v4806 = vsel %vm4801, %v4755, 0
  %v4809 = vsel %vm4801, %v4756, 0
  %v4812 = vsel %vm4801, %v4757, 0
  %v4815 = vsel %vm4801, %v4758, 0
  %v4818 = vsel %vm4801, %v4759, 0
  %v4821 = vsel %vm4801, %v4760, 0
  %v4824 = vsel %vm4801, %v4761, 0
  %4826 = vmatprep.subr.bf16.mxu0 0
  %4827 = vmatpush1.bf16.msra.mxu0 %v4793
  %4828 = vmatprep.subr.bf16.mxu0 0
  %4829 = vmatpush1.bf16.msra.mxu0 %v4794
  %4830 = vmatprep.subr.bf16.mxu0 0
  %4831 = vmatpush1.bf16.msra.mxu0 %v4795
  %4832 = vmatprep.subr.bf16.mxu0 0
  %4833 = vmatpush1.bf16.msra.mxu0 %v4796
  %4834 = vmatprep.subr.bf16.mxu0 0
  %4835 = vmatpush1.bf16.msra.mxu0 0
  %4836 = vmatprep.subr.bf16.mxu0 0
  %4837 = vmatpush1.bf16.msra.mxu0 0
  %4838 = vmatprep.subr.bf16.mxu0 0
  %4839 = vmatpush1.bf16.msra.mxu0 0
  %4840 = vmatprep.subr.bf16.mxu0 0
  %4841 = vmatpush1.bf16.msra.mxu0 0
  %4842 = vmatprep.subr.bf16.mxu0 0
  %4843 = vmatpush1.bf16.msra.mxu0 0
  %4844 = vmatprep.subr.bf16.mxu0 0
  %4845 = vmatpush1.bf16.msra.mxu0 0
  %4846 = vmatprep.subr.bf16.mxu0 0
  %4847 = vmatpush1.bf16.msra.mxu0 0
  %4848 = vmatprep.subr.bf16.mxu0 0
  %4849 = vmatpush1.bf16.msra.mxu0 0
  %4850 = vmatprep.subr.bf16.mxu0 0
  %4851 = vmatpush1.bf16.msra.mxu0 0
  %4852 = vmatprep.subr.bf16.mxu0 0
  %4853 = vmatpush1.bf16.msra.mxu0 0
  %4854 = vmatprep.subr.bf16.mxu0 0
  %4855 = vmatpush1.bf16.msra.mxu0 0
  %4856 = vmatprep.subr.bf16.mxu0 0
  %4857 = vmatpush1.bf16.msra.mxu0 0
  %4858 = vmatprep.mubr.bf16.mxu0 0
  %4859 = vmatmul.mubr.bf16.gmra.mrb[0].mxu0 %v4803
  %v4860 = vpop.f32.mrb[0].mxu0
  %v4861 = vadd.f32 %v4775, %v4860
  %v4862 = vpop.f32.mrb[0].mxu0
  %v4863 = vpop.f32.mrb[0].mxu0
  %v4864 = vadd.f32 %v4775, %v4863
  %v4865 = vpop.f32.mrb[0].mxu0
  %4866 = vmatprep.mubr.bf16.mxu0 0
  %4867 = vmatmul.mubr.bf16.gmra.mrb[0].mxu0 %v4806
  %v4868 = vpop.f32.mrb[0].mxu0
  %v4869 = vadd.f32 %v4775, %v4868
  %v4870 = vpop.f32.mrb[0].mxu0
  %v4871 = vpop.f32.mrb[0].mxu0
  %v4872 = vadd.f32 %v4775, %v4871
  %v4873 = vpop.f32.mrb[0].mxu0
  %4874 = vmatprep.mubr.bf16.mxu0 0
  %4875 = vmatmul.mubr.bf16.gmra.mrb[0].mxu0 %v4809
  %v4876 = vpop.f32.mrb[0].mxu0
  %v4877 = vadd.f32 %v4775, %v4876
  %v4878 = vpop.f32.mrb[0].mxu0
  %v4879 = vpop.f32.mrb[0].mxu0
  %v4880 = vadd.f32 %v4775, %v4879
  %v4881 = vpop.f32.mrb[0].mxu0
  %4882 = vmatprep.mubr.bf16.mxu0 0
  %4883 = vmatmul.mubr.bf16.gmra.mrb[0].mxu0 %v4812
  %v4884 = vpop.f32.mrb[0].mxu0
  %v4885 = vadd.f32 %v4775, %v4884
  %v4886 = vpop.f32.mrb[0].mxu0
  %v4887 = vpop.f32.mrb[0].mxu0
  %v4888 = vadd.f32 %v4775, %v4887
  %v4889 = vpop.f32.mrb[0].mxu0
  %4890 = vmatprep.mubr.bf16.mxu0 0
  %4891 = vmatmul.mubr.bf16.gmra.mrb[0].mxu0 %v4815
  %v4892 = vpop.f32.mrb[0].mxu0
  %v4893 = vadd.f32 %v4775, %v4892
  %v4894 = vpop.f32.mrb[0].mxu0
  %v4895 = vpop.f32.mrb[0].mxu0
  %v4896 = vadd.f32 %v4775, %v4895
  %v4897 = vpop.f32.mrb[0].mxu0
  %4898 = vmatprep.mubr.bf16.mxu0 0
  %4899 = vmatmul.mubr.bf16.gmra.mrb[0].mxu0 %v4818
  %v4900 = vpop.f32.mrb[0].mxu0
  %v4901 = vadd.f32 %v4775, %v4900
  %v4902 = vpop.f32.mrb[0].mxu0
  %v4903 = vpop.f32.mrb[0].mxu0
  %v4904 = vadd.f32 %v4775, %v4903
  %v4905 = vpop.f32.mrb[0].mxu0
  %4906 = vmatprep.mubr.bf16.mxu0 0
  %4907 = vmatmul.mubr.bf16.gmra.mrb[0].mxu0 %v4821
  %v4908 = vpop.f32.mrb[0].mxu0
  %v4909 = vadd.f32 %v4775, %v4908
  %v4910 = vpop.f32.mrb[0].mxu0
  %v4911 = vpop.f32.mrb[0].mxu0
  %v4912 = vadd.f32 %v4775, %v4911
  %v4913 = vpop.f32.mrb[0].mxu0
  %4914 = vmatprep.mubr.bf16.mxu0 0
  %4915 = vmatmul.mubr.bf16.gmra.mrb[0].mxu0 %v4824
  %v4916 = vpop.f32.mrb[0].mxu0
  %v4917 = vadd.f32 %v4775, %v4916
  %v4918 = vpop.f32.mrb[0].mxu0
  %v4919 = vpop.f32.mrb[0].mxu0
  %v4920 = vadd.f32 %v4775, %v4919
  %v4921 = vpop.f32.mrb[0].mxu0
  %4922 = vdwg.mxu0
  %4923 = vst [vmem:[%s11] sm:$0xff] %v4861
  %4924 = vst [vmem:[%s11 + $0x8] sm:$0xff] %v4864
  %4925 = vst [vmem:[%s11 + $0x10] sm:$0xff] %v4869
  %4926 = vst [vmem:[%s11 + $0x18] sm:$0xff] %v4872
  %4927 = vst [vmem:[%s11 + $0x20] sm:$0xff] %v4877
  %4928 = vst [vmem:[%s11 + $0x28] sm:$0xff] %v4880
  %4929 = vst [vmem:[%s11 + $0x30] sm:$0xff] %v4885
  %4930 = vst [vmem:[%s11 + $0x38] sm:$0xff] %v4888
  %4931 = vst [vmem:[%s11 + $0x40] sm:$0xff] %v4893
  %4932 = vst [vmem:[%s11 + $0x48] sm:$0xff] %v4896
  %4933 = vst [vmem:[%s11 + $0x50] sm:$0xff] %v4901
  %4934 = vst [vmem:[%s11 + $0x58] sm:$0xff] %v4904
  %4935 = vst [vmem:[%s11 + $0x60] sm:$0xff] %v4909
  %4936 = vst [vmem:[%s11 + $0x68] sm:$0xff] %v4912
  %4937 = vst [vmem:[%s11 + $0x70] sm:$0xff] %v4917
  %4938 = vst [vmem:[%s11 + $0x78] sm:$0xff] %v4920
  // Predicated region
  $region46: #{cnn_net_forward.1} parent=0 // pred_check
    _
  $region47: #{cnn_net_forward.1} parent=0 // pred_check_branch
    %4940 = sbr.rel (0) target = $region49
  $region48: #{cnn_net_forward.1} parent=0 // pred_region
    _
  $region49: #{cnn_net_forward.1} parent=0 // pred_fallthru
    _
  // Predicated region
  $region50: #{cnn_net_forward.1} parent=0 // pred_check
    _
  $region51: #{cnn_net_forward.1} parent=0 // pred_check_branch
    %4942 = sbr.rel (0) target = $region53
  $region52: #{cnn_net_forward.1} parent=0 // pred_region
    _
  $region53: #{cnn_net_forward.1} parent=0 // pred_fallthru
    _

</llo_original>
